<compile_context>
chip_gen: v7x
topology: tpu7x:2x2x1
jax: 0.10.0
libtpu: 0.0.40
codegen_flags: <defaults>
</compile_context>

<pallas_src>
import functools

import jax
import jax.numpy as jnp
from jax.experimental import pallas as pl
from jax.experimental.pallas import tpu as pltpu

# ----------------------------- small synthetic config -----------------------------
N_EMBD = 32
N_HEAD = 4
HEAD_DIM = N_EMBD // N_HEAD
N_LAYER = 2
N_INNER = 4 * N_EMBD
N_POSITIONS = 64
VOCAB_SIZE = 96
LN_EPS = 1e-5

BATCH = 2
SEQ = 8


# ----------------------------- kernel helpers -----------------------------
def _ln(x, g, b):
    # LayerNorm in f32 (elementwise math stays f32 even though matmul inputs are bf16).
    m = jnp.mean(x, axis=-1, keepdims=True)
    v = jnp.mean((x - m) ** 2, axis=-1, keepdims=True)
    return (x - m) * jax.lax.rsqrt(v + LN_EPS) * g + b


def fused_gpt2_tts_kernel(h_ref,
                          ln1_g, ln1_b, w_qkv, b_qkv, w_ap, b_ap,
                          ln2_g, ln2_b, w_fc, b_fc, w_mp, b_mp,
                          lnf_g, lnf_b, fin_g, fin_b,
                          o_ref):
    """One batch element (one grid program) of the whole GPT2TTS forward.

    h_ref : (1, S, D) f32 per-batch hidden tile.  Per-layer weights are stacked along axis 0
    (N_LAYER, ...), live in VMEM for the whole call, and are indexed with a static unrolled
    Python loop (fine at this toy size; see scaling notes above for real sizes).
    """
    x = h_ref[0]                              # (S, D) f32
    S, D = x.shape
    scale = 1.0 / (HEAD_DIM ** 0.5)
    bf16 = jnp.bfloat16

    # Causal additive mask, hoisted out of the layer/head loops (identical everywhere).
    row = jax.lax.broadcasted_iota(jnp.int32, (S, S), 0)
    col = jax.lax.broadcasted_iota(jnp.int32, (S, S), 1)
    neg_mask = jnp.where(row >= col, 0.0, -1e30).astype(jnp.float32)

    for l in range(N_LAYER):                  # static, unrolled layer loop
        # -------- attention branch --------
        h1 = _ln(x, ln1_g[l], ln1_b[l])
        # Fused QKV: one (D, 3D) bf16 matmul, f32 accumulation, then static lane slices.
        qkv = jnp.dot(h1.astype(bf16), w_qkv[l],
                      preferred_element_type=jnp.float32) + b_qkv[l]          # (S, 3D) f32
        q = qkv[:, 0 * D:1 * D]
        k = qkv[:, 1 * D:2 * D]
        v = qkv[:, 2 * D:3 * D]
        kT = k.T                               # one (D, S) transpose per layer (f32, XLU)

        ctx_heads = []
        for h in range(N_HEAD):                # static head loop; (S, HEAD_DIM) slabs, no K/V copy
            lo = h * HEAD_DIM
            hi = lo + HEAD_DIM
            s = jnp.dot(q[:, lo:hi].astype(bf16), kT[lo:hi, :].astype(bf16),
                        preferred_element_type=jnp.float32) * scale + neg_mask    # (S, S) f32
            s = s - jnp.max(s, axis=-1, keepdims=True)       # per-head, per-row max (numerics fix)
            p = jnp.exp(s)                                   # masked entries underflow to exactly 0
            inv = pl.reciprocal(jnp.sum(p, axis=-1, keepdims=True), approx=True)  # denom >= 1
            p = p * inv
            ctx_heads.append(jnp.dot(p.astype(bf16), v[:, lo:hi].astype(bf16),
                                     preferred_element_type=jnp.float32))         # (S, HEAD_DIM)
        ctx = jnp.concatenate(ctx_heads, axis=-1)            # (S, D) f32

        attn_out = jnp.dot(ctx.astype(bf16), w_ap[l],
                           preferred_element_type=jnp.float32) + b_ap[l]
        x = x + attn_out

        # -------- MLP branch --------
        h2 = _ln(x, ln2_g[l], ln2_b[l])
        ff = jnp.dot(h2.astype(bf16), w_fc[l],
                     preferred_element_type=jnp.float32) + b_fc[l]            # (S, 4D) f32
        # gelu_new (NewGELU), f32 elementwise; tanh goes to the EUP slot.
        ff = 0.5 * ff * (1.0 + jnp.tanh(0.7978845608028654 * (ff + 0.044715 * ff * ff * ff)))
        mlp_out = jnp.dot(ff.astype(bf16), w_mp[l],
                          preferred_element_type=jnp.float32) + b_mp[l]
        x = x + mlp_out

    # transformer.ln_f then model.final_norm
    x = _ln(x, lnf_g[...], lnf_b[...])
    x = _ln(x, fin_g[...], fin_b[...])
    o_ref[0, :, :] = x


# ----------------------------- wrapper -----------------------------
def _rep_spec(shape):
    """Full-array block replicated across the batch grid axis."""
    n = len(shape)
    return pl.BlockSpec(shape, lambda b, _n=n: (0,) * _n)


def _cost_estimate(B, S, operands):
    D, F, H, Hd, L = N_EMBD, N_INNER, N_HEAD, HEAD_DIM, N_LAYER
    matmul_flops = 2 * B * L * (S * D * 3 * D            # fused qkv
                                + 2 * H * S * S * Hd     # scores + context
                                + S * D * D              # attn out proj
                                + 2 * S * D * F)         # mlp fc + proj
    transcendentals = B * L * (H * S * S + S * F) + B * S * (2 * L + 2)   # exp + tanh + rsqrt
    bytes_accessed = sum(int(o.size) * o.dtype.itemsize for o in operands) + B * S * D * 4
    return pl.CostEstimate(flops=int(matmul_flops),
                           transcendentals=int(transcendentals),
                           bytes_accessed=int(bytes_accessed))


def gpt2_tts_forward(params, input_ids, positions):
    """input_ids, positions: int32 [B, S]. Returns hidden_states [B, S, D]."""
    B, S = input_ids.shape
    assert S == SEQ
    # Embedding gathers stay in plain JAX (positions[0] > 0 branch of the PyTorch forward).
    inputs_embeds = jnp.take(params["audio_emb"], input_ids, axis=0)       # (B, S, D)
    pos_emb = jnp.take(params["text_pos_emb"], positions, axis=0)          # (B, S, D)
    hidden = (inputs_embeds + pos_emb).astype(jnp.float32)                 # (B, S, D) f32

    operands = (
        hidden,
        params["ln1_g"], params["ln1_b"],
        params["w_qkv"], params["b_qkv"],
        params["w_aproj"], params["b_aproj"],
        params["ln2_g"], params["ln2_b"],
        params["w_fc"], params["b_fc"],
        params["w_mproj"], params["b_mproj"],
        params["ln_f_g"], params["ln_f_b"],
        params["final_norm_g"], params["final_norm_b"],
    )

    in_specs = [pl.BlockSpec((1, S, N_EMBD), lambda b: (b, 0, 0))]          # per-batch hidden tile
    in_specs += [_rep_spec(op.shape) for op in operands[1:]]                # weights: VMEM-resident

    out = pl.pallas_call(
        fused_gpt2_tts_kernel,
        out_shape=jax.ShapeDtypeStruct((B, S, N_EMBD), jnp.float32),
        grid=(B,),                                                          # batch-parallel grid
        in_specs=in_specs,
        out_specs=pl.BlockSpec((1, S, N_EMBD), lambda b: (b, 0, 0)),
        compiler_params=pltpu.CompilerParams(dimension_semantics=("parallel",)),
        cost_estimate=_cost_estimate(B, S, operands),
    )(*operands)
    return out


# ----------------------------- parameter init -----------------------------
def init_params(key):
    keys = iter(jax.random.split(key, 64))

    def normal(shape, std=0.02):
        return (std * jax.random.normal(next(keys), shape)).astype(jnp.float32)

    def wnormal(shape, std=0.02):
        # Matmul weights stored in bf16 (native MXU input dtype); accumulation stays f32.
        return normal(shape, std).astype(jnp.bfloat16)

    L, D, F = N_LAYER, N_EMBD, N_INNER
    # c_attn kept fused as one (D, 3D) matrix ([q | k | v] columns), already transposed as in
    # vLLM load_weights (Conv1D -> y = x @ W + b). Per-layer tensors stacked on axis 0.
    return {
        "audio_emb": normal((VOCAB_SIZE, D)),
        "text_pos_emb": normal((N_POSITIONS, D)),
        "ln1_g": jnp.ones((L, 1, D), jnp.float32),
        "ln1_b": jnp.zeros((L, 1, D), jnp.float32),
        "w_qkv": wnormal((L, D, 3 * D)), "b_qkv": jnp.zeros((L, 1, 3 * D), jnp.float32),
        "w_aproj": wnormal((L, D, D)), "b_aproj": jnp.zeros((L, 1, D), jnp.float32),
        "ln2_g": jnp.ones((L, 1, D), jnp.float32),
        "ln2_b": jnp.zeros((L, 1, D), jnp.float32),
        "w_fc": wnormal((L, D, F)), "b_fc": jnp.zeros((L, 1, F), jnp.float32),
        "w_mproj": wnormal((L, F, D)), "b_mproj": jnp.zeros((L, 1, D), jnp.float32),
        "ln_f_g": jnp.ones((1, D), jnp.float32),
        "ln_f_b": jnp.zeros((1, D), jnp.float32),
        "final_norm_g": jnp.ones((1, D), jnp.float32),
        "final_norm_b": jnp.zeros((1, D), jnp.float32),
    }


# ----------------------------- main -----------------------------
if __name__ == "__main__":
    key = jax.random.PRNGKey(0)
    pkey, ikey = jax.random.split(key)
    params = init_params(pkey)

    input_ids = jax.random.randint(ikey, (BATCH, SEQ), 0, VOCAB_SIZE, dtype=jnp.int32)
    # positions start at 1 so the positions[0] > 0 branch (pos-embedding add) is exercised
    positions = jnp.broadcast_to(jnp.arange(1, SEQ + 1, dtype=jnp.int32), (BATCH, SEQ))

    fwd = jax.jit(functools.partial(gpt2_tts_forward, params))
    out = fwd(input_ids, positions)
    jax.block_until_ready(out)

    assert out.shape == (BATCH, SEQ, N_EMBD)
    assert jnp.all(jnp.isfinite(out))
    print("KERNEL_OK")
</pallas_src>

<mosaic_0001>
module attributes {stable_mosaic.version = 11 : i64} {
  func.func @fused_gpt2_tts_kernel(%arg0: i32, %arg1: memref<1x8x32xf32, #tpu.memory_space<vmem>>, %arg2: memref<2x1x32xf32, #tpu.memory_space<vmem>>, %arg3: memref<2x1x32xf32, #tpu.memory_space<vmem>>, %arg4: memref<2x32x96xbf16, #tpu.memory_space<vmem>>, %arg5: memref<2x1x96xf32, #tpu.memory_space<vmem>>, %arg6: memref<2x32x32xbf16, #tpu.memory_space<vmem>>, %arg7: memref<2x1x32xf32, #tpu.memory_space<vmem>>, %arg8: memref<2x1x32xf32, #tpu.memory_space<vmem>>, %arg9: memref<2x1x32xf32, #tpu.memory_space<vmem>>, %arg10: memref<2x32x128xbf16, #tpu.memory_space<vmem>>, %arg11: memref<2x1x128xf32, #tpu.memory_space<vmem>>, %arg12: memref<2x128x32xbf16, #tpu.memory_space<vmem>>, %arg13: memref<2x1x32xf32, #tpu.memory_space<vmem>>, %arg14: memref<1x32xf32, #tpu.memory_space<vmem>>, %arg15: memref<1x32xf32, #tpu.memory_space<vmem>>, %arg16: memref<1x32xf32, #tpu.memory_space<vmem>>, %arg17: memref<1x32xf32, #tpu.memory_space<vmem>>, %arg18: memref<1x8x32xf32, #tpu.memory_space<vmem>>) attributes {dimension_semantics = [#tpu.dimension_semantics<parallel>], iteration_bounds = array<i64: 2>, scalar_prefetch = 0 : i64, scratch_operands = 0 : i64, tpu.core_type = #tpu.core_type<tc>, window_params = [{transform_indices = @transform_0, window_bounds = array<i64: 1, 8, 32>}, {pipeline_mode = #tpu.pipeline_mode<synchronous>, transform_indices = @transform_1, window_bounds = array<i64: 2, 1, 32>}, {pipeline_mode = #tpu.pipeline_mode<synchronous>, transform_indices = @transform_2, window_bounds = array<i64: 2, 1, 32>}, {pipeline_mode = #tpu.pipeline_mode<synchronous>, transform_indices = @transform_3, window_bounds = array<i64: 2, 32, 96>}, {pipeline_mode = #tpu.pipeline_mode<synchronous>, transform_indices = @transform_4, window_bounds = array<i64: 2, 1, 96>}, {pipeline_mode = #tpu.pipeline_mode<synchronous>, transform_indices = @transform_5, window_bounds = array<i64: 2, 32, 32>}, {pipeline_mode = #tpu.pipeline_mode<synchronous>, transform_indices = @transform_6, window_bounds = array<i64: 2, 1, 32>}, {pipeline_mode = #tpu.pipeline_mode<synchronous>, transform_indices = @transform_7, window_bounds = array<i64: 2, 1, 32>}, {pipeline_mode = #tpu.pipeline_mode<synchronous>, transform_indices = @transform_8, window_bounds = array<i64: 2, 1, 32>}, {pipeline_mode = #tpu.pipeline_mode<synchronous>, transform_indices = @transform_9, window_bounds = array<i64: 2, 32, 128>}, {pipeline_mode = #tpu.pipeline_mode<synchronous>, transform_indices = @transform_10, window_bounds = array<i64: 2, 1, 128>}, {pipeline_mode = #tpu.pipeline_mode<synchronous>, transform_indices = @transform_11, window_bounds = array<i64: 2, 128, 32>}, {pipeline_mode = #tpu.pipeline_mode<synchronous>, transform_indices = @transform_12, window_bounds = array<i64: 2, 1, 32>}, {pipeline_mode = #tpu.pipeline_mode<synchronous>, transform_indices = @transform_13, window_bounds = array<i64: 1, 32>}, {pipeline_mode = #tpu.pipeline_mode<synchronous>, transform_indices = @transform_14, window_bounds = array<i64: 1, 32>}, {pipeline_mode = #tpu.pipeline_mode<synchronous>, transform_indices = @transform_15, window_bounds = array<i64: 1, 32>}, {pipeline_mode = #tpu.pipeline_mode<synchronous>, transform_indices = @transform_16, window_bounds = array<i64: 1, 32>}, {transform_indices = @transform_17, window_bounds = array<i64: 1, 8, 32>}]} {
    %c0 = arith.constant 0 : index
    %c0_0 = arith.constant 0 : index
    %c0_1 = arith.constant 0 : index
    %0 = vector.load %arg1[%c0, %c0_0, %c0_1] : memref<1x8x32xf32, #tpu.memory_space<vmem>>, vector<1x8x32xf32>
    %1 = vector.shape_cast %0 : vector<1x8x32xf32> to vector<8x32xf32>
    %2 = tpu.iota {dimensions = array<i32: 0>} : vector<8x8xi32>
    %3 = tpu.iota {dimensions = array<i32: 1>} : vector<8x8xi32>
    %4 = arith.cmpi sge, %2, %3 : vector<8x8xi32>
    %cst = arith.constant 0.000000e+00 : f32
    %cst_2 = arith.constant -1.000000e+30 : f32
    %5 = vector.broadcast %cst : f32 to vector<8x8xf32>
    %6 = vector.broadcast %cst_2 : f32 to vector<8x8xf32>
    %7 = arith.select %4, %5, %6 : vector<8x8xi1>, vector<8x8xf32>
    %c0_3 = arith.constant 0 : index
    %c0_4 = arith.constant 0 : index
    %c0_5 = arith.constant 0 : index
    %8 = vector.load %arg2[%c0_3, %c0_4, %c0_5] : memref<2x1x32xf32, #tpu.memory_space<vmem>>, vector<1x1x32xf32>
    %9 = vector.shape_cast %8 : vector<1x1x32xf32> to vector<1x32xf32>
    %c0_6 = arith.constant 0 : index
    %c0_7 = arith.constant 0 : index
    %c0_8 = arith.constant 0 : index
    %10 = vector.load %arg3[%c0_6, %c0_7, %c0_8] : memref<2x1x32xf32, #tpu.memory_space<vmem>>, vector<1x1x32xf32>
    %11 = vector.shape_cast %10 : vector<1x1x32xf32> to vector<1x32xf32>
    %cst_9 = arith.constant dense<0.000000e+00> : vector<8xf32>
    %12 = vector.multi_reduction <add>, %1, %cst_9 [1] : vector<8x32xf32> to vector<8xf32>
    %13 = vector.shape_cast %12 : vector<8xf32> to vector<8x1xf32>
    %cst_10 = arith.constant 3.200000e+01 : f32
    %14 = vector.broadcast %cst_10 : f32 to vector<8x1xf32>
    %15 = arith.divf %13, %14 : vector<8x1xf32>
    %16 = vector.broadcast %15 : vector<8x1xf32> to vector<8x32xf32>
    %17 = arith.subf %1, %16 : vector<8x32xf32>
    %18 = arith.mulf %17, %17 : vector<8x32xf32>
    %cst_11 = arith.constant dense<0.000000e+00> : vector<8xf32>
    %19 = vector.multi_reduction <add>, %18, %cst_11 [1] : vector<8x32xf32> to vector<8xf32>
    %20 = vector.shape_cast %19 : vector<8xf32> to vector<8x1xf32>
    %cst_12 = arith.constant 3.200000e+01 : f32
    %21 = vector.broadcast %cst_12 : f32 to vector<8x1xf32>
    %22 = arith.divf %20, %21 : vector<8x1xf32>
    %23 = vector.broadcast %15 : vector<8x1xf32> to vector<8x32xf32>
    %24 = arith.subf %1, %23 : vector<8x32xf32>
    %cst_13 = arith.constant 9.99999974E-6 : f32
    %25 = vector.broadcast %cst_13 : f32 to vector<8x1xf32>
    %26 = arith.addf %22, %25 : vector<8x1xf32>
    %27 = math.rsqrt %26 : vector<8x1xf32>
    %28 = vector.broadcast %27 : vector<8x1xf32> to vector<8x32xf32>
    %29 = arith.mulf %24, %28 : vector<8x32xf32>
    %30 = vector.broadcast %9 : vector<1x32xf32> to vector<8x32xf32>
    %31 = arith.mulf %29, %30 : vector<8x32xf32>
    %32 = vector.broadcast %11 : vector<1x32xf32> to vector<8x32xf32>
    %33 = arith.addf %31, %32 : vector<8x32xf32>
    %34 = arith.truncf %33 : vector<8x32xf32> to vector<8x32xbf16>
    %c0_14 = arith.constant 0 : index
    %c0_15 = arith.constant 0 : index
    %c0_16 = arith.constant 0 : index
    %35 = vector.load %arg4[%c0_14, %c0_15, %c0_16] : memref<2x32x96xbf16, #tpu.memory_space<vmem>>, vector<1x32x96xbf16>
    %36 = vector.shape_cast %35 : vector<1x32x96xbf16> to vector<32x96xbf16>
    %cst_17 = arith.constant dense<0.000000e+00> : vector<8x96xf32>
    %37 = tpu.matmul %34, %36, %cst_17 {dimension_numbers = #tpu.dot_dimension_numbers<[1], [0], [0], [1], [0, 0, 1, 1], [], []>} : vector<8x32xbf16>, vector<32x96xbf16>, vector<8x96xf32> -> vector<8x96xf32>
    %c0_18 = arith.constant 0 : index
    %c0_19 = arith.constant 0 : index
    %c0_20 = arith.constant 0 : index
    %38 = vector.load %arg5[%c0_18, %c0_19, %c0_20] : memref<2x1x96xf32, #tpu.memory_space<vmem>>, vector<1x1x96xf32>
    %39 = vector.shape_cast %38 : vector<1x1x96xf32> to vector<1x96xf32>
    %40 = vector.broadcast %39 : vector<1x96xf32> to vector<8x96xf32>
    %41 = arith.addf %37, %40 : vector<8x96xf32>
    %42 = vector.extract_strided_slice %41 {offsets = [0, 0], sizes = [8, 32], strides = [1, 1]} : vector<8x96xf32> to vector<8x32xf32>
    %43 = vector.extract_strided_slice %41 {offsets = [0, 32], sizes = [8, 32], strides = [1, 1]} : vector<8x96xf32> to vector<8x32xf32>
    %44 = vector.extract_strided_slice %41 {offsets = [0, 64], sizes = [8, 32], strides = [1, 1]} : vector<8x96xf32> to vector<8x32xf32>
    %45 = tpu.transpose %43, [1, 0] : vector<8x32xf32> -> vector<32x8xf32>
    %46 = vector.extract_strided_slice %42 {offsets = [0, 0], sizes = [8, 8], strides = [1, 1]} : vector<8x32xf32> to vector<8x8xf32>
    %47 = arith.truncf %46 : vector<8x8xf32> to vector<8x8xbf16>
    %48 = vector.extract_strided_slice %45 {offsets = [0, 0], sizes = [8, 8], strides = [1, 1]} : vector<32x8xf32> to vector<8x8xf32>
    %49 = arith.truncf %48 : vector<8x8xf32> to vector<8x8xbf16>
    %cst_21 = arith.constant dense<0.000000e+00> : vector<8x8xf32>
    %50 = tpu.matmul %47, %49, %cst_21 {dimension_numbers = #tpu.dot_dimension_numbers<[1], [0], [0], [1], [0, 0, 1, 1], [], []>} : vector<8x8xbf16>, vector<8x8xbf16>, vector<8x8xf32> -> vector<8x8xf32>
    %cst_22 = arith.constant 0.353553385 : f32
    %51 = vector.broadcast %cst_22 : f32 to vector<8x8xf32>
    %52 = arith.mulf %50, %51 : vector<8x8xf32>
    %53 = arith.addf %52, %7 : vector<8x8xf32>
    %cst_23 = arith.constant dense<0xFF800000> : vector<8xf32>
    %54 = vector.multi_reduction <maximumf>, %53, %cst_23 [1] : vector<8x8xf32> to vector<8xf32>
    %55 = vector.shape_cast %54 : vector<8xf32> to vector<8x1xf32>
    %56 = vector.broadcast %55 : vector<8x1xf32> to vector<8x8xf32>
    %57 = arith.subf %53, %56 : vector<8x8xf32>
    %58 = math.exp %57 : vector<8x8xf32>
    %cst_24 = arith.constant dense<0.000000e+00> : vector<8xf32>
    %59 = vector.multi_reduction <add>, %58, %cst_24 [1] : vector<8x8xf32> to vector<8xf32>
    %60 = vector.shape_cast %59 : vector<8xf32> to vector<8x1xf32>
    %61 = tpu.reciprocal %60 {approx = true} : vector<8x1xf32> -> vector<8x1xf32>
    %62 = vector.broadcast %61 : vector<8x1xf32> to vector<8x8xf32>
    %63 = arith.mulf %58, %62 : vector<8x8xf32>
    %64 = arith.truncf %63 : vector<8x8xf32> to vector<8x8xbf16>
    %65 = vector.extract_strided_slice %44 {offsets = [0, 0], sizes = [8, 8], strides = [1, 1]} : vector<8x32xf32> to vector<8x8xf32>
    %66 = arith.truncf %65 : vector<8x8xf32> to vector<8x8xbf16>
    %cst_25 = arith.constant dense<0.000000e+00> : vector<8x8xf32>
    %67 = tpu.matmul %64, %66, %cst_25 {dimension_numbers = #tpu.dot_dimension_numbers<[1], [0], [0], [1], [0, 0, 1, 1], [], []>} : vector<8x8xbf16>, vector<8x8xbf16>, vector<8x8xf32> -> vector<8x8xf32>
    %68 = vector.extract_strided_slice %42 {offsets = [0, 8], sizes = [8, 8], strides = [1, 1]} : vector<8x32xf32> to vector<8x8xf32>
    %69 = arith.truncf %68 : vector<8x8xf32> to vector<8x8xbf16>
    %70 = vector.extract_strided_slice %45 {offsets = [8, 0], sizes = [8, 8], strides = [1, 1]} : vector<32x8xf32> to vector<8x8xf32>
    %71 = arith.truncf %70 : vector<8x8xf32> to vector<8x8xbf16>
    %cst_26 = arith.constant dense<0.000000e+00> : vector<8x8xf32>
    %72 = tpu.matmul %69, %71, %cst_26 {dimension_numbers = #tpu.dot_dimension_numbers<[1], [0], [0], [1], [0, 0, 1, 1], [], []>} : vector<8x8xbf16>, vector<8x8xbf16>, vector<8x8xf32> -> vector<8x8xf32>
    %cst_27 = arith.constant 0.353553385 : f32
    %73 = vector.broadcast %cst_27 : f32 to vector<8x8xf32>
    %74 = arith.mulf %72, %73 : vector<8x8xf32>
    %75 = arith.addf %74, %7 : vector<8x8xf32>
    %cst_28 = arith.constant dense<0xFF800000> : vector<8xf32>
    %76 = vector.multi_reduction <maximumf>, %75, %cst_28 [1] : vector<8x8xf32> to vector<8xf32>
    %77 = vector.shape_cast %76 : vector<8xf32> to vector<8x1xf32>
    %78 = vector.broadcast %77 : vector<8x1xf32> to vector<8x8xf32>
    %79 = arith.subf %75, %78 : vector<8x8xf32>
    %80 = math.exp %79 : vector<8x8xf32>
    %cst_29 = arith.constant dense<0.000000e+00> : vector<8xf32>
    %81 = vector.multi_reduction <add>, %80, %cst_29 [1] : vector<8x8xf32> to vector<8xf32>
    %82 = vector.shape_cast %81 : vector<8xf32> to vector<8x1xf32>
    %83 = tpu.reciprocal %82 {approx = true} : vector<8x1xf32> -> vector<8x1xf32>
    %84 = vector.broadcast %83 : vector<8x1xf32> to vector<8x8xf32>
    %85 = arith.mulf %80, %84 : vector<8x8xf32>
    %86 = arith.truncf %85 : vector<8x8xf32> to vector<8x8xbf16>
    %87 = vector.extract_strided_slice %44 {offsets = [0, 8], sizes = [8, 8], strides = [1, 1]} : vector<8x32xf32> to vector<8x8xf32>
    %88 = arith.truncf %87 : vector<8x8xf32> to vector<8x8xbf16>
    %cst_30 = arith.constant dense<0.000000e+00> : vector<8x8xf32>
    %89 = tpu.matmul %86, %88, %cst_30 {dimension_numbers = #tpu.dot_dimension_numbers<[1], [0], [0], [1], [0, 0, 1, 1], [], []>} : vector<8x8xbf16>, vector<8x8xbf16>, vector<8x8xf32> -> vector<8x8xf32>
    %90 = vector.extract_strided_slice %42 {offsets = [0, 16], sizes = [8, 8], strides = [1, 1]} : vector<8x32xf32> to vector<8x8xf32>
    %91 = arith.truncf %90 : vector<8x8xf32> to vector<8x8xbf16>
    %92 = vector.extract_strided_slice %45 {offsets = [16, 0], sizes = [8, 8], strides = [1, 1]} : vector<32x8xf32> to vector<8x8xf32>
    %93 = arith.truncf %92 : vector<8x8xf32> to vector<8x8xbf16>
    %cst_31 = arith.constant dense<0.000000e+00> : vector<8x8xf32>
    %94 = tpu.matmul %91, %93, %cst_31 {dimension_numbers = #tpu.dot_dimension_numbers<[1], [0], [0], [1], [0, 0, 1, 1], [], []>} : vector<8x8xbf16>, vector<8x8xbf16>, vector<8x8xf32> -> vector<8x8xf32>
    %cst_32 = arith.constant 0.353553385 : f32
    %95 = vector.broadcast %cst_32 : f32 to vector<8x8xf32>
    %96 = arith.mulf %94, %95 : vector<8x8xf32>
    %97 = arith.addf %96, %7 : vector<8x8xf32>
    %cst_33 = arith.constant dense<0xFF800000> : vector<8xf32>
    %98 = vector.multi_reduction <maximumf>, %97, %cst_33 [1] : vector<8x8xf32> to vector<8xf32>
    %99 = vector.shape_cast %98 : vector<8xf32> to vector<8x1xf32>
    %100 = vector.broadcast %99 : vector<8x1xf32> to vector<8x8xf32>
    %101 = arith.subf %97, %100 : vector<8x8xf32>
    %102 = math.exp %101 : vector<8x8xf32>
    %cst_34 = arith.constant dense<0.000000e+00> : vector<8xf32>
    %103 = vector.multi_reduction <add>, %102, %cst_34 [1] : vector<8x8xf32> to vector<8xf32>
    %104 = vector.shape_cast %103 : vector<8xf32> to vector<8x1xf32>
    %105 = tpu.reciprocal %104 {approx = true} : vector<8x1xf32> -> vector<8x1xf32>
    %106 = vector.broadcast %105 : vector<8x1xf32> to vector<8x8xf32>
    %107 = arith.mulf %102, %106 : vector<8x8xf32>
    %108 = arith.truncf %107 : vector<8x8xf32> to vector<8x8xbf16>
    %109 = vector.extract_strided_slice %44 {offsets = [0, 16], sizes = [8, 8], strides = [1, 1]} : vector<8x32xf32> to vector<8x8xf32>
    %110 = arith.truncf %109 : vector<8x8xf32> to vector<8x8xbf16>
    %cst_35 = arith.constant dense<0.000000e+00> : vector<8x8xf32>
    %111 = tpu.matmul %108, %110, %cst_35 {dimension_numbers = #tpu.dot_dimension_numbers<[1], [0], [0], [1], [0, 0, 1, 1], [], []>} : vector<8x8xbf16>, vector<8x8xbf16>, vector<8x8xf32> -> vector<8x8xf32>
    %112 = vector.extract_strided_slice %42 {offsets = [0, 24], sizes = [8, 8], strides = [1, 1]} : vector<8x32xf32> to vector<8x8xf32>
    %113 = arith.truncf %112 : vector<8x8xf32> to vector<8x8xbf16>
    %114 = vector.extract_strided_slice %45 {offsets = [24, 0], sizes = [8, 8], strides = [1, 1]} : vector<32x8xf32> to vector<8x8xf32>
    %115 = arith.truncf %114 : vector<8x8xf32> to vector<8x8xbf16>
    %cst_36 = arith.constant dense<0.000000e+00> : vector<8x8xf32>
    %116 = tpu.matmul %113, %115, %cst_36 {dimension_numbers = #tpu.dot_dimension_numbers<[1], [0], [0], [1], [0, 0, 1, 1], [], []>} : vector<8x8xbf16>, vector<8x8xbf16>, vector<8x8xf32> -> vector<8x8xf32>
    %cst_37 = arith.constant 0.353553385 : f32
    %117 = vector.broadcast %cst_37 : f32 to vector<8x8xf32>
    %118 = arith.mulf %116, %117 : vector<8x8xf32>
    %119 = arith.addf %118, %7 : vector<8x8xf32>
    %cst_38 = arith.constant dense<0xFF800000> : vector<8xf32>
    %120 = vector.multi_reduction <maximumf>, %119, %cst_38 [1] : vector<8x8xf32> to vector<8xf32>
    %121 = vector.shape_cast %120 : vector<8xf32> to vector<8x1xf32>
    %122 = vector.broadcast %121 : vector<8x1xf32> to vector<8x8xf32>
    %123 = arith.subf %119, %122 : vector<8x8xf32>
    %124 = math.exp %123 : vector<8x8xf32>
    %cst_39 = arith.constant dense<0.000000e+00> : vector<8xf32>
    %125 = vector.multi_reduction <add>, %124, %cst_39 [1] : vector<8x8xf32> to vector<8xf32>
    %126 = vector.shape_cast %125 : vector<8xf32> to vector<8x1xf32>
    %127 = tpu.reciprocal %126 {approx = true} : vector<8x1xf32> -> vector<8x1xf32>
    %128 = vector.broadcast %127 : vector<8x1xf32> to vector<8x8xf32>
    %129 = arith.mulf %124, %128 : vector<8x8xf32>
    %130 = arith.truncf %129 : vector<8x8xf32> to vector<8x8xbf16>
    %131 = vector.extract_strided_slice %44 {offsets = [0, 24], sizes = [8, 8], strides = [1, 1]} : vector<8x32xf32> to vector<8x8xf32>
    %132 = arith.truncf %131 : vector<8x8xf32> to vector<8x8xbf16>
    %cst_40 = arith.constant dense<0.000000e+00> : vector<8x8xf32>
    %133 = tpu.matmul %130, %132, %cst_40 {dimension_numbers = #tpu.dot_dimension_numbers<[1], [0], [0], [1], [0, 0, 1, 1], [], []>} : vector<8x8xbf16>, vector<8x8xbf16>, vector<8x8xf32> -> vector<8x8xf32>
    %134 = tpu.concatenate %67, %89, %111, %133 in 1 : vector<8x8xf32>, vector<8x8xf32>, vector<8x8xf32>, vector<8x8xf32> -> vector<8x32xf32>
    %135 = arith.truncf %134 : vector<8x32xf32> to vector<8x32xbf16>
    %c0_41 = arith.constant 0 : index
    %c0_42 = arith.constant 0 : index
    %c0_43 = arith.constant 0 : index
    %136 = vector.load %arg6[%c0_41, %c0_42, %c0_43] : memref<2x32x32xbf16, #tpu.memory_space<vmem>>, vector<1x32x32xbf16>
    %137 = vector.shape_cast %136 : vector<1x32x32xbf16> to vector<32x32xbf16>
    %cst_44 = arith.constant dense<0.000000e+00> : vector<8x32xf32>
    %138 = tpu.matmul %135, %137, %cst_44 {dimension_numbers = #tpu.dot_dimension_numbers<[1], [0], [0], [1], [0, 0, 1, 1], [], []>} : vector<8x32xbf16>, vector<32x32xbf16>, vector<8x32xf32> -> vector<8x32xf32>
    %c0_45 = arith.constant 0 : index
    %c0_46 = arith.constant 0 : index
    %c0_47 = arith.constant 0 : index
    %139 = vector.load %arg7[%c0_45, %c0_46, %c0_47] : memref<2x1x32xf32, #tpu.memory_space<vmem>>, vector<1x1x32xf32>
    %140 = vector.shape_cast %139 : vector<1x1x32xf32> to vector<1x32xf32>
    %141 = vector.broadcast %140 : vector<1x32xf32> to vector<8x32xf32>
    %142 = arith.addf %138, %141 : vector<8x32xf32>
    %143 = arith.addf %1, %142 : vector<8x32xf32>
    %c0_48 = arith.constant 0 : index
    %c0_49 = arith.constant 0 : index
    %c0_50 = arith.constant 0 : index
    %144 = vector.load %arg8[%c0_48, %c0_49, %c0_50] : memref<2x1x32xf32, #tpu.memory_space<vmem>>, vector<1x1x32xf32>
    %145 = vector.shape_cast %144 : vector<1x1x32xf32> to vector<1x32xf32>
    %c0_51 = arith.constant 0 : index
    %c0_52 = arith.constant 0 : index
    %c0_53 = arith.constant 0 : index
    %146 = vector.load %arg9[%c0_51, %c0_52, %c0_53] : memref<2x1x32xf32, #tpu.memory_space<vmem>>, vector<1x1x32xf32>
    %147 = vector.shape_cast %146 : vector<1x1x32xf32> to vector<1x32xf32>
    %cst_54 = arith.constant dense<0.000000e+00> : vector<8xf32>
    %148 = vector.multi_reduction <add>, %143, %cst_54 [1] : vector<8x32xf32> to vector<8xf32>
    %149 = vector.shape_cast %148 : vector<8xf32> to vector<8x1xf32>
    %cst_55 = arith.constant 3.200000e+01 : f32
    %150 = vector.broadcast %cst_55 : f32 to vector<8x1xf32>
    %151 = arith.divf %149, %150 : vector<8x1xf32>
    %152 = vector.broadcast %151 : vector<8x1xf32> to vector<8x32xf32>
    %153 = arith.subf %143, %152 : vector<8x32xf32>
    %154 = arith.mulf %153, %153 : vector<8x32xf32>
    %cst_56 = arith.constant dense<0.000000e+00> : vector<8xf32>
    %155 = vector.multi_reduction <add>, %154, %cst_56 [1] : vector<8x32xf32> to vector<8xf32>
    %156 = vector.shape_cast %155 : vector<8xf32> to vector<8x1xf32>
    %cst_57 = arith.constant 3.200000e+01 : f32
    %157 = vector.broadcast %cst_57 : f32 to vector<8x1xf32>
    %158 = arith.divf %156, %157 : vector<8x1xf32>
    %159 = vector.broadcast %151 : vector<8x1xf32> to vector<8x32xf32>
    %160 = arith.subf %143, %159 : vector<8x32xf32>
    %cst_58 = arith.constant 9.99999974E-6 : f32
    %161 = vector.broadcast %cst_58 : f32 to vector<8x1xf32>
    %162 = arith.addf %158, %161 : vector<8x1xf32>
    %163 = math.rsqrt %162 : vector<8x1xf32>
    %164 = vector.broadcast %163 : vector<8x1xf32> to vector<8x32xf32>
    %165 = arith.mulf %160, %164 : vector<8x32xf32>
    %166 = vector.broadcast %145 : vector<1x32xf32> to vector<8x32xf32>
    %167 = arith.mulf %165, %166 : vector<8x32xf32>
    %168 = vector.broadcast %147 : vector<1x32xf32> to vector<8x32xf32>
    %169 = arith.addf %167, %168 : vector<8x32xf32>
    %170 = arith.truncf %169 : vector<8x32xf32> to vector<8x32xbf16>
    %c0_59 = arith.constant 0 : index
    %c0_60 = arith.constant 0 : index
    %c0_61 = arith.constant 0 : index
    %171 = vector.load %arg10[%c0_59, %c0_60, %c0_61] : memref<2x32x128xbf16, #tpu.memory_space<vmem>>, vector<1x32x128xbf16>
    %172 = vector.shape_cast %171 : vector<1x32x128xbf16> to vector<32x128xbf16>
    %cst_62 = arith.constant dense<0.000000e+00> : vector<8x128xf32>
    %173 = tpu.matmul %170, %172, %cst_62 {dimension_numbers = #tpu.dot_dimension_numbers<[1], [0], [0], [1], [0, 0, 1, 1], [], []>} : vector<8x32xbf16>, vector<32x128xbf16>, vector<8x128xf32> -> vector<8x128xf32>
    %c0_63 = arith.constant 0 : index
    %c0_64 = arith.constant 0 : index
    %c0_65 = arith.constant 0 : index
    %174 = vector.load %arg11[%c0_63, %c0_64, %c0_65] : memref<2x1x128xf32, #tpu.memory_space<vmem>>, vector<1x1x128xf32>
    %175 = vector.shape_cast %174 : vector<1x1x128xf32> to vector<1x128xf32>
    %176 = vector.broadcast %175 : vector<1x128xf32> to vector<8x128xf32>
    %177 = arith.addf %173, %176 : vector<8x128xf32>
    %cst_66 = arith.constant 5.000000e-01 : f32
    %178 = vector.broadcast %cst_66 : f32 to vector<8x128xf32>
    %179 = arith.mulf %178, %177 : vector<8x128xf32>
    %cst_67 = arith.constant 4.471500e-02 : f32
    %180 = vector.broadcast %cst_67 : f32 to vector<8x128xf32>
    %181 = arith.mulf %180, %177 : vector<8x128xf32>
    %182 = arith.mulf %181, %177 : vector<8x128xf32>
    %183 = arith.mulf %182, %177 : vector<8x128xf32>
    %184 = arith.addf %177, %183 : vector<8x128xf32>
    %cst_68 = arith.constant 0.797884583 : f32
    %185 = vector.broadcast %cst_68 : f32 to vector<8x128xf32>
    %186 = arith.mulf %185, %184 : vector<8x128xf32>
    %187 = math.tanh %186 : vector<8x128xf32>
    %cst_69 = arith.constant 1.000000e+00 : f32
    %188 = vector.broadcast %cst_69 : f32 to vector<8x128xf32>
    %189 = arith.addf %188, %187 : vector<8x128xf32>
    %190 = arith.mulf %179, %189 : vector<8x128xf32>
    %191 = arith.truncf %190 : vector<8x128xf32> to vector<8x128xbf16>
    %c0_70 = arith.constant 0 : index
    %c0_71 = arith.constant 0 : index
    %c0_72 = arith.constant 0 : index
    %192 = vector.load %arg12[%c0_70, %c0_71, %c0_72] : memref<2x128x32xbf16, #tpu.memory_space<vmem>>, vector<1x128x32xbf16>
    %193 = vector.shape_cast %192 : vector<1x128x32xbf16> to vector<128x32xbf16>
    %cst_73 = arith.constant dense<0.000000e+00> : vector<8x32xf32>
    %194 = tpu.matmul %191, %193, %cst_73 {dimension_numbers = #tpu.dot_dimension_numbers<[1], [0], [0], [1], [0, 0, 1, 1], [], []>} : vector<8x128xbf16>, vector<128x32xbf16>, vector<8x32xf32> -> vector<8x32xf32>
    %c0_74 = arith.constant 0 : index
    %c0_75 = arith.constant 0 : index
    %c0_76 = arith.constant 0 : index
    %195 = vector.load %arg13[%c0_74, %c0_75, %c0_76] : memref<2x1x32xf32, #tpu.memory_space<vmem>>, vector<1x1x32xf32>
    %196 = vector.shape_cast %195 : vector<1x1x32xf32> to vector<1x32xf32>
    %197 = vector.broadcast %196 : vector<1x32xf32> to vector<8x32xf32>
    %198 = arith.addf %194, %197 : vector<8x32xf32>
    %199 = arith.addf %143, %198 : vector<8x32xf32>
    %c1 = arith.constant 1 : index
    %c0_77 = arith.constant 0 : index
    %c0_78 = arith.constant 0 : index
    %200 = vector.load %arg2[%c1, %c0_77, %c0_78] : memref<2x1x32xf32, #tpu.memory_space<vmem>>, vector<1x1x32xf32>
    %201 = vector.shape_cast %200 : vector<1x1x32xf32> to vector<1x32xf32>
    %c1_79 = arith.constant 1 : index
    %c0_80 = arith.constant 0 : index
    %c0_81 = arith.constant 0 : index
    %202 = vector.load %arg3[%c1_79, %c0_80, %c0_81] : memref<2x1x32xf32, #tpu.memory_space<vmem>>, vector<1x1x32xf32>
    %203 = vector.shape_cast %202 : vector<1x1x32xf32> to vector<1x32xf32>
    %cst_82 = arith.constant dense<0.000000e+00> : vector<8xf32>
    %204 = vector.multi_reduction <add>, %199, %cst_82 [1] : vector<8x32xf32> to vector<8xf32>
    %205 = vector.shape_cast %204 : vector<8xf32> to vector<8x1xf32>
    %cst_83 = arith.constant 3.200000e+01 : f32
    %206 = vector.broadcast %cst_83 : f32 to vector<8x1xf32>
    %207 = arith.divf %205, %206 : vector<8x1xf32>
    %208 = vector.broadcast %207 : vector<8x1xf32> to vector<8x32xf32>
    %209 = arith.subf %199, %208 : vector<8x32xf32>
    %210 = arith.mulf %209, %209 : vector<8x32xf32>
    %cst_84 = arith.constant dense<0.000000e+00> : vector<8xf32>
    %211 = vector.multi_reduction <add>, %210, %cst_84 [1] : vector<8x32xf32> to vector<8xf32>
    %212 = vector.shape_cast %211 : vector<8xf32> to vector<8x1xf32>
    %cst_85 = arith.constant 3.200000e+01 : f32
    %213 = vector.broadcast %cst_85 : f32 to vector<8x1xf32>
    %214 = arith.divf %212, %213 : vector<8x1xf32>
    %215 = vector.broadcast %207 : vector<8x1xf32> to vector<8x32xf32>
    %216 = arith.subf %199, %215 : vector<8x32xf32>
    %cst_86 = arith.constant 9.99999974E-6 : f32
    %217 = vector.broadcast %cst_86 : f32 to vector<8x1xf32>
    %218 = arith.addf %214, %217 : vector<8x1xf32>
    %219 = math.rsqrt %218 : vector<8x1xf32>
    %220 = vector.broadcast %219 : vector<8x1xf32> to vector<8x32xf32>
    %221 = arith.mulf %216, %220 : vector<8x32xf32>
    %222 = vector.broadcast %201 : vector<1x32xf32> to vector<8x32xf32>
    %223 = arith.mulf %221, %222 : vector<8x32xf32>
    %224 = vector.broadcast %203 : vector<1x32xf32> to vector<8x32xf32>
    %225 = arith.addf %223, %224 : vector<8x32xf32>
    %226 = arith.truncf %225 : vector<8x32xf32> to vector<8x32xbf16>
    %c1_87 = arith.constant 1 : index
    %c0_88 = arith.constant 0 : index
    %c0_89 = arith.constant 0 : index
    %227 = vector.load %arg4[%c1_87, %c0_88, %c0_89] : memref<2x32x96xbf16, #tpu.memory_space<vmem>>, vector<1x32x96xbf16>
    %228 = vector.shape_cast %227 : vector<1x32x96xbf16> to vector<32x96xbf16>
    %cst_90 = arith.constant dense<0.000000e+00> : vector<8x96xf32>
    %229 = tpu.matmul %226, %228, %cst_90 {dimension_numbers = #tpu.dot_dimension_numbers<[1], [0], [0], [1], [0, 0, 1, 1], [], []>} : vector<8x32xbf16>, vector<32x96xbf16>, vector<8x96xf32> -> vector<8x96xf32>
    %c1_91 = arith.constant 1 : index
    %c0_92 = arith.constant 0 : index
    %c0_93 = arith.constant 0 : index
    %230 = vector.load %arg5[%c1_91, %c0_92, %c0_93] : memref<2x1x96xf32, #tpu.memory_space<vmem>>, vector<1x1x96xf32>
    %231 = vector.shape_cast %230 : vector<1x1x96xf32> to vector<1x96xf32>
    %232 = vector.broadcast %231 : vector<1x96xf32> to vector<8x96xf32>
    %233 = arith.addf %229, %232 : vector<8x96xf32>
    %234 = vector.extract_strided_slice %233 {offsets = [0, 0], sizes = [8, 32], strides = [1, 1]} : vector<8x96xf32> to vector<8x32xf32>
    %235 = vector.extract_strided_slice %233 {offsets = [0, 32], sizes = [8, 32], strides = [1, 1]} : vector<8x96xf32> to vector<8x32xf32>
    %236 = vector.extract_strided_slice %233 {offsets = [0, 64], sizes = [8, 32], strides = [1, 1]} : vector<8x96xf32> to vector<8x32xf32>
    %237 = tpu.transpose %235, [1, 0] : vector<8x32xf32> -> vector<32x8xf32>
    %238 = vector.extract_strided_slice %234 {offsets = [0, 0], sizes = [8, 8], strides = [1, 1]} : vector<8x32xf32> to vector<8x8xf32>
    %239 = arith.truncf %238 : vector<8x8xf32> to vector<8x8xbf16>
    %240 = vector.extract_strided_slice %237 {offsets = [0, 0], sizes = [8, 8], strides = [1, 1]} : vector<32x8xf32> to vector<8x8xf32>
    %241 = arith.truncf %240 : vector<8x8xf32> to vector<8x8xbf16>
    %cst_94 = arith.constant dense<0.000000e+00> : vector<8x8xf32>
    %242 = tpu.matmul %239, %241, %cst_94 {dimension_numbers = #tpu.dot_dimension_numbers<[1], [0], [0], [1], [0, 0, 1, 1], [], []>} : vector<8x8xbf16>, vector<8x8xbf16>, vector<8x8xf32> -> vector<8x8xf32>
    %cst_95 = arith.constant 0.353553385 : f32
    %243 = vector.broadcast %cst_95 : f32 to vector<8x8xf32>
    %244 = arith.mulf %242, %243 : vector<8x8xf32>
    %245 = arith.addf %244, %7 : vector<8x8xf32>
    %cst_96 = arith.constant dense<0xFF800000> : vector<8xf32>
    %246 = vector.multi_reduction <maximumf>, %245, %cst_96 [1] : vector<8x8xf32> to vector<8xf32>
    %247 = vector.shape_cast %246 : vector<8xf32> to vector<8x1xf32>
    %248 = vector.broadcast %247 : vector<8x1xf32> to vector<8x8xf32>
    %249 = arith.subf %245, %248 : vector<8x8xf32>
    %250 = math.exp %249 : vector<8x8xf32>
    %cst_97 = arith.constant dense<0.000000e+00> : vector<8xf32>
    %251 = vector.multi_reduction <add>, %250, %cst_97 [1] : vector<8x8xf32> to vector<8xf32>
    %252 = vector.shape_cast %251 : vector<8xf32> to vector<8x1xf32>
    %253 = tpu.reciprocal %252 {approx = true} : vector<8x1xf32> -> vector<8x1xf32>
    %254 = vector.broadcast %253 : vector<8x1xf32> to vector<8x8xf32>
    %255 = arith.mulf %250, %254 : vector<8x8xf32>
    %256 = arith.truncf %255 : vector<8x8xf32> to vector<8x8xbf16>
    %257 = vector.extract_strided_slice %236 {offsets = [0, 0], sizes = [8, 8], strides = [1, 1]} : vector<8x32xf32> to vector<8x8xf32>
    %258 = arith.truncf %257 : vector<8x8xf32> to vector<8x8xbf16>
    %cst_98 = arith.constant dense<0.000000e+00> : vector<8x8xf32>
    %259 = tpu.matmul %256, %258, %cst_98 {dimension_numbers = #tpu.dot_dimension_numbers<[1], [0], [0], [1], [0, 0, 1, 1], [], []>} : vector<8x8xbf16>, vector<8x8xbf16>, vector<8x8xf32> -> vector<8x8xf32>
    %260 = vector.extract_strided_slice %234 {offsets = [0, 8], sizes = [8, 8], strides = [1, 1]} : vector<8x32xf32> to vector<8x8xf32>
    %261 = arith.truncf %260 : vector<8x8xf32> to vector<8x8xbf16>
    %262 = vector.extract_strided_slice %237 {offsets = [8, 0], sizes = [8, 8], strides = [1, 1]} : vector<32x8xf32> to vector<8x8xf32>
    %263 = arith.truncf %262 : vector<8x8xf32> to vector<8x8xbf16>
    %cst_99 = arith.constant dense<0.000000e+00> : vector<8x8xf32>
    %264 = tpu.matmul %261, %263, %cst_99 {dimension_numbers = #tpu.dot_dimension_numbers<[1], [0], [0], [1], [0, 0, 1, 1], [], []>} : vector<8x8xbf16>, vector<8x8xbf16>, vector<8x8xf32> -> vector<8x8xf32>
    %cst_100 = arith.constant 0.353553385 : f32
    %265 = vector.broadcast %cst_100 : f32 to vector<8x8xf32>
    %266 = arith.mulf %264, %265 : vector<8x8xf32>
    %267 = arith.addf %266, %7 : vector<8x8xf32>
    %cst_101 = arith.constant dense<0xFF800000> : vector<8xf32>
    %268 = vector.multi_reduction <maximumf>, %267, %cst_101 [1] : vector<8x8xf32> to vector<8xf32>
    %269 = vector.shape_cast %268 : vector<8xf32> to vector<8x1xf32>
    %270 = vector.broadcast %269 : vector<8x1xf32> to vector<8x8xf32>
    %271 = arith.subf %267, %270 : vector<8x8xf32>
    %272 = math.exp %271 : vector<8x8xf32>
    %cst_102 = arith.constant dense<0.000000e+00> : vector<8xf32>
    %273 = vector.multi_reduction <add>, %272, %cst_102 [1] : vector<8x8xf32> to vector<8xf32>
    %274 = vector.shape_cast %273 : vector<8xf32> to vector<8x1xf32>
    %275 = tpu.reciprocal %274 {approx = true} : vector<8x1xf32> -> vector<8x1xf32>
    %276 = vector.broadcast %275 : vector<8x1xf32> to vector<8x8xf32>
    %277 = arith.mulf %272, %276 : vector<8x8xf32>
    %278 = arith.truncf %277 : vector<8x8xf32> to vector<8x8xbf16>
    %279 = vector.extract_strided_slice %236 {offsets = [0, 8], sizes = [8, 8], strides = [1, 1]} : vector<8x32xf32> to vector<8x8xf32>
    %280 = arith.truncf %279 : vector<8x8xf32> to vector<8x8xbf16>
    %cst_103 = arith.constant dense<0.000000e+00> : vector<8x8xf32>
    %281 = tpu.matmul %278, %280, %cst_103 {dimension_numbers = #tpu.dot_dimension_numbers<[1], [0], [0], [1], [0, 0, 1, 1], [], []>} : vector<8x8xbf16>, vector<8x8xbf16>, vector<8x8xf32> -> vector<8x8xf32>
    %282 = vector.extract_strided_slice %234 {offsets = [0, 16], sizes = [8, 8], strides = [1, 1]} : vector<8x32xf32> to vector<8x8xf32>
    %283 = arith.truncf %282 : vector<8x8xf32> to vector<8x8xbf16>
    %284 = vector.extract_strided_slice %237 {offsets = [16, 0], sizes = [8, 8], strides = [1, 1]} : vector<32x8xf32> to vector<8x8xf32>
    %285 = arith.truncf %284 : vector<8x8xf32> to vector<8x8xbf16>
    %cst_104 = arith.constant dense<0.000000e+00> : vector<8x8xf32>
    %286 = tpu.matmul %283, %285, %cst_104 {dimension_numbers = #tpu.dot_dimension_numbers<[1], [0], [0], [1], [0, 0, 1, 1], [], []>} : vector<8x8xbf16>, vector<8x8xbf16>, vector<8x8xf32> -> vector<8x8xf32>
    %cst_105 = arith.constant 0.353553385 : f32
    %287 = vector.broadcast %cst_105 : f32 to vector<8x8xf32>
    %288 = arith.mulf %286, %287 : vector<8x8xf32>
    %289 = arith.addf %288, %7 : vector<8x8xf32>
    %cst_106 = arith.constant dense<0xFF800000> : vector<8xf32>
    %290 = vector.multi_reduction <maximumf>, %289, %cst_106 [1] : vector<8x8xf32> to vector<8xf32>
    %291 = vector.shape_cast %290 : vector<8xf32> to vector<8x1xf32>
    %292 = vector.broadcast %291 : vector<8x1xf32> to vector<8x8xf32>
    %293 = arith.subf %289, %292 : vector<8x8xf32>
    %294 = math.exp %293 : vector<8x8xf32>
    %cst_107 = arith.constant dense<0.000000e+00> : vector<8xf32>
    %295 = vector.multi_reduction <add>, %294, %cst_107 [1] : vector<8x8xf32> to vector<8xf32>
    %296 = vector.shape_cast %295 : vector<8xf32> to vector<8x1xf32>
    %297 = tpu.reciprocal %296 {approx = true} : vector<8x1xf32> -> vector<8x1xf32>
    %298 = vector.broadcast %297 : vector<8x1xf32> to vector<8x8xf32>
    %299 = arith.mulf %294, %298 : vector<8x8xf32>
    %300 = arith.truncf %299 : vector<8x8xf32> to vector<8x8xbf16>
    %301 = vector.extract_strided_slice %236 {offsets = [0, 16], sizes = [8, 8], strides = [1, 1]} : vector<8x32xf32> to vector<8x8xf32>
    %302 = arith.truncf %301 : vector<8x8xf32> to vector<8x8xbf16>
    %cst_108 = arith.constant dense<0.000000e+00> : vector<8x8xf32>
    %303 = tpu.matmul %300, %302, %cst_108 {dimension_numbers = #tpu.dot_dimension_numbers<[1], [0], [0], [1], [0, 0, 1, 1], [], []>} : vector<8x8xbf16>, vector<8x8xbf16>, vector<8x8xf32> -> vector<8x8xf32>
    %304 = vector.extract_strided_slice %234 {offsets = [0, 24], sizes = [8, 8], strides = [1, 1]} : vector<8x32xf32> to vector<8x8xf32>
    %305 = arith.truncf %304 : vector<8x8xf32> to vector<8x8xbf16>
    %306 = vector.extract_strided_slice %237 {offsets = [24, 0], sizes = [8, 8], strides = [1, 1]} : vector<32x8xf32> to vector<8x8xf32>
    %307 = arith.truncf %306 : vector<8x8xf32> to vector<8x8xbf16>
    %cst_109 = arith.constant dense<0.000000e+00> : vector<8x8xf32>
    %308 = tpu.matmul %305, %307, %cst_109 {dimension_numbers = #tpu.dot_dimension_numbers<[1], [0], [0], [1], [0, 0, 1, 1], [], []>} : vector<8x8xbf16>, vector<8x8xbf16>, vector<8x8xf32> -> vector<8x8xf32>
    %cst_110 = arith.constant 0.353553385 : f32
    %309 = vector.broadcast %cst_110 : f32 to vector<8x8xf32>
    %310 = arith.mulf %308, %309 : vector<8x8xf32>
    %311 = arith.addf %310, %7 : vector<8x8xf32>
    %cst_111 = arith.constant dense<0xFF800000> : vector<8xf32>
    %312 = vector.multi_reduction <maximumf>, %311, %cst_111 [1] : vector<8x8xf32> to vector<8xf32>
    %313 = vector.shape_cast %312 : vector<8xf32> to vector<8x1xf32>
    %314 = vector.broadcast %313 : vector<8x1xf32> to vector<8x8xf32>
    %315 = arith.subf %311, %314 : vector<8x8xf32>
    %316 = math.exp %315 : vector<8x8xf32>
    %cst_112 = arith.constant dense<0.000000e+00> : vector<8xf32>
    %317 = vector.multi_reduction <add>, %316, %cst_112 [1] : vector<8x8xf32> to vector<8xf32>
    %318 = vector.shape_cast %317 : vector<8xf32> to vector<8x1xf32>
    %319 = tpu.reciprocal %318 {approx = true} : vector<8x1xf32> -> vector<8x1xf32>
    %320 = vector.broadcast %319 : vector<8x1xf32> to vector<8x8xf32>
    %321 = arith.mulf %316, %320 : vector<8x8xf32>
    %322 = arith.truncf %321 : vector<8x8xf32> to vector<8x8xbf16>
    %323 = vector.extract_strided_slice %236 {offsets = [0, 24], sizes = [8, 8], strides = [1, 1]} : vector<8x32xf32> to vector<8x8xf32>
    %324 = arith.truncf %323 : vector<8x8xf32> to vector<8x8xbf16>
    %cst_113 = arith.constant dense<0.000000e+00> : vector<8x8xf32>
    %325 = tpu.matmul %322, %324, %cst_113 {dimension_numbers = #tpu.dot_dimension_numbers<[1], [0], [0], [1], [0, 0, 1, 1], [], []>} : vector<8x8xbf16>, vector<8x8xbf16>, vector<8x8xf32> -> vector<8x8xf32>
    %326 = tpu.concatenate %259, %281, %303, %325 in 1 : vector<8x8xf32>, vector<8x8xf32>, vector<8x8xf32>, vector<8x8xf32> -> vector<8x32xf32>
    %327 = arith.truncf %326 : vector<8x32xf32> to vector<8x32xbf16>
    %c1_114 = arith.constant 1 : index
    %c0_115 = arith.constant 0 : index
    %c0_116 = arith.constant 0 : index
    %328 = vector.load %arg6[%c1_114, %c0_115, %c0_116] : memref<2x32x32xbf16, #tpu.memory_space<vmem>>, vector<1x32x32xbf16>
    %329 = vector.shape_cast %328 : vector<1x32x32xbf16> to vector<32x32xbf16>
    %cst_117 = arith.constant dense<0.000000e+00> : vector<8x32xf32>
    %330 = tpu.matmul %327, %329, %cst_117 {dimension_numbers = #tpu.dot_dimension_numbers<[1], [0], [0], [1], [0, 0, 1, 1], [], []>} : vector<8x32xbf16>, vector<32x32xbf16>, vector<8x32xf32> -> vector<8x32xf32>
    %c1_118 = arith.constant 1 : index
    %c0_119 = arith.constant 0 : index
    %c0_120 = arith.constant 0 : index
    %331 = vector.load %arg7[%c1_118, %c0_119, %c0_120] : memref<2x1x32xf32, #tpu.memory_space<vmem>>, vector<1x1x32xf32>
    %332 = vector.shape_cast %331 : vector<1x1x32xf32> to vector<1x32xf32>
    %333 = vector.broadcast %332 : vector<1x32xf32> to vector<8x32xf32>
    %334 = arith.addf %330, %333 : vector<8x32xf32>
    %335 = arith.addf %199, %334 : vector<8x32xf32>
    %c1_121 = arith.constant 1 : index
    %c0_122 = arith.constant 0 : index
    %c0_123 = arith.constant 0 : index
    %336 = vector.load %arg8[%c1_121, %c0_122, %c0_123] : memref<2x1x32xf32, #tpu.memory_space<vmem>>, vector<1x1x32xf32>
    %337 = vector.shape_cast %336 : vector<1x1x32xf32> to vector<1x32xf32>
    %c1_124 = arith.constant 1 : index
    %c0_125 = arith.constant 0 : index
    %c0_126 = arith.constant 0 : index
    %338 = vector.load %arg9[%c1_124, %c0_125, %c0_126] : memref<2x1x32xf32, #tpu.memory_space<vmem>>, vector<1x1x32xf32>
    %339 = vector.shape_cast %338 : vector<1x1x32xf32> to vector<1x32xf32>
    %cst_127 = arith.constant dense<0.000000e+00> : vector<8xf32>
    %340 = vector.multi_reduction <add>, %335, %cst_127 [1] : vector<8x32xf32> to vector<8xf32>
    %341 = vector.shape_cast %340 : vector<8xf32> to vector<8x1xf32>
    %cst_128 = arith.constant 3.200000e+01 : f32
    %342 = vector.broadcast %cst_128 : f32 to vector<8x1xf32>
    %343 = arith.divf %341, %342 : vector<8x1xf32>
    %344 = vector.broadcast %343 : vector<8x1xf32> to vector<8x32xf32>
    %345 = arith.subf %335, %344 : vector<8x32xf32>
    %346 = arith.mulf %345, %345 : vector<8x32xf32>
    %cst_129 = arith.constant dense<0.000000e+00> : vector<8xf32>
    %347 = vector.multi_reduction <add>, %346, %cst_129 [1] : vector<8x32xf32> to vector<8xf32>
    %348 = vector.shape_cast %347 : vector<8xf32> to vector<8x1xf32>
    %cst_130 = arith.constant 3.200000e+01 : f32
    %349 = vector.broadcast %cst_130 : f32 to vector<8x1xf32>
    %350 = arith.divf %348, %349 : vector<8x1xf32>
    %351 = vector.broadcast %343 : vector<8x1xf32> to vector<8x32xf32>
    %352 = arith.subf %335, %351 : vector<8x32xf32>
    %cst_131 = arith.constant 9.99999974E-6 : f32
    %353 = vector.broadcast %cst_131 : f32 to vector<8x1xf32>
    %354 = arith.addf %350, %353 : vector<8x1xf32>
    %355 = math.rsqrt %354 : vector<8x1xf32>
    %356 = vector.broadcast %355 : vector<8x1xf32> to vector<8x32xf32>
    %357 = arith.mulf %352, %356 : vector<8x32xf32>
    %358 = vector.broadcast %337 : vector<1x32xf32> to vector<8x32xf32>
    %359 = arith.mulf %357, %358 : vector<8x32xf32>
    %360 = vector.broadcast %339 : vector<1x32xf32> to vector<8x32xf32>
    %361 = arith.addf %359, %360 : vector<8x32xf32>
    %362 = arith.truncf %361 : vector<8x32xf32> to vector<8x32xbf16>
    %c1_132 = arith.constant 1 : index
    %c0_133 = arith.constant 0 : index
    %c0_134 = arith.constant 0 : index
    %363 = vector.load %arg10[%c1_132, %c0_133, %c0_134] : memref<2x32x128xbf16, #tpu.memory_space<vmem>>, vector<1x32x128xbf16>
    %364 = vector.shape_cast %363 : vector<1x32x128xbf16> to vector<32x128xbf16>
    %cst_135 = arith.constant dense<0.000000e+00> : vector<8x128xf32>
    %365 = tpu.matmul %362, %364, %cst_135 {dimension_numbers = #tpu.dot_dimension_numbers<[1], [0], [0], [1], [0, 0, 1, 1], [], []>} : vector<8x32xbf16>, vector<32x128xbf16>, vector<8x128xf32> -> vector<8x128xf32>
    %c1_136 = arith.constant 1 : index
    %c0_137 = arith.constant 0 : index
    %c0_138 = arith.constant 0 : index
    %366 = vector.load %arg11[%c1_136, %c0_137, %c0_138] : memref<2x1x128xf32, #tpu.memory_space<vmem>>, vector<1x1x128xf32>
    %367 = vector.shape_cast %366 : vector<1x1x128xf32> to vector<1x128xf32>
    %368 = vector.broadcast %367 : vector<1x128xf32> to vector<8x128xf32>
    %369 = arith.addf %365, %368 : vector<8x128xf32>
    %cst_139 = arith.constant 5.000000e-01 : f32
    %370 = vector.broadcast %cst_139 : f32 to vector<8x128xf32>
    %371 = arith.mulf %370, %369 : vector<8x128xf32>
    %cst_140 = arith.constant 4.471500e-02 : f32
    %372 = vector.broadcast %cst_140 : f32 to vector<8x128xf32>
    %373 = arith.mulf %372, %369 : vector<8x128xf32>
    %374 = arith.mulf %373, %369 : vector<8x128xf32>
    %375 = arith.mulf %374, %369 : vector<8x128xf32>
    %376 = arith.addf %369, %375 : vector<8x128xf32>
    %cst_141 = arith.constant 0.797884583 : f32
    %377 = vector.broadcast %cst_141 : f32 to vector<8x128xf32>
    %378 = arith.mulf %377, %376 : vector<8x128xf32>
    %379 = math.tanh %378 : vector<8x128xf32>
    %cst_142 = arith.constant 1.000000e+00 : f32
    %380 = vector.broadcast %cst_142 : f32 to vector<8x128xf32>
    %381 = arith.addf %380, %379 : vector<8x128xf32>
    %382 = arith.mulf %371, %381 : vector<8x128xf32>
    %383 = arith.truncf %382 : vector<8x128xf32> to vector<8x128xbf16>
    %c1_143 = arith.constant 1 : index
    %c0_144 = arith.constant 0 : index
    %c0_145 = arith.constant 0 : index
    %384 = vector.load %arg12[%c1_143, %c0_144, %c0_145] : memref<2x128x32xbf16, #tpu.memory_space<vmem>>, vector<1x128x32xbf16>
    %385 = vector.shape_cast %384 : vector<1x128x32xbf16> to vector<128x32xbf16>
    %cst_146 = arith.constant dense<0.000000e+00> : vector<8x32xf32>
    %386 = tpu.matmul %383, %385, %cst_146 {dimension_numbers = #tpu.dot_dimension_numbers<[1], [0], [0], [1], [0, 0, 1, 1], [], []>} : vector<8x128xbf16>, vector<128x32xbf16>, vector<8x32xf32> -> vector<8x32xf32>
    %c1_147 = arith.constant 1 : index
    %c0_148 = arith.constant 0 : index
    %c0_149 = arith.constant 0 : index
    %387 = vector.load %arg13[%c1_147, %c0_148, %c0_149] : memref<2x1x32xf32, #tpu.memory_space<vmem>>, vector<1x1x32xf32>
    %388 = vector.shape_cast %387 : vector<1x1x32xf32> to vector<1x32xf32>
    %389 = vector.broadcast %388 : vector<1x32xf32> to vector<8x32xf32>
    %390 = arith.addf %386, %389 : vector<8x32xf32>
    %391 = arith.addf %335, %390 : vector<8x32xf32>
    %c0_150 = arith.constant 0 : index
    %c0_151 = arith.constant 0 : index
    %392 = vector.load %arg14[%c0_150, %c0_151] : memref<1x32xf32, #tpu.memory_space<vmem>>, vector<1x32xf32>
    %c0_152 = arith.constant 0 : index
    %c0_153 = arith.constant 0 : index
    %393 = vector.load %arg15[%c0_152, %c0_153] : memref<1x32xf32, #tpu.memory_space<vmem>>, vector<1x32xf32>
    %cst_154 = arith.constant dense<0.000000e+00> : vector<8xf32>
    %394 = vector.multi_reduction <add>, %391, %cst_154 [1] : vector<8x32xf32> to vector<8xf32>
    %395 = vector.shape_cast %394 : vector<8xf32> to vector<8x1xf32>
    %cst_155 = arith.constant 3.200000e+01 : f32
    %396 = vector.broadcast %cst_155 : f32 to vector<8x1xf32>
    %397 = arith.divf %395, %396 : vector<8x1xf32>
    %398 = vector.broadcast %397 : vector<8x1xf32> to vector<8x32xf32>
    %399 = arith.subf %391, %398 : vector<8x32xf32>
    %400 = arith.mulf %399, %399 : vector<8x32xf32>
    %cst_156 = arith.constant dense<0.000000e+00> : vector<8xf32>
    %401 = vector.multi_reduction <add>, %400, %cst_156 [1] : vector<8x32xf32> to vector<8xf32>
    %402 = vector.shape_cast %401 : vector<8xf32> to vector<8x1xf32>
    %cst_157 = arith.constant 3.200000e+01 : f32
    %403 = vector.broadcast %cst_157 : f32 to vector<8x1xf32>
    %404 = arith.divf %402, %403 : vector<8x1xf32>
    %405 = vector.broadcast %397 : vector<8x1xf32> to vector<8x32xf32>
    %406 = arith.subf %391, %405 : vector<8x32xf32>
    %cst_158 = arith.constant 9.99999974E-6 : f32
    %407 = vector.broadcast %cst_158 : f32 to vector<8x1xf32>
    %408 = arith.addf %404, %407 : vector<8x1xf32>
    %409 = math.rsqrt %408 : vector<8x1xf32>
    %410 = vector.broadcast %409 : vector<8x1xf32> to vector<8x32xf32>
    %411 = arith.mulf %406, %410 : vector<8x32xf32>
    %412 = vector.broadcast %392 : vector<1x32xf32> to vector<8x32xf32>
    %413 = arith.mulf %411, %412 : vector<8x32xf32>
    %414 = vector.broadcast %393 : vector<1x32xf32> to vector<8x32xf32>
    %415 = arith.addf %413, %414 : vector<8x32xf32>
    %c0_159 = arith.constant 0 : index
    %c0_160 = arith.constant 0 : index
    %416 = vector.load %arg16[%c0_159, %c0_160] : memref<1x32xf32, #tpu.memory_space<vmem>>, vector<1x32xf32>
    %c0_161 = arith.constant 0 : index
    %c0_162 = arith.constant 0 : index
    %417 = vector.load %arg17[%c0_161, %c0_162] : memref<1x32xf32, #tpu.memory_space<vmem>>, vector<1x32xf32>
    %cst_163 = arith.constant dense<0.000000e+00> : vector<8xf32>
    %418 = vector.multi_reduction <add>, %415, %cst_163 [1] : vector<8x32xf32> to vector<8xf32>
    %419 = vector.shape_cast %418 : vector<8xf32> to vector<8x1xf32>
    %cst_164 = arith.constant 3.200000e+01 : f32
    %420 = vector.broadcast %cst_164 : f32 to vector<8x1xf32>
    %421 = arith.divf %419, %420 : vector<8x1xf32>
    %422 = vector.broadcast %421 : vector<8x1xf32> to vector<8x32xf32>
    %423 = arith.subf %415, %422 : vector<8x32xf32>
    %424 = arith.mulf %423, %423 : vector<8x32xf32>
    %cst_165 = arith.constant dense<0.000000e+00> : vector<8xf32>
    %425 = vector.multi_reduction <add>, %424, %cst_165 [1] : vector<8x32xf32> to vector<8xf32>
    %426 = vector.shape_cast %425 : vector<8xf32> to vector<8x1xf32>
    %cst_166 = arith.constant 3.200000e+01 : f32
    %427 = vector.broadcast %cst_166 : f32 to vector<8x1xf32>
    %428 = arith.divf %426, %427 : vector<8x1xf32>
    %429 = vector.broadcast %421 : vector<8x1xf32> to vector<8x32xf32>
    %430 = arith.subf %415, %429 : vector<8x32xf32>
    %cst_167 = arith.constant 9.99999974E-6 : f32
    %431 = vector.broadcast %cst_167 : f32 to vector<8x1xf32>
    %432 = arith.addf %428, %431 : vector<8x1xf32>
    %433 = math.rsqrt %432 : vector<8x1xf32>
    %434 = vector.broadcast %433 : vector<8x1xf32> to vector<8x32xf32>
    %435 = arith.mulf %430, %434 : vector<8x32xf32>
    %436 = vector.broadcast %416 : vector<1x32xf32> to vector<8x32xf32>
    %437 = arith.mulf %435, %436 : vector<8x32xf32>
    %438 = vector.broadcast %417 : vector<1x32xf32> to vector<8x32xf32>
    %439 = arith.addf %437, %438 : vector<8x32xf32>
    %c0_168 = arith.constant 0 : index
    %c0_169 = arith.constant 0 : index
    %c0_170 = arith.constant 0 : index
    %440 = vector.load %arg18[%c0_168, %c0_169, %c0_170] : memref<1x8x32xf32, #tpu.memory_space<vmem>>, vector<1x8x32xf32>
    %441 = vector.shape_cast %440 : vector<1x8x32xf32> to vector<8x32xf32>
    %442 = vector.shape_cast %439 : vector<8x32xf32> to vector<1x8x32xf32>
    tpu.vector_store %arg18[%c0_168, %c0_169, %c0_170], %442 {strides = array<i32>} : memref<1x8x32xf32, #tpu.memory_space<vmem>>, vector<1x8x32xf32>,
    return
  }
  func.func @transform_0(%arg0: i32) -> (i32, i32, i32) {
    %c0_i32 = arith.constant 0 : i32
    %c0_i32_0 = arith.constant 0 : i32
    %c0_i32_1 = arith.constant 0 : i32
    return %arg0, %c0_i32, %c0_i32_0 : i32, i32, i32
  }
  func.func @transform_1(%arg0: i32) -> (i32, i32, i32) {
    %c0_i32 = arith.constant 0 : i32
    %c0_i32_0 = arith.constant 0 : i32
    %c0_i32_1 = arith.constant 0 : i32
    %c0_i32_2 = arith.constant 0 : i32
    return %c0_i32, %c0_i32_0, %c0_i32_1 : i32, i32, i32
  }
  func.func @transform_2(%arg0: i32) -> (i32, i32, i32) {
    %c0_i32 = arith.constant 0 : i32
    %c0_i32_0 = arith.constant 0 : i32
    %c0_i32_1 = arith.constant 0 : i32
    %c0_i32_2 = arith.constant 0 : i32
    return %c0_i32, %c0_i32_0, %c0_i32_1 : i32, i32, i32
  }
  func.func @transform_3(%arg0: i32) -> (i32, i32, i32) {
    %c0_i32 = arith.constant 0 : i32
    %c0_i32_0 = arith.constant 0 : i32
    %c0_i32_1 = arith.constant 0 : i32
    %c0_i32_2 = arith.constant 0 : i32
    return %c0_i32, %c0_i32_0, %c0_i32_1 : i32, i32, i32
  }
  func.func @transform_4(%arg0: i32) -> (i32, i32, i32) {
    %c0_i32 = arith.constant 0 : i32
    %c0_i32_0 = arith.constant 0 : i32
    %c0_i32_1 = arith.constant 0 : i32
    %c0_i32_2 = arith.constant 0 : i32
    return %c0_i32, %c0_i32_0, %c0_i32_1 : i32, i32, i32
  }
  func.func @transform_5(%arg0: i32) -> (i32, i32, i32) {
    %c0_i32 = arith.constant 0 : i32
    %c0_i32_0 = arith.constant 0 : i32
    %c0_i32_1 = arith.constant 0 : i32
    %c0_i32_2 = arith.constant 0 : i32
    return %c0_i32, %c0_i32_0, %c0_i32_1 : i32, i32, i32
  }
  func.func @transform_6(%arg0: i32) -> (i32, i32, i32) {
    %c0_i32 = arith.constant 0 : i32
    %c0_i32_0 = arith.constant 0 : i32
    %c0_i32_1 = arith.constant 0 : i32
    %c0_i32_2 = arith.constant 0 : i32
    return %c0_i32, %c0_i32_0, %c0_i32_1 : i32, i32, i32
  }
  func.func @transform_7(%arg0: i32) -> (i32, i32, i32) {
    %c0_i32 = arith.constant 0 : i32
    %c0_i32_0 = arith.constant 0 : i32
    %c0_i32_1 = arith.constant 0 : i32
    %c0_i32_2 = arith.constant 0 : i32
    return %c0_i32, %c0_i32_0, %c0_i32_1 : i32, i32, i32
  }
  func.func @transform_8(%arg0: i32) -> (i32, i32, i32) {
    %c0_i32 = arith.constant 0 : i32
    %c0_i32_0 = arith.constant 0 : i32
    %c0_i32_1 = arith.constant 0 : i32
    %c0_i32_2 = arith.constant 0 : i32
    return %c0_i32, %c0_i32_0, %c0_i32_1 : i32, i32, i32
  }
  func.func @transform_9(%arg0: i32) -> (i32, i32, i32) {
    %c0_i32 = arith.constant 0 : i32
    %c0_i32_0 = arith.constant 0 : i32
    %c0_i32_1 = arith.constant 0 : i32
    %c0_i32_2 = arith.constant 0 : i32
    return %c0_i32, %c0_i32_0, %c0_i32_1 : i32, i32, i32
  }
  func.func @transform_10(%arg0: i32) -> (i32, i32, i32) {
    %c0_i32 = arith.constant 0 : i32
    %c0_i32_0 = arith.constant 0 : i32
    %c0_i32_1 = arith.constant 0 : i32
    %c0_i32_2 = arith.constant 0 : i32
    return %c0_i32, %c0_i32_0, %c0_i32_1 : i32, i32, i32
  }
  func.func @transform_11(%arg0: i32) -> (i32, i32, i32) {
    %c0_i32 = arith.constant 0 : i32
    %c0_i32_0 = arith.constant 0 : i32
    %c0_i32_1 = arith.constant 0 : i32
    %c0_i32_2 = arith.constant 0 : i32
    return %c0_i32, %c0_i32_0, %c0_i32_1 : i32, i32, i32
  }
  func.func @transform_12(%arg0: i32) -> (i32, i32, i32) {
    %c0_i32 = arith.constant 0 : i32
    %c0_i32_0 = arith.constant 0 : i32
    %c0_i32_1 = arith.constant 0 : i32
    %c0_i32_2 = arith.constant 0 : i32
    return %c0_i32, %c0_i32_0, %c0_i32_1 : i32, i32, i32
  }
  func.func @transform_13(%arg0: i32) -> (i32, i32) {
    %c0_i32 = arith.constant 0 : i32
    %c0_i32_0 = arith.constant 0 : i32
    %c0_i32_1 = arith.constant 0 : i32
    return %c0_i32, %c0_i32_0 : i32, i32
  }
  func.func @transform_14(%arg0: i32) -> (i32, i32) {
    %c0_i32 = arith.constant 0 : i32
    %c0_i32_0 = arith.constant 0 : i32
    %c0_i32_1 = arith.constant 0 : i32
    return %c0_i32, %c0_i32_0 : i32, i32
  }
  func.func @transform_15(%arg0: i32) -> (i32, i32) {
    %c0_i32 = arith.constant 0 : i32
    %c0_i32_0 = arith.constant 0 : i32
    %c0_i32_1 = arith.constant 0 : i32
    return %c0_i32, %c0_i32_0 : i32, i32
  }
  func.func @transform_16(%arg0: i32) -> (i32, i32) {
    %c0_i32 = arith.constant 0 : i32
    %c0_i32_0 = arith.constant 0 : i32
    %c0_i32_1 = arith.constant 0 : i32
    return %c0_i32, %c0_i32_0 : i32, i32
  }
  func.func @transform_17(%arg0: i32) -> (i32, i32, i32) {
    %c0_i32 = arith.constant 0 : i32
    %c0_i32_0 = arith.constant 0 : i32
    %c0_i32_1 = arith.constant 0 : i32
    return %arg0, %c0_i32, %c0_i32_0 : i32, i32, i32
  }
}

</mosaic_0001>

<llo_original>
// kernel: gpt2_tts_forward.1
$region0: #{gpt2_tts_forward.1}
  #allocation0 [shape = 'u32[]', space=smem, size = 0x4, offset = 0x4, fixed_abs, tag = 'smem constant byte address 0x4 - core index']
  #allocation1 [shape = 'u32[144,128]{1,0:T(1,128)}', space=vmem, size = 0x12000, scoped, tag = 'internal scratch']
  %s0 = inlined_call_operand.vmem [shape: f32[2,8,32], index: 0, kind: input, shape index: {}]
  %s1 = inlined_call_operand.vmem [shape: f32[2,1,32], index: 1, kind: input, shape index: {}, may-alias: {1,7}]
  %s2 = inlined_call_operand.vmem [shape: f32[2,1,32], index: 2, kind: input, shape index: {}, may-alias: {2,6,8,12}]
  %s3 = inlined_call_operand.vmem [shape: bf16[2,32,96], index: 3, kind: input, shape index: {}]
  %s4 = inlined_call_operand.vmem [shape: f32[2,1,96], index: 4, kind: input, shape index: {}]
  %s5 = inlined_call_operand.vmem [shape: bf16[2,32,32], index: 5, kind: input, shape index: {}]
  %s6 = inlined_call_operand.vmem [shape: f32[2,1,32], index: 6, kind: input, shape index: {}, may-alias: {2,6,8,12}]
  %s7 = inlined_call_operand.vmem [shape: f32[2,1,32], index: 7, kind: input, shape index: {}, may-alias: {1,7}]
  %s8 = inlined_call_operand.vmem [shape: f32[2,1,32], index: 8, kind: input, shape index: {}, may-alias: {2,6,8,12}]
  %s9 = inlined_call_operand.vmem [shape: bf16[2,32,128], index: 9, kind: input, shape index: {}]
  %s10 = inlined_call_operand.vmem [shape: f32[2,1,128], index: 10, kind: input, shape index: {}]
  %s11 = inlined_call_operand.vmem [shape: bf16[2,128,32], index: 11, kind: input, shape index: {}]
  %s12 = inlined_call_operand.vmem [shape: f32[2,1,32], index: 12, kind: input, shape index: {}, may-alias: {2,6,8,12}]
  %s13 = inlined_call_operand.vmem [shape: f32[1,32], index: 13, kind: input, shape index: {}, may-alias: {13,15}]
  %s14 = inlined_call_operand.vmem [shape: f32[1,32], index: 14, kind: input, shape index: {}, may-alias: {14,16}]
  %s15 = inlined_call_operand.vmem [shape: f32[1,32], index: 15, kind: input, shape index: {}, may-alias: {13,15}]
  %s16 = inlined_call_operand.vmem [shape: f32[1,32], index: 16, kind: input, shape index: {}, may-alias: {14,16}]
  %s17 = inlined_call_operand.hbm [shape: f32[2,8,32], index: 17, kind: output, shape index: {}]
  %s18 = sld [smem:[#allocation0]]
  $region101: #{gpt2_tts_forward.1} parent=0
    _
  %s20 = ssub.s32 1, %s18
  %s21 = scalar_select 0, %s20, %s18
  $region1: #{gpt2_tts_forward.1} parent=0
    #allocation2 [shape = 'u8[8192]{0}', space=vmem, size = 0x2000, scoped, tag = 'output window, operand 0']
    #allocation3 [shape = 's32[2]{0}', space=sflag, size = 0x8, scoped, tag = 'scoped memory for gpt2_tts_forward.1']
    %22 = vsyncpa [#allocation3], 0
    %s23 = scalar_lea.sflag [#allocation3], 1
    %24 = vsyncpa %s23, 0
    loop: start=0, step=1, limit=4
    $region2: #{gpt2_tts_forward.1} parent=1 // loop_pre_header
      _
    $region3: #{gpt2_tts_forward.1} parent=1 // loop_header
      %s26 = sphi 0, %s30
      %p27 = scmp.ge.s32.totalorder %s26, 4
      %s36 = sphi 0, %s38
      %s39 = sphi 0, %s36
      %s40 = sphi 0, %s39
      %s56 = sphi 0, %s40
      %s60 = sphi 0, %s60
      %s62 = sphi 0, %s60
      %s63 = sphi 0, %s62
      %s77 = sphi 0, %s63
      %s81 = sphi 0, %s81
      %s83 = sphi 0, %s81
      %s84 = sphi 0, %s83
      %s98 = sphi 0, %s84
      %s102 = sphi 0, %s102
      %s104 = sphi 0, %s102
      %s105 = sphi 0, %s104
      %s119 = sphi 0, %s105
      %s123 = sphi 0, %s123
      %s125 = sphi 0, %s123
      %s126 = sphi 0, %s125
      %s140 = sphi 0, %s126
      %s144 = sphi 0, %s144
      %s146 = sphi 0, %s144
      %s147 = sphi 0, %s146
      %s161 = sphi 0, %s147
      %s165 = sphi 0, %s165
      %s167 = sphi 0, %s165
      %s168 = sphi 0, %s167
      %s182 = sphi 0, %s168
      %s186 = sphi 0, %s186
      %s188 = sphi 0, %s186
      %s189 = sphi 0, %s188
      %s203 = sphi 0, %s189
      %s207 = sphi 0, %s207
      %s209 = sphi 0, %s207
      %s210 = sphi 0, %s209
      %s224 = sphi 0, %s210
      %s228 = sphi 0, %s228
      %s230 = sphi 0, %s228
      %s231 = sphi 0, %s230
      %s245 = sphi 0, %s231
      %s249 = sphi 0, %s249
      %s251 = sphi 0, %s249
      %s252 = sphi 0, %s251
      %s266 = sphi 0, %s252
      %s270 = sphi 0, %s270
      %s272 = sphi 0, %s270
      %s273 = sphi 0, %s272
      %s287 = sphi 0, %s273
      %s291 = sphi 0, %s291
      %s293 = sphi 0, %s291
      %s294 = sphi 0, %s293
      %s308 = sphi 0, %s294
      %s312 = sphi 0, %s312
      %s314 = sphi 0, %s312
      %s315 = sphi 0, %s314
      %s329 = sphi 0, %s315
      %s333 = sphi 0, %s333
      %s335 = sphi 0, %s333
      %s336 = sphi 0, %s335
      %s350 = sphi 0, %s336
      %s354 = sphi 0, %s354
      %s356 = sphi 0, %s354
      %s357 = sphi 0, %s356
      %s371 = sphi 0, %s357
      %s375 = sphi 0, %s375
      %s377 = sphi 0, %s375
      %s378 = sphi 0, %s377
      %s392 = sphi 0, %s378
      %s398 = sphi 0, %s400
      %s401 = sphi 0, %s398
      %s402 = sphi 0, %s401
      %s418 = sphi 0, %s402
    $region4: #{gpt2_tts_forward.1} parent=1 // loop_header_branch
      %29 = sbr.rel (%p27) target = $region8
    $region5: #{gpt2_tts_forward.1} parent=1 // loop_body
      %s31 = ssub.s32 %s26, 1
      %s32 = ssub.s32 %s26, 2
      %s33 = sadd.s32 %s26, 1
      %s34 = ssub.s32 %s26, %s33
      %p35 = scmp.eq.s32.totalorder %s34, 0
      %s37 = sadd.s32 %s36, 1
      %s38 = scalar_select %p35, %s36, %s37
      %p41 = pneg %p35
      %p42 = scmp.eq.s32.totalorder %s26, 1
      %p43 = por %p41, %p42
      %p44 = scmp.ne.s32.totalorder %s36, %s39
      %p45 = scmp.eq.s32.totalorder %s26, 0
      %p46 = por %p44, %p45
      %p47 = scmp.ne.s32.totalorder %s36, %s39
      %p48 = scmp.eq.s32.totalorder %s31, 1
      %p49 = por %p47, %p48
      %p50 = scmp.ne.s32.totalorder %s39, %s40
      %p51 = scmp.eq.s32.totalorder %s31, 0
      %p52 = por %p50, %p51
      %p53 = scmp.ne.s32.totalorder %s39, %s40
      %p54 = scmp.eq.s32.totalorder %s32, 1
      %p55 = por %p53, %p54
      %p57 = scmp.ne.s32.totalorder %s40, %s56
      %p58 = scmp.eq.s32.totalorder %s32, 0
      %p59 = por %p57, %p58
      %s61 = sadd.s32 %s60, 1
      %p64 = scmp.eq.s32.totalorder %s26, 1
      %p65 = scmp.ne.s32.totalorder %s60, %s62
      %p66 = scmp.eq.s32.totalorder %s26, 0
      %p67 = por %p65, %p66
      %p68 = scmp.ne.s32.totalorder %s60, %s62
      %p69 = scmp.eq.s32.totalorder %s31, 1
      %p70 = por %p68, %p69
      %p71 = scmp.ne.s32.totalorder %s62, %s63
      %p72 = scmp.eq.s32.totalorder %s31, 0
      %p73 = por %p71, %p72
      %p74 = scmp.ne.s32.totalorder %s62, %s63
      %p75 = scmp.eq.s32.totalorder %s32, 1
      %p76 = por %p74, %p75
      %p78 = scmp.ne.s32.totalorder %s63, %s77
      %p79 = scmp.eq.s32.totalorder %s32, 0
      %p80 = por %p78, %p79
      %s82 = sadd.s32 %s81, 1
      %p85 = scmp.eq.s32.totalorder %s26, 1
      %p86 = scmp.ne.s32.totalorder %s81, %s83
      %p87 = scmp.eq.s32.totalorder %s26, 0
      %p88 = por %p86, %p87
      %p89 = scmp.ne.s32.totalorder %s81, %s83
      %p90 = scmp.eq.s32.totalorder %s31, 1
      %p91 = por %p89, %p90
      %p92 = scmp.ne.s32.totalorder %s83, %s84
      %p93 = scmp.eq.s32.totalorder %s31, 0
      %p94 = por %p92, %p93
      %p95 = scmp.ne.s32.totalorder %s83, %s84
      %p96 = scmp.eq.s32.totalorder %s32, 1
      %p97 = por %p95, %p96
      %p99 = scmp.ne.s32.totalorder %s84, %s98
      %p100 = scmp.eq.s32.totalorder %s32, 0
      %p101 = por %p99, %p100
      %s103 = sadd.s32 %s102, 1
      %p106 = scmp.eq.s32.totalorder %s26, 1
      %p107 = scmp.ne.s32.totalorder %s102, %s104
      %p108 = scmp.eq.s32.totalorder %s26, 0
      %p109 = por %p107, %p108
      %p110 = scmp.ne.s32.totalorder %s102, %s104
      %p111 = scmp.eq.s32.totalorder %s31, 1
      %p112 = por %p110, %p111
      %p113 = scmp.ne.s32.totalorder %s104, %s105
      %p114 = scmp.eq.s32.totalorder %s31, 0
      %p115 = por %p113, %p114
      %p116 = scmp.ne.s32.totalorder %s104, %s105
      %p117 = scmp.eq.s32.totalorder %s32, 1
      %p118 = por %p116, %p117
      %p120 = scmp.ne.s32.totalorder %s105, %s119
      %p121 = scmp.eq.s32.totalorder %s32, 0
      %p122 = por %p120, %p121
      %s124 = sadd.s32 %s123, 1
      %p127 = scmp.eq.s32.totalorder %s26, 1
      %p128 = scmp.ne.s32.totalorder %s123, %s125
      %p129 = scmp.eq.s32.totalorder %s26, 0
      %p130 = por %p128, %p129
      %p131 = scmp.ne.s32.totalorder %s123, %s125
      %p132 = scmp.eq.s32.totalorder %s31, 1
      %p133 = por %p131, %p132
      %p134 = scmp.ne.s32.totalorder %s125, %s126
      %p135 = scmp.eq.s32.totalorder %s31, 0
      %p136 = por %p134, %p135
      %p137 = scmp.ne.s32.totalorder %s125, %s126
      %p138 = scmp.eq.s32.totalorder %s32, 1
      %p139 = por %p137, %p138
      %p141 = scmp.ne.s32.totalorder %s126, %s140
      %p142 = scmp.eq.s32.totalorder %s32, 0
      %p143 = por %p141, %p142
      %s145 = sadd.s32 %s144, 1
      %p148 = scmp.eq.s32.totalorder %s26, 1
      %p149 = scmp.ne.s32.totalorder %s144, %s146
      %p150 = scmp.eq.s32.totalorder %s26, 0
      %p151 = por %p149, %p150
      %p152 = scmp.ne.s32.totalorder %s144, %s146
      %p153 = scmp.eq.s32.totalorder %s31, 1
      %p154 = por %p152, %p153
      %p155 = scmp.ne.s32.totalorder %s146, %s147
      %p156 = scmp.eq.s32.totalorder %s31, 0
      %p157 = por %p155, %p156
      %p158 = scmp.ne.s32.totalorder %s146, %s147
      %p159 = scmp.eq.s32.totalorder %s32, 1
      %p160 = por %p158, %p159
      %p162 = scmp.ne.s32.totalorder %s147, %s161
      %p163 = scmp.eq.s32.totalorder %s32, 0
      %p164 = por %p162, %p163
      %s166 = sadd.s32 %s165, 1
      %p169 = scmp.eq.s32.totalorder %s26, 1
      %p170 = scmp.ne.s32.totalorder %s165, %s167
      %p171 = scmp.eq.s32.totalorder %s26, 0
      %p172 = por %p170, %p171
      %p173 = scmp.ne.s32.totalorder %s165, %s167
      %p174 = scmp.eq.s32.totalorder %s31, 1
      %p175 = por %p173, %p174
      %p176 = scmp.ne.s32.totalorder %s167, %s168
      %p177 = scmp.eq.s32.totalorder %s31, 0
      %p178 = por %p176, %p177
      %p179 = scmp.ne.s32.totalorder %s167, %s168
      %p180 = scmp.eq.s32.totalorder %s32, 1
      %p181 = por %p179, %p180
      %p183 = scmp.ne.s32.totalorder %s168, %s182
      %p184 = scmp.eq.s32.totalorder %s32, 0
      %p185 = por %p183, %p184
      %s187 = sadd.s32 %s186, 1
      %p190 = scmp.eq.s32.totalorder %s26, 1
      %p191 = scmp.ne.s32.totalorder %s186, %s188
      %p192 = scmp.eq.s32.totalorder %s26, 0
      %p193 = por %p191, %p192
      %p194 = scmp.ne.s32.totalorder %s186, %s188
      %p195 = scmp.eq.s32.totalorder %s31, 1
      %p196 = por %p194, %p195
      %p197 = scmp.ne.s32.totalorder %s188, %s189
      %p198 = scmp.eq.s32.totalorder %s31, 0
      %p199 = por %p197, %p198
      %p200 = scmp.ne.s32.totalorder %s188, %s189
      %p201 = scmp.eq.s32.totalorder %s32, 1
      %p202 = por %p200, %p201
      %p204 = scmp.ne.s32.totalorder %s189, %s203
      %p205 = scmp.eq.s32.totalorder %s32, 0
      %p206 = por %p204, %p205
      %s208 = sadd.s32 %s207, 1
      %p211 = scmp.eq.s32.totalorder %s26, 1
      %p212 = scmp.ne.s32.totalorder %s207, %s209
      %p213 = scmp.eq.s32.totalorder %s26, 0
      %p214 = por %p212, %p213
      %p215 = scmp.ne.s32.totalorder %s207, %s209
      %p216 = scmp.eq.s32.totalorder %s31, 1
      %p217 = por %p215, %p216
      %p218 = scmp.ne.s32.totalorder %s209, %s210
      %p219 = scmp.eq.s32.totalorder %s31, 0
      %p220 = por %p218, %p219
      %p221 = scmp.ne.s32.totalorder %s209, %s210
      %p222 = scmp.eq.s32.totalorder %s32, 1
      %p223 = por %p221, %p222
      %p225 = scmp.ne.s32.totalorder %s210, %s224
      %p226 = scmp.eq.s32.totalorder %s32, 0
      %p227 = por %p225, %p226
      %s229 = sadd.s32 %s228, 1
      %p232 = scmp.eq.s32.totalorder %s26, 1
      %p233 = scmp.ne.s32.totalorder %s228, %s230
      %p234 = scmp.eq.s32.totalorder %s26, 0
      %p235 = por %p233, %p234
      %p236 = scmp.ne.s32.totalorder %s228, %s230
      %p237 = scmp.eq.s32.totalorder %s31, 1
      %p238 = por %p236, %p237
      %p239 = scmp.ne.s32.totalorder %s230, %s231
      %p240 = scmp.eq.s32.totalorder %s31, 0
      %p241 = por %p239, %p240
      %p242 = scmp.ne.s32.totalorder %s230, %s231
      %p243 = scmp.eq.s32.totalorder %s32, 1
      %p244 = por %p242, %p243
      %p246 = scmp.ne.s32.totalorder %s231, %s245
      %p247 = scmp.eq.s32.totalorder %s32, 0
      %p248 = por %p246, %p247
      %s250 = sadd.s32 %s249, 1
      %p253 = scmp.eq.s32.totalorder %s26, 1
      %p254 = scmp.ne.s32.totalorder %s249, %s251
      %p255 = scmp.eq.s32.totalorder %s26, 0
      %p256 = por %p254, %p255
      %p257 = scmp.ne.s32.totalorder %s249, %s251
      %p258 = scmp.eq.s32.totalorder %s31, 1
      %p259 = por %p257, %p258
      %p260 = scmp.ne.s32.totalorder %s251, %s252
      %p261 = scmp.eq.s32.totalorder %s31, 0
      %p262 = por %p260, %p261
      %p263 = scmp.ne.s32.totalorder %s251, %s252
      %p264 = scmp.eq.s32.totalorder %s32, 1
      %p265 = por %p263, %p264
      %p267 = scmp.ne.s32.totalorder %s252, %s266
      %p268 = scmp.eq.s32.totalorder %s32, 0
      %p269 = por %p267, %p268
      %s271 = sadd.s32 %s270, 1
      %p274 = scmp.eq.s32.totalorder %s26, 1
      %p275 = scmp.ne.s32.totalorder %s270, %s272
      %p276 = scmp.eq.s32.totalorder %s26, 0
      %p277 = por %p275, %p276
      %p278 = scmp.ne.s32.totalorder %s270, %s272
      %p279 = scmp.eq.s32.totalorder %s31, 1
      %p280 = por %p278, %p279
      %p281 = scmp.ne.s32.totalorder %s272, %s273
      %p282 = scmp.eq.s32.totalorder %s31, 0
      %p283 = por %p281, %p282
      %p284 = scmp.ne.s32.totalorder %s272, %s273
      %p285 = scmp.eq.s32.totalorder %s32, 1
      %p286 = por %p284, %p285
      %p288 = scmp.ne.s32.totalorder %s273, %s287
      %p289 = scmp.eq.s32.totalorder %s32, 0
      %p290 = por %p288, %p289
      %s292 = sadd.s32 %s291, 1
      %p295 = scmp.eq.s32.totalorder %s26, 1
      %p296 = scmp.ne.s32.totalorder %s291, %s293
      %p297 = scmp.eq.s32.totalorder %s26, 0
      %p298 = por %p296, %p297
      %p299 = scmp.ne.s32.totalorder %s291, %s293
      %p300 = scmp.eq.s32.totalorder %s31, 1
      %p301 = por %p299, %p300
      %p302 = scmp.ne.s32.totalorder %s293, %s294
      %p303 = scmp.eq.s32.totalorder %s31, 0
      %p304 = por %p302, %p303
      %p305 = scmp.ne.s32.totalorder %s293, %s294
      %p306 = scmp.eq.s32.totalorder %s32, 1
      %p307 = por %p305, %p306
      %p309 = scmp.ne.s32.totalorder %s294, %s308
      %p310 = scmp.eq.s32.totalorder %s32, 0
      %p311 = por %p309, %p310
      %s313 = sadd.s32 %s312, 1
      %p316 = scmp.eq.s32.totalorder %s26, 1
      %p317 = scmp.ne.s32.totalorder %s312, %s314
      %p318 = scmp.eq.s32.totalorder %s26, 0
      %p319 = por %p317, %p318
      %p320 = scmp.ne.s32.totalorder %s312, %s314
      %p321 = scmp.eq.s32.totalorder %s31, 1
      %p322 = por %p320, %p321
      %p323 = scmp.ne.s32.totalorder %s314, %s315
      %p324 = scmp.eq.s32.totalorder %s31, 0
      %p325 = por %p323, %p324
      %p326 = scmp.ne.s32.totalorder %s314, %s315
      %p327 = scmp.eq.s32.totalorder %s32, 1
      %p328 = por %p326, %p327
      %p330 = scmp.ne.s32.totalorder %s315, %s329
      %p331 = scmp.eq.s32.totalorder %s32, 0
      %p332 = por %p330, %p331
      %s334 = sadd.s32 %s333, 1
      %p337 = scmp.eq.s32.totalorder %s26, 1
      %p338 = scmp.ne.s32.totalorder %s333, %s335
      %p339 = scmp.eq.s32.totalorder %s26, 0
      %p340 = por %p338, %p339
      %p341 = scmp.ne.s32.totalorder %s333, %s335
      %p342 = scmp.eq.s32.totalorder %s31, 1
      %p343 = por %p341, %p342
      %p344 = scmp.ne.s32.totalorder %s335, %s336
      %p345 = scmp.eq.s32.totalorder %s31, 0
      %p346 = por %p344, %p345
      %p347 = scmp.ne.s32.totalorder %s335, %s336
      %p348 = scmp.eq.s32.totalorder %s32, 1
      %p349 = por %p347, %p348
      %p351 = scmp.ne.s32.totalorder %s336, %s350
      %p352 = scmp.eq.s32.totalorder %s32, 0
      %p353 = por %p351, %p352
      %s355 = sadd.s32 %s354, 1
      %p358 = scmp.eq.s32.totalorder %s26, 1
      %p359 = scmp.ne.s32.totalorder %s354, %s356
      %p360 = scmp.eq.s32.totalorder %s26, 0
      %p361 = por %p359, %p360
      %p362 = scmp.ne.s32.totalorder %s354, %s356
      %p363 = scmp.eq.s32.totalorder %s31, 1
      %p364 = por %p362, %p363
      %p365 = scmp.ne.s32.totalorder %s356, %s357
      %p366 = scmp.eq.s32.totalorder %s31, 0
      %p367 = por %p365, %p366
      %p368 = scmp.ne.s32.totalorder %s356, %s357
      %p369 = scmp.eq.s32.totalorder %s32, 1
      %p370 = por %p368, %p369
      %p372 = scmp.ne.s32.totalorder %s357, %s371
      %p373 = scmp.eq.s32.totalorder %s32, 0
      %p374 = por %p372, %p373
      %s376 = sadd.s32 %s375, 1
      %p379 = scmp.eq.s32.totalorder %s26, 1
      %p380 = scmp.ne.s32.totalorder %s375, %s377
      %p381 = scmp.eq.s32.totalorder %s26, 0
      %p382 = por %p380, %p381
      %p383 = scmp.ne.s32.totalorder %s375, %s377
      %p384 = scmp.eq.s32.totalorder %s31, 1
      %p385 = por %p383, %p384
      %p386 = scmp.ne.s32.totalorder %s377, %s378
      %p387 = scmp.eq.s32.totalorder %s31, 0
      %p388 = por %p386, %p387
      %p389 = scmp.ne.s32.totalorder %s377, %s378
      %p390 = scmp.eq.s32.totalorder %s32, 1
      %p391 = por %p389, %p390
      %p393 = scmp.ne.s32.totalorder %s378, %s392
      %p394 = scmp.eq.s32.totalorder %s32, 0
      %p395 = por %p393, %p394
      %s396 = ssub.s32 %s26, %s33
      %p397 = scmp.eq.s32.totalorder %s396, 0
      %s399 = sadd.s32 %s398, 1
      %s400 = scalar_select %p397, %s398, %s399
      %p403 = pneg %p397
      %p404 = scmp.eq.s32.totalorder %s26, 1
      %p405 = por %p403, %p404
      %p406 = scmp.ne.s32.totalorder %s398, %s401
      %p407 = scmp.eq.s32.totalorder %s26, 0
      %p408 = por %p406, %p407
      %p409 = scmp.ne.s32.totalorder %s398, %s401
      %p410 = scmp.eq.s32.totalorder %s31, 1
      %p411 = por %p409, %p410
      %p412 = scmp.ne.s32.totalorder %s401, %s402
      %p413 = scmp.eq.s32.totalorder %s31, 0
      %p414 = por %p412, %p413
      %p415 = scmp.ne.s32.totalorder %s401, %s402
      %p416 = scmp.eq.s32.totalorder %s32, 1
      %p417 = por %p415, %p416
      %p419 = scmp.ne.s32.totalorder %s402, %s418
      %p420 = scmp.eq.s32.totalorder %s32, 0
      %p421 = por %p419, %p420
      %p422 = scmp.le.s32.totalorder 1, %s26
      %p423 = scmp.lt.s32.totalorder %s26, 3
      %p424 = pnand %p422, %p423
      %p425 = pneg %p424
      // Predicated region
      $region9: #{gpt2_tts_forward.1} parent=5 // pred_check
        _
      $region10: #{gpt2_tts_forward.1} parent=5 // pred_check_branch
        %427 = sbr.rel (%p424) target = $region12
      $region11: #{gpt2_tts_forward.1} parent=5 // pred_region
        %s428 = ssub.s32 %s26, 1
        // Predicated region
        $region13: #{gpt2_tts_forward.1} parent=11 // pred_check
          %p429 = pneg %p73
        $region14: #{gpt2_tts_forward.1} parent=11 // pred_check_branch
          %431 = sbr.rel (%p429) target = $region16
        $region15: #{gpt2_tts_forward.1} parent=11 // pred_region
          _
        $region16: #{gpt2_tts_forward.1} parent=11 // pred_fallthru
          _
        // Predicated region
        $region17: #{gpt2_tts_forward.1} parent=11 // pred_check
          %p432 = pneg %p94
        $region18: #{gpt2_tts_forward.1} parent=11 // pred_check_branch
          %434 = sbr.rel (%p432) target = $region20
        $region19: #{gpt2_tts_forward.1} parent=11 // pred_region
          _
        $region20: #{gpt2_tts_forward.1} parent=11 // pred_fallthru
          _
        // Predicated region
        $region21: #{gpt2_tts_forward.1} parent=11 // pred_check
          %p435 = pneg %p115
        $region22: #{gpt2_tts_forward.1} parent=11 // pred_check_branch
          %437 = sbr.rel (%p435) target = $region24
        $region23: #{gpt2_tts_forward.1} parent=11 // pred_region
          _
        $region24: #{gpt2_tts_forward.1} parent=11 // pred_fallthru
          _
        // Predicated region
        $region25: #{gpt2_tts_forward.1} parent=11 // pred_check
          %p438 = pneg %p136
        $region26: #{gpt2_tts_forward.1} parent=11 // pred_check_branch
          %440 = sbr.rel (%p438) target = $region28
        $region27: #{gpt2_tts_forward.1} parent=11 // pred_region
          _
        $region28: #{gpt2_tts_forward.1} parent=11 // pred_fallthru
          _
        // Predicated region
        $region29: #{gpt2_tts_forward.1} parent=11 // pred_check
          %p441 = pneg %p157
        $region30: #{gpt2_tts_forward.1} parent=11 // pred_check_branch
          %443 = sbr.rel (%p441) target = $region32
        $region31: #{gpt2_tts_forward.1} parent=11 // pred_region
          _
        $region32: #{gpt2_tts_forward.1} parent=11 // pred_fallthru
          _
        // Predicated region
        $region33: #{gpt2_tts_forward.1} parent=11 // pred_check
          %p444 = pneg %p178
        $region34: #{gpt2_tts_forward.1} parent=11 // pred_check_branch
          %446 = sbr.rel (%p444) target = $region36
        $region35: #{gpt2_tts_forward.1} parent=11 // pred_region
          _
        $region36: #{gpt2_tts_forward.1} parent=11 // pred_fallthru
          _
        // Predicated region
        $region37: #{gpt2_tts_forward.1} parent=11 // pred_check
          %p447 = pneg %p199
        $region38: #{gpt2_tts_forward.1} parent=11 // pred_check_branch
          %449 = sbr.rel (%p447) target = $region40
        $region39: #{gpt2_tts_forward.1} parent=11 // pred_region
          _
        $region40: #{gpt2_tts_forward.1} parent=11 // pred_fallthru
          _
        // Predicated region
        $region41: #{gpt2_tts_forward.1} parent=11 // pred_check
          %p450 = pneg %p220
        $region42: #{gpt2_tts_forward.1} parent=11 // pred_check_branch
          %452 = sbr.rel (%p450) target = $region44
        $region43: #{gpt2_tts_forward.1} parent=11 // pred_region
          _
        $region44: #{gpt2_tts_forward.1} parent=11 // pred_fallthru
          _
        // Predicated region
        $region45: #{gpt2_tts_forward.1} parent=11 // pred_check
          %p453 = pneg %p241
        $region46: #{gpt2_tts_forward.1} parent=11 // pred_check_branch
          %455 = sbr.rel (%p453) target = $region48
        $region47: #{gpt2_tts_forward.1} parent=11 // pred_region
          _
        $region48: #{gpt2_tts_forward.1} parent=11 // pred_fallthru
          _
        // Predicated region
        $region49: #{gpt2_tts_forward.1} parent=11 // pred_check
          %p456 = pneg %p262
        $region50: #{gpt2_tts_forward.1} parent=11 // pred_check_branch
          %458 = sbr.rel (%p456) target = $region52
        $region51: #{gpt2_tts_forward.1} parent=11 // pred_region
          _
        $region52: #{gpt2_tts_forward.1} parent=11 // pred_fallthru
          _
        // Predicated region
        $region53: #{gpt2_tts_forward.1} parent=11 // pred_check
          %p459 = pneg %p283
        $region54: #{gpt2_tts_forward.1} parent=11 // pred_check_branch
          %461 = sbr.rel (%p459) target = $region56
        $region55: #{gpt2_tts_forward.1} parent=11 // pred_region
          _
        $region56: #{gpt2_tts_forward.1} parent=11 // pred_fallthru
          _
        // Predicated region
        $region57: #{gpt2_tts_forward.1} parent=11 // pred_check
          %p462 = pneg %p304
        $region58: #{gpt2_tts_forward.1} parent=11 // pred_check_branch
          %464 = sbr.rel (%p462) target = $region60
        $region59: #{gpt2_tts_forward.1} parent=11 // pred_region
          _
        $region60: #{gpt2_tts_forward.1} parent=11 // pred_fallthru
          _
        // Predicated region
        $region61: #{gpt2_tts_forward.1} parent=11 // pred_check
          %p465 = pneg %p325
        $region62: #{gpt2_tts_forward.1} parent=11 // pred_check_branch
          %467 = sbr.rel (%p465) target = $region64
        $region63: #{gpt2_tts_forward.1} parent=11 // pred_region
          _
        $region64: #{gpt2_tts_forward.1} parent=11 // pred_fallthru
          _
        // Predicated region
        $region65: #{gpt2_tts_forward.1} parent=11 // pred_check
          %p468 = pneg %p346
        $region66: #{gpt2_tts_forward.1} parent=11 // pred_check_branch
          %470 = sbr.rel (%p468) target = $region68
        $region67: #{gpt2_tts_forward.1} parent=11 // pred_region
          _
        $region68: #{gpt2_tts_forward.1} parent=11 // pred_fallthru
          _
        // Predicated region
        $region69: #{gpt2_tts_forward.1} parent=11 // pred_check
          %p471 = pneg %p367
        $region70: #{gpt2_tts_forward.1} parent=11 // pred_check_branch
          %473 = sbr.rel (%p471) target = $region72
        $region71: #{gpt2_tts_forward.1} parent=11 // pred_region
          _
        $region72: #{gpt2_tts_forward.1} parent=11 // pred_fallthru
          _
        // Predicated region
        $region73: #{gpt2_tts_forward.1} parent=11 // pred_check
          %p474 = pneg %p388
        $region74: #{gpt2_tts_forward.1} parent=11 // pred_check_branch
          %476 = sbr.rel (%p474) target = $region76
        $region75: #{gpt2_tts_forward.1} parent=11 // pred_region
          _
        $region76: #{gpt2_tts_forward.1} parent=11 // pred_fallthru
          _
      $region12: #{gpt2_tts_forward.1} parent=5 // pred_fallthru
        _
      %p477 = scmp.lt.s32.totalorder %s26, 2
      // Predicated region
      $region77: #{gpt2_tts_forward.1} parent=5 // pred_check
        %p478 = pneg %p477
      $region78: #{gpt2_tts_forward.1} parent=5 // pred_check_branch
        %480 = sbr.rel (%p478) target = $region80
      $region79: #{gpt2_tts_forward.1} parent=5 // pred_region
        // Predicated region
        $region81: #{gpt2_tts_forward.1} parent=79 // pred_check
          %p481 = pneg %p46
        $region82: #{gpt2_tts_forward.1} parent=79 // pred_check_branch
          %483 = sbr.rel (%p481) target = $region84
        $region83: #{gpt2_tts_forward.1} parent=79 // pred_region
          %p484 = scmp.lt.s32.totalorder %s26, 1
          %s485 = scalar_select %p484, %s26, 1
          %s486 = smul.addr %s485, 8
          %s487 = scalar_lea.vmem %s0, %s486
        $region84: #{gpt2_tts_forward.1} parent=79 // pred_fallthru
          _
      $region80: #{gpt2_tts_forward.1} parent=5 // pred_fallthru
        _
      %p488 = scmp.le.s32.totalorder 1, %s26
      %p489 = scmp.lt.s32.totalorder %s26, 3
      %p490 = pnand %p488, %p489
      %p491 = pneg %p490
      // Predicated region
      $region85: #{gpt2_tts_forward.1} parent=5 // pred_check
        _
      $region86: #{gpt2_tts_forward.1} parent=5 // pred_check_branch
        %493 = sbr.rel (%p490) target = $region88
      $region87: #{gpt2_tts_forward.1} parent=5 // pred_region
        %s494 = ssub.s32 %s26, 1
        %p495 = scmp.lt.s32.totalorder %s31, 1
        %s496 = scalar_select %p495, %s31, 1
        %s497 = smul.addr %s496, 8
        %s498 = scalar_lea.vmem %s0, %s497
        %p499 = pneg %p52
        %p500 = pneg %p49
        %p501 = pneg %p73
        %p502 = pneg %p70
        %p503 = pneg %p94
        %p504 = pneg %p91
        %p505 = pneg %p115
        %p506 = pneg %p112
        %p507 = pneg %p136
        %p508 = pneg %p133
        %p509 = pneg %p157
        %p510 = pneg %p154
        %p511 = pneg %p178
        %p512 = pneg %p175
        %p513 = pneg %p199
        %p514 = pneg %p196
        %p515 = pneg %p220
        %p516 = pneg %p217
        %p517 = pneg %p241
        %p518 = pneg %p238
        %p519 = pneg %p262
        %p520 = pneg %p259
        %p521 = pneg %p283
        %p522 = pneg %p280
        %p523 = pneg %p304
        %p524 = pneg %p301
        %p525 = pneg %p325
        %p526 = pneg %p322
        %p527 = pneg %p346
        %p528 = pneg %p343
        %p529 = pneg %p367
        %p530 = pneg %p364
        %p531 = pneg %p388
        %p532 = pneg %p385
        %p533 = pneg %p414
        %p534 = pneg %p411
        %s535 = sand.u32 %s401, 1
        %s536 = scalar_lea.sflag [#allocation3], %s535
        %s537 = sand.u32 %s401, 1
        %s538 = smul.addr %s537, 8
        %s539 = scalar_lea.vmem [#allocation2], %s538
        %p540 = scmp.lt.s32.totalorder %s31, 1
        %s541 = scalar_select %p540, %s31, 1
        %s542 = smul.addr %s541, 8
        %s543 = scalar_lea.vmem %s0, %s542
        %v545 = vld [vmem:[%s543] sm:$0xff]
        %v546 = vlaneseq
        %v547 = vshrl.u32 %v546, 7
        %v548 = vlaneseq
        %v549 = vand.u32 %v548, 127
        %vm550 = vcmp.ge.s32.totalorder %v547, %v549
        %v551 = vsel %vm550, 0.0, -1e+30
        %v552 = vld [vmem:[%s1] sm:$0x1]
        %v553 = vld [vmem:[%s2] sm:$0x1]
        %vm554 = vcmask 261120
        %v555 = vsel %vm554, %v545, 0.0
        %556 = vadd.xlane.f32.xlu0 %v555
        %v557 = vpop.xlane.xlu0 %556
        %v558 = vrcp.pop 32.0
        %v559 = vmul.f32 %v557, %v558
        %v560 = vsub.f32 %v545, %v559
        %v561 = vmul.f32 %v560, %v560
        %v562 = vsel %vm554, %v561, 0.0
        %563 = vadd.xlane.f32.xlu0 %v562
        %v564 = vpop.xlane.xlu0 %563
        %v565 = vmul.f32 %v564, %v558
        %v566 = vadd.f32 %v565, 1e-05
        %v567 = vrsqrt.pop %v566
        %v568 = vmul.f32 %v560, %v567
        %v570 = vlaneseq
        %v571 = vshrl.u32 %v570, 7
        %v572 = vsub.s32 0, %v571
        %v573 = vrot.slane %v552, %v572
        %v575 = vmul.f32 %v568, %v573
        %v577 = vlaneseq
        %v578 = vshrl.u32 %v577, 7
        %v579 = vsub.s32 0, %v578
        %v580 = vrot.slane %v553, %v579
        %v582 = vadd.f32 %v575, %v580
        %v583 = vpack.c.bf16 %v582, %v582
        %v584 = vld [vmem:[%s3] sm:$0xf]
        %v585 = vld [vmem:[%s3 + $0x4] sm:$0xf]
        %v586 = vld [vmem:[%s3 + $0x8] sm:$0xf]
        %v587 = vld [vmem:[%s3 + $0xc] sm:$0xf]
        %v588 = vld [vmem:[%s4] sm:$0x1]
        %v590 = vlaneseq
        %v591 = vshrl.u32 %v590, 7
        %v592 = vsub.s32 0, %v591
        %v593 = vrot.slane %v588, %v592
        %v599 = vunpack.c.l.b16 %v584
        %v600 = vunpack.c.l.b16 %v585
        %v601 = vunpack.c.l.b16 %v586
        %v602 = vunpack.c.l.b16 %v587
        %v603 = vpack.c.b16 %v600, %v599
        %v604 = vpack.c.b16 %v602, %v601
        %v608 = vsel %vm554, %v583, 0
        %610 = vmatprep.subr.bf16.mxu0 0
        %611 = vmatpush1.bf16.msra.mxu0 %v603
        %612 = vmatprep.subr.bf16.mxu0 0
        %613 = vmatpush1.bf16.msra.mxu0 %v604
        %614 = vmatprep.subr.bf16.mxu0 0
        %615 = vmatpush1.bf16.msra.mxu0 0
        %616 = vmatprep.subr.bf16.mxu0 0
        %617 = vmatpush1.bf16.msra.mxu0 0
        %618 = vmatprep.subr.bf16.mxu0 0
        %619 = vmatpush1.bf16.msra.mxu0 0
        %620 = vmatprep.subr.bf16.mxu0 0
        %621 = vmatpush1.bf16.msra.mxu0 0
        %622 = vmatprep.subr.bf16.mxu0 0
        %623 = vmatpush1.bf16.msra.mxu0 0
        %624 = vmatprep.subr.bf16.mxu0 0
        %625 = vmatpush1.bf16.msra.mxu0 0
        %626 = vmatprep.subr.bf16.mxu0 0
        %627 = vmatpush1.bf16.msra.mxu0 0
        %628 = vmatprep.subr.bf16.mxu0 0
        %629 = vmatpush1.bf16.msra.mxu0 0
        %630 = vmatprep.subr.bf16.mxu0 0
        %631 = vmatpush1.bf16.msra.mxu0 0
        %632 = vmatprep.subr.bf16.mxu0 0
        %633 = vmatpush1.bf16.msra.mxu0 0
        %634 = vmatprep.subr.bf16.mxu0 0
        %635 = vmatpush1.bf16.msra.mxu0 0
        %636 = vmatprep.subr.bf16.mxu0 0
        %637 = vmatpush1.bf16.msra.mxu0 0
        %638 = vmatprep.subr.bf16.mxu0 0
        %639 = vmatpush1.bf16.msra.mxu0 0
        %640 = vmatprep.subr.bf16.mxu0 0
        %641 = vmatpush1.bf16.msra.mxu0 0
        %642 = vmatprep.mubr.bf16.mxu0 0
        %643 = vmatmul.mubr.bf16.gmra.mrb[0].mxu0 %v608
        %v644 = vpop.f32.mrb[0].mxu0
        %v645 = vadd.f32 %v593, %v644
        %v646 = vpop.f32.mrb[0].mxu0
        %v647 = vpop.f32.mrb[0].mxu0
        %v648 = vpop.f32.mrb[0].mxu0
        %649 = vdwg.mxu0
        %651 = vrot.lane.b32.xlu0 %v645, 96
        %v652 = vpop.permute.xlu0 %651
        %654 = vxpose.xlu0.b32.start [1/16] %v652, 128
        %655 = vxpose.xlu0.b32.cont [2/16] 0.0, 128
        %656 = vxpose.xlu0.b32.cont [3/16] 0.0, 128
        %657 = vxpose.xlu0.b32.cont [4/16] 0.0, 128
        %658 = vxpose.xlu0.b32.cont [5/16] 0.0, 128
        %659 = vxpose.xlu0.b32.cont [6/16] 0.0, 128
        %660 = vxpose.xlu0.b32.cont [7/16] 0.0, 128
        %661 = vxpose.xlu0.b32.cont [8/16] 0.0, 128
        %662 = vxpose.xlu0.b32.cont [9/16] 0.0, 128
        %663 = vxpose.xlu0.b32.cont [10/16] 0.0, 128
        %664 = vxpose.xlu0.b32.cont [11/16] 0.0, 128
        %665 = vxpose.xlu0.b32.cont [12/16] 0.0, 128
        %666 = vxpose.xlu0.b32.cont [13/16] 0.0, 128
        %667 = vxpose.xlu0.b32.cont [14/16] 0.0, 128
        %668 = vxpose.xlu0.b32.cont [15/16] 0.0, 128
        %669 = vxpose.xlu0.b32.end [16/16] 0.0, 128
        %v670 = vpop.trf.xlu0
        %v671 = vpop.trf.xlu0
        %v672 = vpop.trf.xlu0
        %v673 = vpop.trf.xlu0
        %v674 = vpop.trf.xlu0
        %v675 = vpop.trf.xlu0
        %v676 = vpop.trf.xlu0
        %v677 = vpop.trf.xlu0
        %v678 = vpop.trf.xlu0
        %v679 = vpop.trf.xlu0
        %v680 = vpop.trf.xlu0
        %v681 = vpop.trf.xlu0
        %v682 = vpop.trf.xlu0
        %v683 = vpop.trf.xlu0
        %v684 = vpop.trf.xlu0
        %v685 = vpop.trf.xlu0
        %v686 = vpack.c.bf16 %v645, %v645
        %v687 = vpack.c.bf16 %v670, %v670
        %vm688 = vcmask 64512
        %v690 = vsel %vm688, %v686, 0
        %vm692 = vcmask 1043456
        %v694 = vsel %vm692, %v687, 0
        %696 = vmatprep.subr.bf16.mxu0 0
        %697 = vmatpush1.bf16.msra.mxu0 %v694
        %698 = vmatprep.subr.bf16.mxu0 0
        %699 = vmatpush1.bf16.msra.mxu0 0
        %700 = vmatprep.subr.bf16.mxu0 0
        %701 = vmatpush1.bf16.msra.mxu0 0
        %702 = vmatprep.subr.bf16.mxu0 0
        %703 = vmatpush1.bf16.msra.mxu0 0
        %704 = vmatprep.subr.bf16.mxu0 0
        %705 = vmatpush1.bf16.msra.mxu0 0
        %706 = vmatprep.subr.bf16.mxu0 0
        %707 = vmatpush1.bf16.msra.mxu0 0
        %708 = vmatprep.subr.bf16.mxu0 0
        %709 = vmatpush1.bf16.msra.mxu0 0
        %710 = vmatprep.subr.bf16.mxu0 0
        %711 = vmatpush1.bf16.msra.mxu0 0
        %712 = vmatprep.subr.bf16.mxu0 0
        %713 = vmatpush1.bf16.msra.mxu0 0
        %714 = vmatprep.subr.bf16.mxu0 0
        %715 = vmatpush1.bf16.msra.mxu0 0
        %716 = vmatprep.subr.bf16.mxu0 0
        %717 = vmatpush1.bf16.msra.mxu0 0
        %718 = vmatprep.subr.bf16.mxu0 0
        %719 = vmatpush1.bf16.msra.mxu0 0
        %720 = vmatprep.subr.bf16.mxu0 0
        %721 = vmatpush1.bf16.msra.mxu0 0
        %722 = vmatprep.subr.bf16.mxu0 0
        %723 = vmatpush1.bf16.msra.mxu0 0
        %724 = vmatprep.subr.bf16.mxu0 0
        %725 = vmatpush1.bf16.msra.mxu0 0
        %726 = vmatprep.subr.bf16.mxu0 0
        %727 = vmatpush1.bf16.msra.mxu0 0
        %728 = vmatprep.mubr.bf16.mxu0 0
        %729 = vmatmul.mubr.bf16.gmra.mrb[0].mxu0 %v690
        %v730 = vpop.f32.mrb[0].mxu0
        %v731 = vadd.f32 0.0, %v730
        %v732 = vpop.f32.mrb[0].mxu0
        %v733 = vpop.f32.mrb[0].mxu0
        %v734 = vpop.f32.mrb[0].mxu0
        %735 = vdwg.mxu0
        %v736 = vmul.f32 %v731, 0.35355338
        %v737 = vadd.f32 %v736, %v551
        %v738 = vsel %vm688, %v737, -inf
        %739 = vmax.xlane.f32.xlu0 %v738
        %v740 = vpop.xlane.xlu0 %739
        %v741 = vsub.f32 %v737, %v740
        %v742 = vmul.f32 %v741, 1.442695
        %v743 = vpow.pop %v742
        %v744 = vsel %vm688, %v743, 0.0
        %745 = vadd.xlane.f32.xlu0 %v744
        %v746 = vpop.xlane.xlu0 %745
        %v747 = vrcp.pop %v746
        %v748 = vmul.f32 %v743, %v747
        %v749 = vpack.c.bf16 %v748, %v748
        %751 = vrot.lane.b32.xlu0 %v686, 64
        %v752 = vpop.permute.xlu0 %751
        %v754 = vsel %vm688, %v749, 0
        %v757 = vsel %vm692, %v752, 0
        %759 = vmatprep.subr.bf16.mxu0 0
        %760 = vmatpush1.bf16.msra.mxu0 %v757
        %761 = vmatprep.subr.bf16.mxu0 0
        %762 = vmatpush1.bf16.msra.mxu0 0
        %763 = vmatprep.subr.bf16.mxu0 0
        %764 = vmatpush1.bf16.msra.mxu0 0
        %765 = vmatprep.subr.bf16.mxu0 0
        %766 = vmatpush1.bf16.msra.mxu0 0
        %767 = vmatprep.subr.bf16.mxu0 0
        %768 = vmatpush1.bf16.msra.mxu0 0
        %769 = vmatprep.subr.bf16.mxu0 0
        %770 = vmatpush1.bf16.msra.mxu0 0
        %771 = vmatprep.subr.bf16.mxu0 0
        %772 = vmatpush1.bf16.msra.mxu0 0
        %773 = vmatprep.subr.bf16.mxu0 0
        %774 = vmatpush1.bf16.msra.mxu0 0
        %775 = vmatprep.subr.bf16.mxu0 0
        %776 = vmatpush1.bf16.msra.mxu0 0
        %777 = vmatprep.subr.bf16.mxu0 0
        %778 = vmatpush1.bf16.msra.mxu0 0
        %779 = vmatprep.subr.bf16.mxu0 0
        %780 = vmatpush1.bf16.msra.mxu0 0
        %781 = vmatprep.subr.bf16.mxu0 0
        %782 = vmatpush1.bf16.msra.mxu0 0
        %783 = vmatprep.subr.bf16.mxu0 0
        %784 = vmatpush1.bf16.msra.mxu0 0
        %785 = vmatprep.subr.bf16.mxu0 0
        %786 = vmatpush1.bf16.msra.mxu0 0
        %787 = vmatprep.subr.bf16.mxu0 0
        %788 = vmatpush1.bf16.msra.mxu0 0
        %789 = vmatprep.subr.bf16.mxu0 0
        %790 = vmatpush1.bf16.msra.mxu0 0
        %791 = vmatprep.mubr.bf16.mxu0 0
        %792 = vmatmul.mubr.bf16.gmra.mrb[0].mxu0 %v754
        %v793 = vpop.f32.mrb[0].mxu0
        %v794 = vadd.f32 0.0, %v793
        %v795 = vpop.f32.mrb[0].mxu0
        %v796 = vpop.f32.mrb[0].mxu0
        %v797 = vpop.f32.mrb[0].mxu0
        %798 = vdwg.mxu0
        %v799 = vpack.c.bf16 %v671, %v671
        %800 = vrot.lane.b32.xlu0 %v686, 120
        %v801 = vpop.permute.xlu0 %800
        %v803 = vsel %vm688, %v801, 0
        %v806 = vsel %vm692, %v799, 0
        %808 = vmatprep.subr.bf16.mxu0 0
        %809 = vmatpush1.bf16.msra.mxu0 %v806
        %810 = vmatprep.subr.bf16.mxu0 0
        %811 = vmatpush1.bf16.msra.mxu0 0
        %812 = vmatprep.subr.bf16.mxu0 0
        %813 = vmatpush1.bf16.msra.mxu0 0
        %814 = vmatprep.subr.bf16.mxu0 0
        %815 = vmatpush1.bf16.msra.mxu0 0
        %816 = vmatprep.subr.bf16.mxu0 0
        %817 = vmatpush1.bf16.msra.mxu0 0
        %818 = vmatprep.subr.bf16.mxu0 0
        %819 = vmatpush1.bf16.msra.mxu0 0
        %820 = vmatprep.subr.bf16.mxu0 0
        %821 = vmatpush1.bf16.msra.mxu0 0
        %822 = vmatprep.subr.bf16.mxu0 0
        %823 = vmatpush1.bf16.msra.mxu0 0
        %824 = vmatprep.subr.bf16.mxu0 0
        %825 = vmatpush1.bf16.msra.mxu0 0
        %826 = vmatprep.subr.bf16.mxu0 0
        %827 = vmatpush1.bf16.msra.mxu0 0
        %828 = vmatprep.subr.bf16.mxu0 0
        %829 = vmatpush1.bf16.msra.mxu0 0
        %830 = vmatprep.subr.bf16.mxu0 0
        %831 = vmatpush1.bf16.msra.mxu0 0
        %832 = vmatprep.subr.bf16.mxu0 0
        %833 = vmatpush1.bf16.msra.mxu0 0
        %834 = vmatprep.subr.bf16.mxu0 0
        %835 = vmatpush1.bf16.msra.mxu0 0
        %836 = vmatprep.subr.bf16.mxu0 0
        %837 = vmatpush1.bf16.msra.mxu0 0
        %838 = vmatprep.subr.bf16.mxu0 0
        %839 = vmatpush1.bf16.msra.mxu0 0
        %840 = vmatprep.mubr.bf16.mxu0 0
        %841 = vmatmul.mubr.bf16.gmra.mrb[0].mxu0 %v803
        %v842 = vpop.f32.mrb[0].mxu0
        %v843 = vadd.f32 0.0, %v842
        %v844 = vpop.f32.mrb[0].mxu0
        %v845 = vpop.f32.mrb[0].mxu0
        %v846 = vpop.f32.mrb[0].mxu0
        %847 = vdwg.mxu0
        %v848 = vmul.f32 %v843, 0.35355338
        %v849 = vadd.f32 %v848, %v551
        %v850 = vsel %vm688, %v849, -inf
        %851 = vmax.xlane.f32.xlu0 %v850
        %v852 = vpop.xlane.xlu0 %851
        %v853 = vsub.f32 %v849, %v852
        %v854 = vmul.f32 %v853, 1.442695
        %v855 = vpow.pop %v854
        %v856 = vsel %vm688, %v855, 0.0
        %857 = vadd.xlane.f32.xlu0 %v856
        %v858 = vpop.xlane.xlu0 %857
        %v859 = vrcp.pop %v858
        %v860 = vmul.f32 %v855, %v859
        %v861 = vpack.c.bf16 %v860, %v860
        %862 = vrot.lane.b32.xlu0 %v686, 56
        %v863 = vpop.permute.xlu0 %862
        %v865 = vsel %vm688, %v861, 0
        %v868 = vsel %vm692, %v863, 0
        %870 = vmatprep.subr.bf16.mxu0 0
        %871 = vmatpush1.bf16.msra.mxu0 %v868
        %872 = vmatprep.subr.bf16.mxu0 0
        %873 = vmatpush1.bf16.msra.mxu0 0
        %874 = vmatprep.subr.bf16.mxu0 0
        %875 = vmatpush1.bf16.msra.mxu0 0
        %876 = vmatprep.subr.bf16.mxu0 0
        %877 = vmatpush1.bf16.msra.mxu0 0
        %878 = vmatprep.subr.bf16.mxu0 0
        %879 = vmatpush1.bf16.msra.mxu0 0
        %880 = vmatprep.subr.bf16.mxu0 0
        %881 = vmatpush1.bf16.msra.mxu0 0
        %882 = vmatprep.subr.bf16.mxu0 0
        %883 = vmatpush1.bf16.msra.mxu0 0
        %884 = vmatprep.subr.bf16.mxu0 0
        %885 = vmatpush1.bf16.msra.mxu0 0
        %886 = vmatprep.subr.bf16.mxu0 0
        %887 = vmatpush1.bf16.msra.mxu0 0
        %888 = vmatprep.subr.bf16.mxu0 0
        %889 = vmatpush1.bf16.msra.mxu0 0
        %890 = vmatprep.subr.bf16.mxu0 0
        %891 = vmatpush1.bf16.msra.mxu0 0
        %892 = vmatprep.subr.bf16.mxu0 0
        %893 = vmatpush1.bf16.msra.mxu0 0
        %894 = vmatprep.subr.bf16.mxu0 0
        %895 = vmatpush1.bf16.msra.mxu0 0
        %896 = vmatprep.subr.bf16.mxu0 0
        %897 = vmatpush1.bf16.msra.mxu0 0
        %898 = vmatprep.subr.bf16.mxu0 0
        %899 = vmatpush1.bf16.msra.mxu0 0
        %900 = vmatprep.subr.bf16.mxu0 0
        %901 = vmatpush1.bf16.msra.mxu0 0
        %902 = vmatprep.mubr.bf16.mxu0 0
        %903 = vmatmul.mubr.bf16.gmra.mrb[0].mxu0 %v865
        %v904 = vpop.f32.mrb[0].mxu0
        %v905 = vadd.f32 0.0, %v904
        %v906 = vpop.f32.mrb[0].mxu0
        %v907 = vpop.f32.mrb[0].mxu0
        %v908 = vpop.f32.mrb[0].mxu0
        %909 = vdwg.mxu0
        %v910 = vpack.c.bf16 %v672, %v672
        %911 = vrot.lane.b32.xlu0 %v686, 112
        %v912 = vpop.permute.xlu0 %911
        %v914 = vsel %vm688, %v912, 0
        %v917 = vsel %vm692, %v910, 0
        %919 = vmatprep.subr.bf16.mxu0 0
        %920 = vmatpush1.bf16.msra.mxu0 %v917
        %921 = vmatprep.subr.bf16.mxu0 0
        %922 = vmatpush1.bf16.msra.mxu0 0
        %923 = vmatprep.subr.bf16.mxu0 0
        %924 = vmatpush1.bf16.msra.mxu0 0
        %925 = vmatprep.subr.bf16.mxu0 0
        %926 = vmatpush1.bf16.msra.mxu0 0
        %927 = vmatprep.subr.bf16.mxu0 0
        %928 = vmatpush1.bf16.msra.mxu0 0
        %929 = vmatprep.subr.bf16.mxu0 0
        %930 = vmatpush1.bf16.msra.mxu0 0
        %931 = vmatprep.subr.bf16.mxu0 0
        %932 = vmatpush1.bf16.msra.mxu0 0
        %933 = vmatprep.subr.bf16.mxu0 0
        %934 = vmatpush1.bf16.msra.mxu0 0
        %935 = vmatprep.subr.bf16.mxu0 0
        %936 = vmatpush1.bf16.msra.mxu0 0
        %937 = vmatprep.subr.bf16.mxu0 0
        %938 = vmatpush1.bf16.msra.mxu0 0
        %939 = vmatprep.subr.bf16.mxu0 0
        %940 = vmatpush1.bf16.msra.mxu0 0
        %941 = vmatprep.subr.bf16.mxu0 0
        %942 = vmatpush1.bf16.msra.mxu0 0
        %943 = vmatprep.subr.bf16.mxu0 0
        %944 = vmatpush1.bf16.msra.mxu0 0
        %945 = vmatprep.subr.bf16.mxu0 0
        %946 = vmatpush1.bf16.msra.mxu0 0
        %947 = vmatprep.subr.bf16.mxu0 0
        %948 = vmatpush1.bf16.msra.mxu0 0
        %949 = vmatprep.subr.bf16.mxu0 0
        %950 = vmatpush1.bf16.msra.mxu0 0
        %951 = vmatprep.mubr.bf16.mxu0 0
        %952 = vmatmul.mubr.bf16.gmra.mrb[0].mxu0 %v914
        %v953 = vpop.f32.mrb[0].mxu0
        %v954 = vadd.f32 0.0, %v953
        %v955 = vpop.f32.mrb[0].mxu0
        %v956 = vpop.f32.mrb[0].mxu0
        %v957 = vpop.f32.mrb[0].mxu0
        %958 = vdwg.mxu0
        %v959 = vmul.f32 %v954, 0.35355338
        %v960 = vadd.f32 %v959, %v551
        %v961 = vsel %vm688, %v960, -inf
        %962 = vmax.xlane.f32.xlu0 %v961
        %v963 = vpop.xlane.xlu0 %962
        %v964 = vsub.f32 %v960, %v963
        %v965 = vmul.f32 %v964, 1.442695
        %v966 = vpow.pop %v965
        %v967 = vsel %vm688, %v966, 0.0
        %968 = vadd.xlane.f32.xlu0 %v967
        %v969 = vpop.xlane.xlu0 %968
        %v970 = vrcp.pop %v969
        %v971 = vmul.f32 %v966, %v970
        %v972 = vpack.c.bf16 %v971, %v971
        %973 = vrot.lane.b32.xlu0 %v686, 48
        %v974 = vpop.permute.xlu0 %973
        %v976 = vsel %vm688, %v972, 0
        %v979 = vsel %vm692, %v974, 0
        %981 = vmatprep.subr.bf16.mxu0 0
        %982 = vmatpush1.bf16.msra.mxu0 %v979
        %983 = vmatprep.subr.bf16.mxu0 0
        %984 = vmatpush1.bf16.msra.mxu0 0
        %985 = vmatprep.subr.bf16.mxu0 0
        %986 = vmatpush1.bf16.msra.mxu0 0
        %987 = vmatprep.subr.bf16.mxu0 0
        %988 = vmatpush1.bf16.msra.mxu0 0
        %989 = vmatprep.subr.bf16.mxu0 0
        %990 = vmatpush1.bf16.msra.mxu0 0
        %991 = vmatprep.subr.bf16.mxu0 0
        %992 = vmatpush1.bf16.msra.mxu0 0
        %993 = vmatprep.subr.bf16.mxu0 0
        %994 = vmatpush1.bf16.msra.mxu0 0
        %995 = vmatprep.subr.bf16.mxu0 0
        %996 = vmatpush1.bf16.msra.mxu0 0
        %997 = vmatprep.subr.bf16.mxu0 0
        %998 = vmatpush1.bf16.msra.mxu0 0
        %999 = vmatprep.subr.bf16.mxu0 0
        %1000 = vmatpush1.bf16.msra.mxu0 0
        %1001 = vmatprep.subr.bf16.mxu0 0
        %1002 = vmatpush1.bf16.msra.mxu0 0
        %1003 = vmatprep.subr.bf16.mxu0 0
        %1004 = vmatpush1.bf16.msra.mxu0 0
        %1005 = vmatprep.subr.bf16.mxu0 0
        %1006 = vmatpush1.bf16.msra.mxu0 0
        %1007 = vmatprep.subr.bf16.mxu0 0
        %1008 = vmatpush1.bf16.msra.mxu0 0
        %1009 = vmatprep.subr.bf16.mxu0 0
        %1010 = vmatpush1.bf16.msra.mxu0 0
        %1011 = vmatprep.subr.bf16.mxu0 0
        %1012 = vmatpush1.bf16.msra.mxu0 0
        %1013 = vmatprep.mubr.bf16.mxu0 0
        %1014 = vmatmul.mubr.bf16.gmra.mrb[0].mxu0 %v976
        %v1015 = vpop.f32.mrb[0].mxu0
        %v1016 = vadd.f32 0.0, %v1015
        %v1017 = vpop.f32.mrb[0].mxu0
        %v1018 = vpop.f32.mrb[0].mxu0
        %v1019 = vpop.f32.mrb[0].mxu0
        %1020 = vdwg.mxu0
        %v1021 = vpack.c.bf16 %v673, %v673
        %1022 = vrot.lane.b32.xlu0 %v686, 104
        %v1023 = vpop.permute.xlu0 %1022
        %v1025 = vsel %vm688, %v1023, 0
        %v1028 = vsel %vm692, %v1021, 0
        %1030 = vmatprep.subr.bf16.mxu0 0
        %1031 = vmatpush1.bf16.msra.mxu0 %v1028
        %1032 = vmatprep.subr.bf16.mxu0 0
        %1033 = vmatpush1.bf16.msra.mxu0 0
        %1034 = vmatprep.subr.bf16.mxu0 0
        %1035 = vmatpush1.bf16.msra.mxu0 0
        %1036 = vmatprep.subr.bf16.mxu0 0
        %1037 = vmatpush1.bf16.msra.mxu0 0
        %1038 = vmatprep.subr.bf16.mxu0 0
        %1039 = vmatpush1.bf16.msra.mxu0 0
        %1040 = vmatprep.subr.bf16.mxu0 0
        %1041 = vmatpush1.bf16.msra.mxu0 0
        %1042 = vmatprep.subr.bf16.mxu0 0
        %1043 = vmatpush1.bf16.msra.mxu0 0
        %1044 = vmatprep.subr.bf16.mxu0 0
        %1045 = vmatpush1.bf16.msra.mxu0 0
        %1046 = vmatprep.subr.bf16.mxu0 0
        %1047 = vmatpush1.bf16.msra.mxu0 0
        %1048 = vmatprep.subr.bf16.mxu0 0
        %1049 = vmatpush1.bf16.msra.mxu0 0
        %1050 = vmatprep.subr.bf16.mxu0 0
        %1051 = vmatpush1.bf16.msra.mxu0 0
        %1052 = vmatprep.subr.bf16.mxu0 0
        %1053 = vmatpush1.bf16.msra.mxu0 0
        %1054 = vmatprep.subr.bf16.mxu0 0
        %1055 = vmatpush1.bf16.msra.mxu0 0
        %1056 = vmatprep.subr.bf16.mxu0 0
        %1057 = vmatpush1.bf16.msra.mxu0 0
        %1058 = vmatprep.subr.bf16.mxu0 0
        %1059 = vmatpush1.bf16.msra.mxu0 0
        %1060 = vmatprep.subr.bf16.mxu0 0
        %1061 = vmatpush1.bf16.msra.mxu0 0
        %1062 = vmatprep.mubr.bf16.mxu0 0
        %1063 = vmatmul.mubr.bf16.gmra.mrb[0].mxu0 %v1025
        %v1064 = vpop.f32.mrb[0].mxu0
        %v1065 = vadd.f32 0.0, %v1064
        %v1066 = vpop.f32.mrb[0].mxu0
        %v1067 = vpop.f32.mrb[0].mxu0
        %v1068 = vpop.f32.mrb[0].mxu0
        %1069 = vdwg.mxu0
        %v1070 = vmul.f32 %v1065, 0.35355338
        %v1071 = vadd.f32 %v1070, %v551
        %v1072 = vsel %vm688, %v1071, -inf
        %1073 = vmax.xlane.f32.xlu0 %v1072
        %v1074 = vpop.xlane.xlu0 %1073
        %v1075 = vsub.f32 %v1071, %v1074
        %v1076 = vmul.f32 %v1075, 1.442695
        %v1077 = vpow.pop %v1076
        %v1078 = vsel %vm688, %v1077, 0.0
        %1079 = vadd.xlane.f32.xlu0 %v1078
        %v1080 = vpop.xlane.xlu0 %1079
        %v1081 = vrcp.pop %v1080
        %v1082 = vmul.f32 %v1077, %v1081
        %v1083 = vpack.c.bf16 %v1082, %v1082
        %1084 = vrot.lane.b32.xlu0 %v686, 40
        %v1085 = vpop.permute.xlu0 %1084
        %v1087 = vsel %vm688, %v1083, 0
        %v1090 = vsel %vm692, %v1085, 0
        %1092 = vmatprep.subr.bf16.mxu0 0
        %1093 = vmatpush1.bf16.msra.mxu0 %v1090
        %1094 = vmatprep.subr.bf16.mxu0 0
        %1095 = vmatpush1.bf16.msra.mxu0 0
        %1096 = vmatprep.subr.bf16.mxu0 0
        %1097 = vmatpush1.bf16.msra.mxu0 0
        %1098 = vmatprep.subr.bf16.mxu0 0
        %1099 = vmatpush1.bf16.msra.mxu0 0
        %1100 = vmatprep.subr.bf16.mxu0 0
        %1101 = vmatpush1.bf16.msra.mxu0 0
        %1102 = vmatprep.subr.bf16.mxu0 0
        %1103 = vmatpush1.bf16.msra.mxu0 0
        %1104 = vmatprep.subr.bf16.mxu0 0
        %1105 = vmatpush1.bf16.msra.mxu0 0
        %1106 = vmatprep.subr.bf16.mxu0 0
        %1107 = vmatpush1.bf16.msra.mxu0 0
        %1108 = vmatprep.subr.bf16.mxu0 0
        %1109 = vmatpush1.bf16.msra.mxu0 0
        %1110 = vmatprep.subr.bf16.mxu0 0
        %1111 = vmatpush1.bf16.msra.mxu0 0
        %1112 = vmatprep.subr.bf16.mxu0 0
        %1113 = vmatpush1.bf16.msra.mxu0 0
        %1114 = vmatprep.subr.bf16.mxu0 0
        %1115 = vmatpush1.bf16.msra.mxu0 0
        %1116 = vmatprep.subr.bf16.mxu0 0
        %1117 = vmatpush1.bf16.msra.mxu0 0
        %1118 = vmatprep.subr.bf16.mxu0 0
        %1119 = vmatpush1.bf16.msra.mxu0 0
        %1120 = vmatprep.subr.bf16.mxu0 0
        %1121 = vmatpush1.bf16.msra.mxu0 0
        %1122 = vmatprep.subr.bf16.mxu0 0
        %1123 = vmatpush1.bf16.msra.mxu0 0
        %1124 = vmatprep.mubr.bf16.mxu0 0
        %1125 = vmatmul.mubr.bf16.gmra.mrb[0].mxu0 %v1087
        %v1126 = vpop.f32.mrb[0].mxu0
        %v1127 = vadd.f32 0.0, %v1126
        %v1128 = vpop.f32.mrb[0].mxu0
        %v1129 = vpop.f32.mrb[0].mxu0
        %v1130 = vpop.f32.mrb[0].mxu0
        %1131 = vdwg.mxu0
        %1133 = vrot.lane.b32.xlu0 %v905, 8
        %v1134 = vpop.permute.xlu0 %1133
        %1137 = vrot.lane.b32.xlu0 %v1016, 16
        %v1138 = vpop.permute.xlu0 %1137
        %1141 = vrot.lane.b32.xlu0 %v1127, 24
        %v1142 = vpop.permute.xlu0 %1141
        %v1144 = vsel %vm688, %v794, %v1134
        %vm1145 = vcmask 130048
        %v1146 = vsel %vm1145, %v1144, %v1138
        %vm1147 = vcmask 195584
        %v1148 = vsel %vm1147, %v1146, %v1142
        %v1149 = vpack.c.bf16 %v1148, %v1148
        %v1150 = vld [vmem:[%s5] sm:$0xf]
        %v1151 = vld [vmem:[%s5 + $0x4] sm:$0xf]
        %v1152 = vld [vmem:[%s5 + $0x8] sm:$0xf]
        %v1153 = vld [vmem:[%s5 + $0xc] sm:$0xf]
        %v1154 = vld [vmem:[%s6] sm:$0x1]
        %v1156 = vlaneseq
        %v1157 = vshrl.u32 %v1156, 7
        %v1158 = vsub.s32 0, %v1157
        %v1159 = vrot.slane %v1154, %v1158
        %v1165 = vunpack.c.l.b16 %v1150
        %v1166 = vunpack.c.l.b16 %v1151
        %v1167 = vunpack.c.l.b16 %v1152
        %v1168 = vunpack.c.l.b16 %v1153
        %v1169 = vpack.c.b16 %v1166, %v1165
        %v1170 = vpack.c.b16 %v1168, %v1167
        %v1174 = vsel %vm554, %v1149, 0
        %1176 = vmatprep.subr.bf16.mxu0 0
        %1177 = vmatpush1.bf16.msra.mxu0 %v1169
        %1178 = vmatprep.subr.bf16.mxu0 0
        %1179 = vmatpush1.bf16.msra.mxu0 %v1170
        %1180 = vmatprep.subr.bf16.mxu0 0
        %1181 = vmatpush1.bf16.msra.mxu0 0
        %1182 = vmatprep.subr.bf16.mxu0 0
        %1183 = vmatpush1.bf16.msra.mxu0 0
        %1184 = vmatprep.subr.bf16.mxu0 0
        %1185 = vmatpush1.bf16.msra.mxu0 0
        %1186 = vmatprep.subr.bf16.mxu0 0
        %1187 = vmatpush1.bf16.msra.mxu0 0
        %1188 = vmatprep.subr.bf16.mxu0 0
        %1189 = vmatpush1.bf16.msra.mxu0 0
        %1190 = vmatprep.subr.bf16.mxu0 0
        %1191 = vmatpush1.bf16.msra.mxu0 0
        %1192 = vmatprep.subr.bf16.mxu0 0
        %1193 = vmatpush1.bf16.msra.mxu0 0
        %1194 = vmatprep.subr.bf16.mxu0 0
        %1195 = vmatpush1.bf16.msra.mxu0 0
        %1196 = vmatprep.subr.bf16.mxu0 0
        %1197 = vmatpush1.bf16.msra.mxu0 0
        %1198 = vmatprep.subr.bf16.mxu0 0
        %1199 = vmatpush1.bf16.msra.mxu0 0
        %1200 = vmatprep.subr.bf16.mxu0 0
        %1201 = vmatpush1.bf16.msra.mxu0 0
        %1202 = vmatprep.subr.bf16.mxu0 0
        %1203 = vmatpush1.bf16.msra.mxu0 0
        %1204 = vmatprep.subr.bf16.mxu0 0
        %1205 = vmatpush1.bf16.msra.mxu0 0
        %1206 = vmatprep.subr.bf16.mxu0 0
        %1207 = vmatpush1.bf16.msra.mxu0 0
        %1208 = vmatprep.mubr.bf16.mxu0 0
        %1209 = vmatmul.mubr.bf16.gmra.mrb[0].mxu0 %v1174
        %v1210 = vpop.f32.mrb[0].mxu0
        %v1211 = vadd.f32 %v1159, %v1210
        %v1212 = vpop.f32.mrb[0].mxu0
        %v1213 = vpop.f32.mrb[0].mxu0
        %v1214 = vpop.f32.mrb[0].mxu0
        %1215 = vdwg.mxu0
        %v1216 = vadd.f32 %v545, %v1211
        %v1217 = vld [vmem:[%s7] sm:$0x1]
        %v1218 = vld [vmem:[%s8] sm:$0x1]
        %v1219 = vsel %vm554, %v1216, 0.0
        %1220 = vadd.xlane.f32.xlu0 %v1219
        %v1221 = vpop.xlane.xlu0 %1220
        %v1222 = vmul.f32 %v1221, %v558
        %v1223 = vsub.f32 %v1216, %v1222
        %v1224 = vmul.f32 %v1223, %v1223
        %v1225 = vsel %vm554, %v1224, 0.0
        %1226 = vadd.xlane.f32.xlu0 %v1225
        %v1227 = vpop.xlane.xlu0 %1226
        %v1228 = vmul.f32 %v1227, %v558
        %v1229 = vadd.f32 %v1228, 1e-05
        %v1230 = vrsqrt.pop %v1229
        %v1231 = vmul.f32 %v1223, %v1230
        %v1233 = vlaneseq
        %v1234 = vshrl.u32 %v1233, 7
        %v1235 = vsub.s32 0, %v1234
        %v1236 = vrot.slane %v1217, %v1235
        %v1238 = vmul.f32 %v1231, %v1236
        %v1240 = vlaneseq
        %v1241 = vshrl.u32 %v1240, 7
        %v1242 = vsub.s32 0, %v1241
        %v1243 = vrot.slane %v1218, %v1242
        %v1245 = vadd.f32 %v1238, %v1243
        %v1246 = vpack.c.bf16 %v1245, %v1245
        %v1247 = vld [vmem:[%s9] sm:$0xf]
        %v1248 = vld [vmem:[%s9 + $0x4] sm:$0xf]
        %v1249 = vld [vmem:[%s9 + $0x8] sm:$0xf]
        %v1250 = vld [vmem:[%s9 + $0xc] sm:$0xf]
        %v1251 = vld [vmem:[%s10] sm:$0x1]
        %v1253 = vlaneseq
        %v1254 = vshrl.u32 %v1253, 7
        %v1255 = vsub.s32 0, %v1254
        %v1256 = vrot.slane %v1251, %v1255
        %v1262 = vunpack.c.l.b16 %v1247
        %v1263 = vunpack.c.l.b16 %v1248
        %v1264 = vunpack.c.l.b16 %v1249
        %v1265 = vunpack.c.l.b16 %v1250
        %v1266 = vpack.c.b16 %v1263, %v1262
        %v1267 = vpack.c.b16 %v1265, %v1264
        %v1271 = vsel %vm554, %v1246, 0
        %1273 = vmatprep.subr.bf16.mxu0 0
        %1274 = vmatpush1.bf16.msra.mxu0 %v1266
        %1275 = vmatprep.subr.bf16.mxu0 0
        %1276 = vmatpush1.bf16.msra.mxu0 %v1267
        %1277 = vmatprep.subr.bf16.mxu0 0
        %1278 = vmatpush1.bf16.msra.mxu0 0
        %1279 = vmatprep.subr.bf16.mxu0 0
        %1280 = vmatpush1.bf16.msra.mxu0 0
        %1281 = vmatprep.subr.bf16.mxu0 0
        %1282 = vmatpush1.bf16.msra.mxu0 0
        %1283 = vmatprep.subr.bf16.mxu0 0
        %1284 = vmatpush1.bf16.msra.mxu0 0
        %1285 = vmatprep.subr.bf16.mxu0 0
        %1286 = vmatpush1.bf16.msra.mxu0 0
        %1287 = vmatprep.subr.bf16.mxu0 0
        %1288 = vmatpush1.bf16.msra.mxu0 0
        %1289 = vmatprep.subr.bf16.mxu0 0
        %1290 = vmatpush1.bf16.msra.mxu0 0
        %1291 = vmatprep.subr.bf16.mxu0 0
        %1292 = vmatpush1.bf16.msra.mxu0 0
        %1293 = vmatprep.subr.bf16.mxu0 0
        %1294 = vmatpush1.bf16.msra.mxu0 0
        %1295 = vmatprep.subr.bf16.mxu0 0
        %1296 = vmatpush1.bf16.msra.mxu0 0
        %1297 = vmatprep.subr.bf16.mxu0 0
        %1298 = vmatpush1.bf16.msra.mxu0 0
        %1299 = vmatprep.subr.bf16.mxu0 0
        %1300 = vmatpush1.bf16.msra.mxu0 0
        %1301 = vmatprep.subr.bf16.mxu0 0
        %1302 = vmatpush1.bf16.msra.mxu0 0
        %1303 = vmatprep.subr.bf16.mxu0 0
        %1304 = vmatpush1.bf16.msra.mxu0 0
        %1305 = vmatprep.mubr.bf16.mxu0 0
        %1306 = vmatmul.mubr.bf16.gmra.mrb[0].mxu0 %v1271
        %v1307 = vpop.f32.mrb[0].mxu0
        %v1308 = vadd.f32 %v1256, %v1307
        %v1309 = vpop.f32.mrb[0].mxu0
        %v1310 = vpop.f32.mrb[0].mxu0
        %v1311 = vpop.f32.mrb[0].mxu0
        %1312 = vdwg.mxu0
        %v1313 = vmul.f32 %v1308, 0.5
        %v1314 = vmul.f32 %v1308, 0.044715
        %v1315 = vmul.f32 %v1314, %v1308
        %v1316 = vmul.f32 %v1315, %v1308
        %v1317 = vadd.f32 %v1308, %v1316
        %v1318 = vmul.f32 %v1317, 0.7978846
        %v1319 = vtanh.pop %v1318
        %v1320 = vadd.f32 %v1319, 1.0
        %v1321 = vmul.f32 %v1313, %v1320
        %v1322 = vpack.c.bf16 %v1321, %v1321
        %v1323 = vld [vmem:[%s11] sm:$0xf]
        %v1324 = vld [vmem:[%s11 + $0x4] sm:$0xf]
        %v1325 = vld [vmem:[%s11 + $0x8] sm:$0xf]
        %v1326 = vld [vmem:[%s11 + $0xc] sm:$0xf]
        %v1327 = vld [vmem:[%s11 + $0x10] sm:$0xf]
        %v1328 = vld [vmem:[%s11 + $0x14] sm:$0xf]
        %v1329 = vld [vmem:[%s11 + $0x18] sm:$0xf]
        %v1330 = vld [vmem:[%s11 + $0x1c] sm:$0xf]
        %v1331 = vld [vmem:[%s11 + $0x20] sm:$0xf]
        %v1332 = vld [vmem:[%s11 + $0x24] sm:$0xf]
        %v1333 = vld [vmem:[%s11 + $0x28] sm:$0xf]
        %v1334 = vld [vmem:[%s11 + $0x2c] sm:$0xf]
        %v1335 = vld [vmem:[%s11 + $0x30] sm:$0xf]
        %v1336 = vld [vmem:[%s11 + $0x34] sm:$0xf]
        %v1337 = vld [vmem:[%s11 + $0x38] sm:$0xf]
        %v1338 = vld [vmem:[%s11 + $0x3c] sm:$0xf]
        %v1339 = vld [vmem:[%s12] sm:$0x1]
        %v1341 = vlaneseq
        %v1342 = vshrl.u32 %v1341, 7
        %v1343 = vsub.s32 0, %v1342
        %v1344 = vrot.slane %v1339, %v1343
        %v1362 = vunpack.c.l.b16 %v1323
        %v1363 = vunpack.c.l.b16 %v1324
        %v1364 = vunpack.c.l.b16 %v1325
        %v1365 = vunpack.c.l.b16 %v1326
        %v1366 = vunpack.c.l.b16 %v1327
        %v1367 = vunpack.c.l.b16 %v1328
        %v1368 = vunpack.c.l.b16 %v1329
        %v1369 = vunpack.c.l.b16 %v1330
        %v1370 = vunpack.c.l.b16 %v1331
        %v1371 = vunpack.c.l.b16 %v1332
        %v1372 = vunpack.c.l.b16 %v1333
        %v1373 = vunpack.c.l.b16 %v1334
        %v1374 = vunpack.c.l.b16 %v1335
        %v1375 = vunpack.c.l.b16 %v1336
        %v1376 = vunpack.c.l.b16 %v1337
        %v1377 = vunpack.c.l.b16 %v1338
        %v1378 = vpack.c.b16 %v1363, %v1362
        %v1379 = vpack.c.b16 %v1365, %v1364
        %v1380 = vpack.c.b16 %v1367, %v1366
        %v1381 = vpack.c.b16 %v1369, %v1368
        %v1382 = vpack.c.b16 %v1371, %v1370
        %v1383 = vpack.c.b16 %v1373, %v1372
        %v1384 = vpack.c.b16 %v1375, %v1374
        %v1385 = vpack.c.b16 %v1377, %v1376
        %1394 = vmatprep.subr.bf16.mxu0 0
        %1395 = vmatpush1.bf16.msra.mxu0 %v1378
        %1396 = vmatprep.subr.bf16.mxu0 0
        %1397 = vmatpush1.bf16.msra.mxu0 %v1379
        %1398 = vmatprep.subr.bf16.mxu0 0
        %1399 = vmatpush1.bf16.msra.mxu0 %v1380
        %1400 = vmatprep.subr.bf16.mxu0 0
        %1401 = vmatpush1.bf16.msra.mxu0 %v1381
        %1402 = vmatprep.subr.bf16.mxu0 0
        %1403 = vmatpush1.bf16.msra.mxu0 %v1382
        %1404 = vmatprep.subr.bf16.mxu0 0
        %1405 = vmatpush1.bf16.msra.mxu0 %v1383
        %1406 = vmatprep.subr.bf16.mxu0 0
        %1407 = vmatpush1.bf16.msra.mxu0 %v1384
        %1408 = vmatprep.subr.bf16.mxu0 0
        %1409 = vmatpush1.bf16.msra.mxu0 %v1385
        %1410 = vmatprep.subr.bf16.mxu0 0
        %1411 = vmatpush1.bf16.msra.mxu0 0
        %1412 = vmatprep.subr.bf16.mxu0 0
        %1413 = vmatpush1.bf16.msra.mxu0 0
        %1414 = vmatprep.subr.bf16.mxu0 0
        %1415 = vmatpush1.bf16.msra.mxu0 0
        %1416 = vmatprep.subr.bf16.mxu0 0
        %1417 = vmatpush1.bf16.msra.mxu0 0
        %1418 = vmatprep.subr.bf16.mxu0 0
        %1419 = vmatpush1.bf16.msra.mxu0 0
        %1420 = vmatprep.subr.bf16.mxu0 0
        %1421 = vmatpush1.bf16.msra.mxu0 0
        %1422 = vmatprep.subr.bf16.mxu0 0
        %1423 = vmatpush1.bf16.msra.mxu0 0
        %1424 = vmatprep.subr.bf16.mxu0 0
        %1425 = vmatpush1.bf16.msra.mxu0 0
        %1426 = vmatprep.mubr.bf16.mxu0 0
        %1427 = vmatmul.mubr.bf16.gmra.mrb[0].mxu0 %v1322
        %v1428 = vpop.f32.mrb[0].mxu0
        %v1429 = vadd.f32 %v1344, %v1428
        %v1430 = vpop.f32.mrb[0].mxu0
        %v1431 = vpop.f32.mrb[0].mxu0
        %v1432 = vpop.f32.mrb[0].mxu0
        %1433 = vdwg.mxu0
        %v1434 = vadd.f32 %v1216, %v1429
        %s1435 = scalar_lea.vmem %s1, 1
        %v1436 = vld [vmem:[%s1435] sm:$0x1]
        %s1437 = scalar_lea.vmem %s2, 1
        %v1438 = vld [vmem:[%s1437] sm:$0x1]
        %v1439 = vsel %vm554, %v1434, 0.0
        %1440 = vadd.xlane.f32.xlu0 %v1439
        %v1441 = vpop.xlane.xlu0 %1440
        %v1442 = vmul.f32 %v1441, %v558
        %v1443 = vsub.f32 %v1434, %v1442
        %v1444 = vmul.f32 %v1443, %v1443
        %v1445 = vsel %vm554, %v1444, 0.0
        %1446 = vadd.xlane.f32.xlu0 %v1445
        %v1447 = vpop.xlane.xlu0 %1446
        %v1448 = vmul.f32 %v1447, %v558
        %v1449 = vadd.f32 %v1448, 1e-05
        %v1450 = vrsqrt.pop %v1449
        %v1451 = vmul.f32 %v1443, %v1450
        %v1453 = vlaneseq
        %v1454 = vshrl.u32 %v1453, 7
        %v1455 = vsub.s32 0, %v1454
        %v1456 = vrot.slane %v1436, %v1455
        %v1458 = vmul.f32 %v1451, %v1456
        %v1460 = vlaneseq
        %v1461 = vshrl.u32 %v1460, 7
        %v1462 = vsub.s32 0, %v1461
        %v1463 = vrot.slane %v1438, %v1462
        %v1465 = vadd.f32 %v1458, %v1463
        %v1466 = vpack.c.bf16 %v1465, %v1465
        %s1467 = scalar_lea.vmem %s3, 16
        %v1468 = vld [vmem:[%s1467] sm:$0xf]
        %v1469 = vld [vmem:[%s1467 + $0x4] sm:$0xf]
        %v1470 = vld [vmem:[%s1467 + $0x8] sm:$0xf]
        %v1471 = vld [vmem:[%s1467 + $0xc] sm:$0xf]
        %s1472 = scalar_lea.vmem %s4, 1
        %v1473 = vld [vmem:[%s1472] sm:$0x1]
        %v1475 = vlaneseq
        %v1476 = vshrl.u32 %v1475, 7
        %v1477 = vsub.s32 0, %v1476
        %v1478 = vrot.slane %v1473, %v1477
        %v1484 = vunpack.c.l.b16 %v1468
        %v1485 = vunpack.c.l.b16 %v1469
        %v1486 = vunpack.c.l.b16 %v1470
        %v1487 = vunpack.c.l.b16 %v1471
        %v1488 = vpack.c.b16 %v1485, %v1484
        %v1489 = vpack.c.b16 %v1487, %v1486
        %v1493 = vsel %vm554, %v1466, 0
        %1495 = vmatprep.subr.bf16.mxu0 0
        %1496 = vmatpush1.bf16.msra.mxu0 %v1488
        %1497 = vmatprep.subr.bf16.mxu0 0
        %1498 = vmatpush1.bf16.msra.mxu0 %v1489
        %1499 = vmatprep.subr.bf16.mxu0 0
        %1500 = vmatpush1.bf16.msra.mxu0 0
        %1501 = vmatprep.subr.bf16.mxu0 0
        %1502 = vmatpush1.bf16.msra.mxu0 0
        %1503 = vmatprep.subr.bf16.mxu0 0
        %1504 = vmatpush1.bf16.msra.mxu0 0
        %1505 = vmatprep.subr.bf16.mxu0 0
        %1506 = vmatpush1.bf16.msra.mxu0 0
        %1507 = vmatprep.subr.bf16.mxu0 0
        %1508 = vmatpush1.bf16.msra.mxu0 0
        %1509 = vmatprep.subr.bf16.mxu0 0
        %1510 = vmatpush1.bf16.msra.mxu0 0
        %1511 = vmatprep.subr.bf16.mxu0 0
        %1512 = vmatpush1.bf16.msra.mxu0 0
        %1513 = vmatprep.subr.bf16.mxu0 0
        %1514 = vmatpush1.bf16.msra.mxu0 0
        %1515 = vmatprep.subr.bf16.mxu0 0
        %1516 = vmatpush1.bf16.msra.mxu0 0
        %1517 = vmatprep.subr.bf16.mxu0 0
        %1518 = vmatpush1.bf16.msra.mxu0 0
        %1519 = vmatprep.subr.bf16.mxu0 0
        %1520 = vmatpush1.bf16.msra.mxu0 0
        %1521 = vmatprep.subr.bf16.mxu0 0
        %1522 = vmatpush1.bf16.msra.mxu0 0
        %1523 = vmatprep.subr.bf16.mxu0 0
        %1524 = vmatpush1.bf16.msra.mxu0 0
        %1525 = vmatprep.subr.bf16.mxu0 0
        %1526 = vmatpush1.bf16.msra.mxu0 0
        %1527 = vmatprep.mubr.bf16.mxu0 0
        %1528 = vmatmul.mubr.bf16.gmra.mrb[0].mxu0 %v1493
        %v1529 = vpop.f32.mrb[0].mxu0
        %v1530 = vadd.f32 %v1478, %v1529
        %v1531 = vpop.f32.mrb[0].mxu0
        %v1532 = vpop.f32.mrb[0].mxu0
        %v1533 = vpop.f32.mrb[0].mxu0
        %1534 = vdwg.mxu0
        %1536 = vrot.lane.b32.xlu0 %v1530, 96
        %v1537 = vpop.permute.xlu0 %1536
        %1539 = vxpose.xlu0.b32.start [1/16] %v1537, 128
        %1540 = vxpose.xlu0.b32.cont [2/16] 0.0, 128
        %1541 = vxpose.xlu0.b32.cont [3/16] 0.0, 128
        %1542 = vxpose.xlu0.b32.cont [4/16] 0.0, 128
        %1543 = vxpose.xlu0.b32.cont [5/16] 0.0, 128
        %1544 = vxpose.xlu0.b32.cont [6/16] 0.0, 128
        %1545 = vxpose.xlu0.b32.cont [7/16] 0.0, 128
        %1546 = vxpose.xlu0.b32.cont [8/16] 0.0, 128
        %1547 = vxpose.xlu0.b32.cont [9/16] 0.0, 128
        %1548 = vxpose.xlu0.b32.cont [10/16] 0.0, 128
        %1549 = vxpose.xlu0.b32.cont [11/16] 0.0, 128
        %1550 = vxpose.xlu0.b32.cont [12/16] 0.0, 128
        %1551 = vxpose.xlu0.b32.cont [13/16] 0.0, 128
        %1552 = vxpose.xlu0.b32.cont [14/16] 0.0, 128
        %1553 = vxpose.xlu0.b32.cont [15/16] 0.0, 128
        %1554 = vxpose.xlu0.b32.end [16/16] 0.0, 128
        %v1555 = vpop.trf.xlu0
        %v1556 = vpop.trf.xlu0
        %v1557 = vpop.trf.xlu0
        %v1558 = vpop.trf.xlu0
        %v1559 = vpop.trf.xlu0
        %v1560 = vpop.trf.xlu0
        %v1561 = vpop.trf.xlu0
        %v1562 = vpop.trf.xlu0
        %v1563 = vpop.trf.xlu0
        %v1564 = vpop.trf.xlu0
        %v1565 = vpop.trf.xlu0
        %v1566 = vpop.trf.xlu0
        %v1567 = vpop.trf.xlu0
        %v1568 = vpop.trf.xlu0
        %v1569 = vpop.trf.xlu0
        %v1570 = vpop.trf.xlu0
        %v1571 = vpack.c.bf16 %v1530, %v1530
        %v1572 = vpack.c.bf16 %v1555, %v1555
        %v1574 = vsel %vm688, %v1571, 0
        %v1577 = vsel %vm692, %v1572, 0
        %1579 = vmatprep.subr.bf16.mxu0 0
        %1580 = vmatpush1.bf16.msra.mxu0 %v1577
        %1581 = vmatprep.subr.bf16.mxu0 0
        %1582 = vmatpush1.bf16.msra.mxu0 0
        %1583 = vmatprep.subr.bf16.mxu0 0
        %1584 = vmatpush1.bf16.msra.mxu0 0
        %1585 = vmatprep.subr.bf16.mxu0 0
        %1586 = vmatpush1.bf16.msra.mxu0 0
        %1587 = vmatprep.subr.bf16.mxu0 0
        %1588 = vmatpush1.bf16.msra.mxu0 0
        %1589 = vmatprep.subr.bf16.mxu0 0
        %1590 = vmatpush1.bf16.msra.mxu0 0
        %1591 = vmatprep.subr.bf16.mxu0 0
        %1592 = vmatpush1.bf16.msra.mxu0 0
        %1593 = vmatprep.subr.bf16.mxu0 0
        %1594 = vmatpush1.bf16.msra.mxu0 0
        %1595 = vmatprep.subr.bf16.mxu0 0
        %1596 = vmatpush1.bf16.msra.mxu0 0
        %1597 = vmatprep.subr.bf16.mxu0 0
        %1598 = vmatpush1.bf16.msra.mxu0 0
        %1599 = vmatprep.subr.bf16.mxu0 0
        %1600 = vmatpush1.bf16.msra.mxu0 0
        %1601 = vmatprep.subr.bf16.mxu0 0
        %1602 = vmatpush1.bf16.msra.mxu0 0
        %1603 = vmatprep.subr.bf16.mxu0 0
        %1604 = vmatpush1.bf16.msra.mxu0 0
        %1605 = vmatprep.subr.bf16.mxu0 0
        %1606 = vmatpush1.bf16.msra.mxu0 0
        %1607 = vmatprep.subr.bf16.mxu0 0
        %1608 = vmatpush1.bf16.msra.mxu0 0
        %1609 = vmatprep.subr.bf16.mxu0 0
        %1610 = vmatpush1.bf16.msra.mxu0 0
        %1611 = vmatprep.mubr.bf16.mxu0 0
        %1612 = vmatmul.mubr.bf16.gmra.mrb[0].mxu0 %v1574
        %v1613 = vpop.f32.mrb[0].mxu0
        %v1614 = vadd.f32 0.0, %v1613
        %v1615 = vpop.f32.mrb[0].mxu0
        %v1616 = vpop.f32.mrb[0].mxu0
        %v1617 = vpop.f32.mrb[0].mxu0
        %1618 = vdwg.mxu0
        %v1619 = vmul.f32 %v1614, 0.35355338
        %v1620 = vadd.f32 %v1619, %v551
        %v1621 = vsel %vm688, %v1620, -inf
        %1622 = vmax.xlane.f32.xlu0 %v1621
        %v1623 = vpop.xlane.xlu0 %1622
        %v1624 = vsub.f32 %v1620, %v1623
        %v1625 = vmul.f32 %v1624, 1.442695
        %v1626 = vpow.pop %v1625
        %v1627 = vsel %vm688, %v1626, 0.0
        %1628 = vadd.xlane.f32.xlu0 %v1627
        %v1629 = vpop.xlane.xlu0 %1628
        %v1630 = vrcp.pop %v1629
        %v1631 = vmul.f32 %v1626, %v1630
        %v1632 = vpack.c.bf16 %v1631, %v1631
        %1634 = vrot.lane.b32.xlu0 %v1571, 64
        %v1635 = vpop.permute.xlu0 %1634
        %v1637 = vsel %vm688, %v1632, 0
        %v1640 = vsel %vm692, %v1635, 0
        %1642 = vmatprep.subr.bf16.mxu0 0
        %1643 = vmatpush1.bf16.msra.mxu0 %v1640
        %1644 = vmatprep.subr.bf16.mxu0 0
        %1645 = vmatpush1.bf16.msra.mxu0 0
        %1646 = vmatprep.subr.bf16.mxu0 0
        %1647 = vmatpush1.bf16.msra.mxu0 0
        %1648 = vmatprep.subr.bf16.mxu0 0
        %1649 = vmatpush1.bf16.msra.mxu0 0
        %1650 = vmatprep.subr.bf16.mxu0 0
        %1651 = vmatpush1.bf16.msra.mxu0 0
        %1652 = vmatprep.subr.bf16.mxu0 0
        %1653 = vmatpush1.bf16.msra.mxu0 0
        %1654 = vmatprep.subr.bf16.mxu0 0
        %1655 = vmatpush1.bf16.msra.mxu0 0
        %1656 = vmatprep.subr.bf16.mxu0 0
        %1657 = vmatpush1.bf16.msra.mxu0 0
        %1658 = vmatprep.subr.bf16.mxu0 0
        %1659 = vmatpush1.bf16.msra.mxu0 0
        %1660 = vmatprep.subr.bf16.mxu0 0
        %1661 = vmatpush1.bf16.msra.mxu0 0
        %1662 = vmatprep.subr.bf16.mxu0 0
        %1663 = vmatpush1.bf16.msra.mxu0 0
        %1664 = vmatprep.subr.bf16.mxu0 0
        %1665 = vmatpush1.bf16.msra.mxu0 0
        %1666 = vmatprep.subr.bf16.mxu0 0
        %1667 = vmatpush1.bf16.msra.mxu0 0
        %1668 = vmatprep.subr.bf16.mxu0 0
        %1669 = vmatpush1.bf16.msra.mxu0 0
        %1670 = vmatprep.subr.bf16.mxu0 0
        %1671 = vmatpush1.bf16.msra.mxu0 0
        %1672 = vmatprep.subr.bf16.mxu0 0
        %1673 = vmatpush1.bf16.msra.mxu0 0
        %1674 = vmatprep.mubr.bf16.mxu0 0
        %1675 = vmatmul.mubr.bf16.gmra.mrb[0].mxu0 %v1637
        %v1676 = vpop.f32.mrb[0].mxu0
        %v1677 = vadd.f32 0.0, %v1676
        %v1678 = vpop.f32.mrb[0].mxu0
        %v1679 = vpop.f32.mrb[0].mxu0
        %v1680 = vpop.f32.mrb[0].mxu0
        %1681 = vdwg.mxu0
        %v1682 = vpack.c.bf16 %v1556, %v1556
        %1683 = vrot.lane.b32.xlu0 %v1571, 120
        %v1684 = vpop.permute.xlu0 %1683
        %v1686 = vsel %vm688, %v1684, 0
        %v1689 = vsel %vm692, %v1682, 0
        %1691 = vmatprep.subr.bf16.mxu0 0
        %1692 = vmatpush1.bf16.msra.mxu0 %v1689
        %1693 = vmatprep.subr.bf16.mxu0 0
        %1694 = vmatpush1.bf16.msra.mxu0 0
        %1695 = vmatprep.subr.bf16.mxu0 0
        %1696 = vmatpush1.bf16.msra.mxu0 0
        %1697 = vmatprep.subr.bf16.mxu0 0
        %1698 = vmatpush1.bf16.msra.mxu0 0
        %1699 = vmatprep.subr.bf16.mxu0 0
        %1700 = vmatpush1.bf16.msra.mxu0 0
        %1701 = vmatprep.subr.bf16.mxu0 0
        %1702 = vmatpush1.bf16.msra.mxu0 0
        %1703 = vmatprep.subr.bf16.mxu0 0
        %1704 = vmatpush1.bf16.msra.mxu0 0
        %1705 = vmatprep.subr.bf16.mxu0 0
        %1706 = vmatpush1.bf16.msra.mxu0 0
        %1707 = vmatprep.subr.bf16.mxu0 0
        %1708 = vmatpush1.bf16.msra.mxu0 0
        %1709 = vmatprep.subr.bf16.mxu0 0
        %1710 = vmatpush1.bf16.msra.mxu0 0
        %1711 = vmatprep.subr.bf16.mxu0 0
        %1712 = vmatpush1.bf16.msra.mxu0 0
        %1713 = vmatprep.subr.bf16.mxu0 0
        %1714 = vmatpush1.bf16.msra.mxu0 0
        %1715 = vmatprep.subr.bf16.mxu0 0
        %1716 = vmatpush1.bf16.msra.mxu0 0
        %1717 = vmatprep.subr.bf16.mxu0 0
        %1718 = vmatpush1.bf16.msra.mxu0 0
        %1719 = vmatprep.subr.bf16.mxu0 0
        %1720 = vmatpush1.bf16.msra.mxu0 0
        %1721 = vmatprep.subr.bf16.mxu0 0
        %1722 = vmatpush1.bf16.msra.mxu0 0
        %1723 = vmatprep.mubr.bf16.mxu0 0
        %1724 = vmatmul.mubr.bf16.gmra.mrb[0].mxu0 %v1686
        %v1725 = vpop.f32.mrb[0].mxu0
        %v1726 = vadd.f32 0.0, %v1725
        %v1727 = vpop.f32.mrb[0].mxu0
        %v1728 = vpop.f32.mrb[0].mxu0
        %v1729 = vpop.f32.mrb[0].mxu0
        %1730 = vdwg.mxu0
        %v1731 = vmul.f32 %v1726, 0.35355338
        %v1732 = vadd.f32 %v1731, %v551
        %v1733 = vsel %vm688, %v1732, -inf
        %1734 = vmax.xlane.f32.xlu0 %v1733
        %v1735 = vpop.xlane.xlu0 %1734
        %v1736 = vsub.f32 %v1732, %v1735
        %v1737 = vmul.f32 %v1736, 1.442695
        %v1738 = vpow.pop %v1737
        %v1739 = vsel %vm688, %v1738, 0.0
        %1740 = vadd.xlane.f32.xlu0 %v1739
        %v1741 = vpop.xlane.xlu0 %1740
        %v1742 = vrcp.pop %v1741
        %v1743 = vmul.f32 %v1738, %v1742
        %v1744 = vpack.c.bf16 %v1743, %v1743
        %1745 = vrot.lane.b32.xlu0 %v1571, 56
        %v1746 = vpop.permute.xlu0 %1745
        %v1748 = vsel %vm688, %v1744, 0
        %v1751 = vsel %vm692, %v1746, 0
        %1753 = vmatprep.subr.bf16.mxu0 0
        %1754 = vmatpush1.bf16.msra.mxu0 %v1751
        %1755 = vmatprep.subr.bf16.mxu0 0
        %1756 = vmatpush1.bf16.msra.mxu0 0
        %1757 = vmatprep.subr.bf16.mxu0 0
        %1758 = vmatpush1.bf16.msra.mxu0 0
        %1759 = vmatprep.subr.bf16.mxu0 0
        %1760 = vmatpush1.bf16.msra.mxu0 0
        %1761 = vmatprep.subr.bf16.mxu0 0
        %1762 = vmatpush1.bf16.msra.mxu0 0
        %1763 = vmatprep.subr.bf16.mxu0 0
        %1764 = vmatpush1.bf16.msra.mxu0 0
        %1765 = vmatprep.subr.bf16.mxu0 0
        %1766 = vmatpush1.bf16.msra.mxu0 0
        %1767 = vmatprep.subr.bf16.mxu0 0
        %1768 = vmatpush1.bf16.msra.mxu0 0
        %1769 = vmatprep.subr.bf16.mxu0 0
        %1770 = vmatpush1.bf16.msra.mxu0 0
        %1771 = vmatprep.subr.bf16.mxu0 0
        %1772 = vmatpush1.bf16.msra.mxu0 0
        %1773 = vmatprep.subr.bf16.mxu0 0
        %1774 = vmatpush1.bf16.msra.mxu0 0
        %1775 = vmatprep.subr.bf16.mxu0 0
        %1776 = vmatpush1.bf16.msra.mxu0 0
        %1777 = vmatprep.subr.bf16.mxu0 0
        %1778 = vmatpush1.bf16.msra.mxu0 0
        %1779 = vmatprep.subr.bf16.mxu0 0
        %1780 = vmatpush1.bf16.msra.mxu0 0
        %1781 = vmatprep.subr.bf16.mxu0 0
        %1782 = vmatpush1.bf16.msra.mxu0 0
        %1783 = vmatprep.subr.bf16.mxu0 0
        %1784 = vmatpush1.bf16.msra.mxu0 0
        %1785 = vmatprep.mubr.bf16.mxu0 0
        %1786 = vmatmul.mubr.bf16.gmra.mrb[0].mxu0 %v1748
        %v1787 = vpop.f32.mrb[0].mxu0
        %v1788 = vadd.f32 0.0, %v1787
        %v1789 = vpop.f32.mrb[0].mxu0
        %v1790 = vpop.f32.mrb[0].mxu0
        %v1791 = vpop.f32.mrb[0].mxu0
        %1792 = vdwg.mxu0
        %v1793 = vpack.c.bf16 %v1557, %v1557
        %1794 = vrot.lane.b32.xlu0 %v1571, 112
        %v1795 = vpop.permute.xlu0 %1794
        %v1797 = vsel %vm688, %v1795, 0
        %v1800 = vsel %vm692, %v1793, 0
        %1802 = vmatprep.subr.bf16.mxu0 0
        %1803 = vmatpush1.bf16.msra.mxu0 %v1800
        %1804 = vmatprep.subr.bf16.mxu0 0
        %1805 = vmatpush1.bf16.msra.mxu0 0
        %1806 = vmatprep.subr.bf16.mxu0 0
        %1807 = vmatpush1.bf16.msra.mxu0 0
        %1808 = vmatprep.subr.bf16.mxu0 0
        %1809 = vmatpush1.bf16.msra.mxu0 0
        %1810 = vmatprep.subr.bf16.mxu0 0
        %1811 = vmatpush1.bf16.msra.mxu0 0
        %1812 = vmatprep.subr.bf16.mxu0 0
        %1813 = vmatpush1.bf16.msra.mxu0 0
        %1814 = vmatprep.subr.bf16.mxu0 0
        %1815 = vmatpush1.bf16.msra.mxu0 0
        %1816 = vmatprep.subr.bf16.mxu0 0
        %1817 = vmatpush1.bf16.msra.mxu0 0
        %1818 = vmatprep.subr.bf16.mxu0 0
        %1819 = vmatpush1.bf16.msra.mxu0 0
        %1820 = vmatprep.subr.bf16.mxu0 0
        %1821 = vmatpush1.bf16.msra.mxu0 0
        %1822 = vmatprep.subr.bf16.mxu0 0
        %1823 = vmatpush1.bf16.msra.mxu0 0
        %1824 = vmatprep.subr.bf16.mxu0 0
        %1825 = vmatpush1.bf16.msra.mxu0 0
        %1826 = vmatprep.subr.bf16.mxu0 0
        %1827 = vmatpush1.bf16.msra.mxu0 0
        %1828 = vmatprep.subr.bf16.mxu0 0
        %1829 = vmatpush1.bf16.msra.mxu0 0
        %1830 = vmatprep.subr.bf16.mxu0 0
        %1831 = vmatpush1.bf16.msra.mxu0 0
        %1832 = vmatprep.subr.bf16.mxu0 0
        %1833 = vmatpush1.bf16.msra.mxu0 0
        %1834 = vmatprep.mubr.bf16.mxu0 0
        %1835 = vmatmul.mubr.bf16.gmra.mrb[0].mxu0 %v1797
        %v1836 = vpop.f32.mrb[0].mxu0
        %v1837 = vadd.f32 0.0, %v1836
        %v1838 = vpop.f32.mrb[0].mxu0
        %v1839 = vpop.f32.mrb[0].mxu0
        %v1840 = vpop.f32.mrb[0].mxu0
        %1841 = vdwg.mxu0
        %v1842 = vmul.f32 %v1837, 0.35355338
        %v1843 = vadd.f32 %v1842, %v551
        %v1844 = vsel %vm688, %v1843, -inf
        %1845 = vmax.xlane.f32.xlu0 %v1844
        %v1846 = vpop.xlane.xlu0 %1845
        %v1847 = vsub.f32 %v1843, %v1846
        %v1848 = vmul.f32 %v1847, 1.442695
        %v1849 = vpow.pop %v1848
        %v1850 = vsel %vm688, %v1849, 0.0
        %1851 = vadd.xlane.f32.xlu0 %v1850
        %v1852 = vpop.xlane.xlu0 %1851
        %v1853 = vrcp.pop %v1852
        %v1854 = vmul.f32 %v1849, %v1853
        %v1855 = vpack.c.bf16 %v1854, %v1854
        %1856 = vrot.lane.b32.xlu0 %v1571, 48
        %v1857 = vpop.permute.xlu0 %1856
        %v1859 = vsel %vm688, %v1855, 0
        %v1862 = vsel %vm692, %v1857, 0
        %1864 = vmatprep.subr.bf16.mxu0 0
        %1865 = vmatpush1.bf16.msra.mxu0 %v1862
        %1866 = vmatprep.subr.bf16.mxu0 0
        %1867 = vmatpush1.bf16.msra.mxu0 0
        %1868 = vmatprep.subr.bf16.mxu0 0
        %1869 = vmatpush1.bf16.msra.mxu0 0
        %1870 = vmatprep.subr.bf16.mxu0 0
        %1871 = vmatpush1.bf16.msra.mxu0 0
        %1872 = vmatprep.subr.bf16.mxu0 0
        %1873 = vmatpush1.bf16.msra.mxu0 0
        %1874 = vmatprep.subr.bf16.mxu0 0
        %1875 = vmatpush1.bf16.msra.mxu0 0
        %1876 = vmatprep.subr.bf16.mxu0 0
        %1877 = vmatpush1.bf16.msra.mxu0 0
        %1878 = vmatprep.subr.bf16.mxu0 0
        %1879 = vmatpush1.bf16.msra.mxu0 0
        %1880 = vmatprep.subr.bf16.mxu0 0
        %1881 = vmatpush1.bf16.msra.mxu0 0
        %1882 = vmatprep.subr.bf16.mxu0 0
        %1883 = vmatpush1.bf16.msra.mxu0 0
        %1884 = vmatprep.subr.bf16.mxu0 0
        %1885 = vmatpush1.bf16.msra.mxu0 0
        %1886 = vmatprep.subr.bf16.mxu0 0
        %1887 = vmatpush1.bf16.msra.mxu0 0
        %1888 = vmatprep.subr.bf16.mxu0 0
        %1889 = vmatpush1.bf16.msra.mxu0 0
        %1890 = vmatprep.subr.bf16.mxu0 0
        %1891 = vmatpush1.bf16.msra.mxu0 0
        %1892 = vmatprep.subr.bf16.mxu0 0
        %1893 = vmatpush1.bf16.msra.mxu0 0
        %1894 = vmatprep.subr.bf16.mxu0 0
        %1895 = vmatpush1.bf16.msra.mxu0 0
        %1896 = vmatprep.mubr.bf16.mxu0 0
        %1897 = vmatmul.mubr.bf16.gmra.mrb[0].mxu0 %v1859
        %v1898 = vpop.f32.mrb[0].mxu0
        %v1899 = vadd.f32 0.0, %v1898
        %v1900 = vpop.f32.mrb[0].mxu0
        %v1901 = vpop.f32.mrb[0].mxu0
        %v1902 = vpop.f32.mrb[0].mxu0
        %1903 = vdwg.mxu0
        %v1904 = vpack.c.bf16 %v1558, %v1558
        %1905 = vrot.lane.b32.xlu0 %v1571, 104
        %v1906 = vpop.permute.xlu0 %1905
        %v1908 = vsel %vm688, %v1906, 0
        %v1911 = vsel %vm692, %v1904, 0
        %1913 = vmatprep.subr.bf16.mxu0 0
        %1914 = vmatpush1.bf16.msra.mxu0 %v1911
        %1915 = vmatprep.subr.bf16.mxu0 0
        %1916 = vmatpush1.bf16.msra.mxu0 0
        %1917 = vmatprep.subr.bf16.mxu0 0
        %1918 = vmatpush1.bf16.msra.mxu0 0
        %1919 = vmatprep.subr.bf16.mxu0 0
        %1920 = vmatpush1.bf16.msra.mxu0 0
        %1921 = vmatprep.subr.bf16.mxu0 0
        %1922 = vmatpush1.bf16.msra.mxu0 0
        %1923 = vmatprep.subr.bf16.mxu0 0
        %1924 = vmatpush1.bf16.msra.mxu0 0
        %1925 = vmatprep.subr.bf16.mxu0 0
        %1926 = vmatpush1.bf16.msra.mxu0 0
        %1927 = vmatprep.subr.bf16.mxu0 0
        %1928 = vmatpush1.bf16.msra.mxu0 0
        %1929 = vmatprep.subr.bf16.mxu0 0
        %1930 = vmatpush1.bf16.msra.mxu0 0
        %1931 = vmatprep.subr.bf16.mxu0 0
        %1932 = vmatpush1.bf16.msra.mxu0 0
        %1933 = vmatprep.subr.bf16.mxu0 0
        %1934 = vmatpush1.bf16.msra.mxu0 0
        %1935 = vmatprep.subr.bf16.mxu0 0
        %1936 = vmatpush1.bf16.msra.mxu0 0
        %1937 = vmatprep.subr.bf16.mxu0 0
        %1938 = vmatpush1.bf16.msra.mxu0 0
        %1939 = vmatprep.subr.bf16.mxu0 0
        %1940 = vmatpush1.bf16.msra.mxu0 0
        %1941 = vmatprep.subr.bf16.mxu0 0
        %1942 = vmatpush1.bf16.msra.mxu0 0
        %1943 = vmatprep.subr.bf16.mxu0 0
        %1944 = vmatpush1.bf16.msra.mxu0 0
        %1945 = vmatprep.mubr.bf16.mxu0 0
        %1946 = vmatmul.mubr.bf16.gmra.mrb[0].mxu0 %v1908
        %v1947 = vpop.f32.mrb[0].mxu0
        %v1948 = vadd.f32 0.0, %v1947
        %v1949 = vpop.f32.mrb[0].mxu0
        %v1950 = vpop.f32.mrb[0].mxu0
        %v1951 = vpop.f32.mrb[0].mxu0
        %1952 = vdwg.mxu0
        %v1953 = vmul.f32 %v1948, 0.35355338
        %v1954 = vadd.f32 %v1953, %v551
        %v1955 = vsel %vm688, %v1954, -inf
        %1956 = vmax.xlane.f32.xlu0 %v1955
        %v1957 = vpop.xlane.xlu0 %1956
        %v1958 = vsub.f32 %v1954, %v1957
        %v1959 = vmul.f32 %v1958, 1.442695
        %v1960 = vpow.pop %v1959
        %v1961 = vsel %vm688, %v1960, 0.0
        %1962 = vadd.xlane.f32.xlu0 %v1961
        %v1963 = vpop.xlane.xlu0 %1962
        %v1964 = vrcp.pop %v1963
        %v1965 = vmul.f32 %v1960, %v1964
        %v1966 = vpack.c.bf16 %v1965, %v1965
        %1967 = vrot.lane.b32.xlu0 %v1571, 40
        %v1968 = vpop.permute.xlu0 %1967
        %v1970 = vsel %vm688, %v1966, 0
        %v1973 = vsel %vm692, %v1968, 0
        %1975 = vmatprep.subr.bf16.mxu0 0
        %1976 = vmatpush1.bf16.msra.mxu0 %v1973
        %1977 = vmatprep.subr.bf16.mxu0 0
        %1978 = vmatpush1.bf16.msra.mxu0 0
        %1979 = vmatprep.subr.bf16.mxu0 0
        %1980 = vmatpush1.bf16.msra.mxu0 0
        %1981 = vmatprep.subr.bf16.mxu0 0
        %1982 = vmatpush1.bf16.msra.mxu0 0
        %1983 = vmatprep.subr.bf16.mxu0 0
        %1984 = vmatpush1.bf16.msra.mxu0 0
        %1985 = vmatprep.subr.bf16.mxu0 0
        %1986 = vmatpush1.bf16.msra.mxu0 0
        %1987 = vmatprep.subr.bf16.mxu0 0
        %1988 = vmatpush1.bf16.msra.mxu0 0
        %1989 = vmatprep.subr.bf16.mxu0 0
        %1990 = vmatpush1.bf16.msra.mxu0 0
        %1991 = vmatprep.subr.bf16.mxu0 0
        %1992 = vmatpush1.bf16.msra.mxu0 0
        %1993 = vmatprep.subr.bf16.mxu0 0
        %1994 = vmatpush1.bf16.msra.mxu0 0
        %1995 = vmatprep.subr.bf16.mxu0 0
        %1996 = vmatpush1.bf16.msra.mxu0 0
        %1997 = vmatprep.subr.bf16.mxu0 0
        %1998 = vmatpush1.bf16.msra.mxu0 0
        %1999 = vmatprep.subr.bf16.mxu0 0
        %2000 = vmatpush1.bf16.msra.mxu0 0
        %2001 = vmatprep.subr.bf16.mxu0 0
        %2002 = vmatpush1.bf16.msra.mxu0 0
        %2003 = vmatprep.subr.bf16.mxu0 0
        %2004 = vmatpush1.bf16.msra.mxu0 0
        %2005 = vmatprep.subr.bf16.mxu0 0
        %2006 = vmatpush1.bf16.msra.mxu0 0
        %2007 = vmatprep.mubr.bf16.mxu0 0
        %2008 = vmatmul.mubr.bf16.gmra.mrb[0].mxu0 %v1970
        %v2009 = vpop.f32.mrb[0].mxu0
        %v2010 = vadd.f32 0.0, %v2009
        %v2011 = vpop.f32.mrb[0].mxu0
        %v2012 = vpop.f32.mrb[0].mxu0
        %v2013 = vpop.f32.mrb[0].mxu0
        %2014 = vdwg.mxu0
        %2016 = vrot.lane.b32.xlu0 %v1788, 8
        %v2017 = vpop.permute.xlu0 %2016
        %2020 = vrot.lane.b32.xlu0 %v1899, 16
        %v2021 = vpop.permute.xlu0 %2020
        %2024 = vrot.lane.b32.xlu0 %v2010, 24
        %v2025 = vpop.permute.xlu0 %2024
        %v2027 = vsel %vm688, %v1677, %v2017
        %v2028 = vsel %vm1145, %v2027, %v2021
        %v2029 = vsel %vm1147, %v2028, %v2025
        %v2030 = vpack.c.bf16 %v2029, %v2029
        %s2031 = scalar_lea.vmem %s5, 16
        %v2032 = vld [vmem:[%s2031] sm:$0xf]
        %v2033 = vld [vmem:[%s2031 + $0x4] sm:$0xf]
        %v2034 = vld [vmem:[%s2031 + $0x8] sm:$0xf]
        %v2035 = vld [vmem:[%s2031 + $0xc] sm:$0xf]
        %s2036 = scalar_lea.vmem %s6, 1
        %v2037 = vld [vmem:[%s2036] sm:$0x1]
        %v2039 = vlaneseq
        %v2040 = vshrl.u32 %v2039, 7
        %v2041 = vsub.s32 0, %v2040
        %v2042 = vrot.slane %v2037, %v2041
        %v2048 = vunpack.c.l.b16 %v2032
        %v2049 = vunpack.c.l.b16 %v2033
        %v2050 = vunpack.c.l.b16 %v2034
        %v2051 = vunpack.c.l.b16 %v2035
        %v2052 = vpack.c.b16 %v2049, %v2048
        %v2053 = vpack.c.b16 %v2051, %v2050
        %v2057 = vsel %vm554, %v2030, 0
        %2059 = vmatprep.subr.bf16.mxu0 0
        %2060 = vmatpush1.bf16.msra.mxu0 %v2052
        %2061 = vmatprep.subr.bf16.mxu0 0
        %2062 = vmatpush1.bf16.msra.mxu0 %v2053
        %2063 = vmatprep.subr.bf16.mxu0 0
        %2064 = vmatpush1.bf16.msra.mxu0 0
        %2065 = vmatprep.subr.bf16.mxu0 0
        %2066 = vmatpush1.bf16.msra.mxu0 0
        %2067 = vmatprep.subr.bf16.mxu0 0
        %2068 = vmatpush1.bf16.msra.mxu0 0
        %2069 = vmatprep.subr.bf16.mxu0 0
        %2070 = vmatpush1.bf16.msra.mxu0 0
        %2071 = vmatprep.subr.bf16.mxu0 0
        %2072 = vmatpush1.bf16.msra.mxu0 0
        %2073 = vmatprep.subr.bf16.mxu0 0
        %2074 = vmatpush1.bf16.msra.mxu0 0
        %2075 = vmatprep.subr.bf16.mxu0 0
        %2076 = vmatpush1.bf16.msra.mxu0 0
        %2077 = vmatprep.subr.bf16.mxu0 0
        %2078 = vmatpush1.bf16.msra.mxu0 0
        %2079 = vmatprep.subr.bf16.mxu0 0
        %2080 = vmatpush1.bf16.msra.mxu0 0
        %2081 = vmatprep.subr.bf16.mxu0 0
        %2082 = vmatpush1.bf16.msra.mxu0 0
        %2083 = vmatprep.subr.bf16.mxu0 0
        %2084 = vmatpush1.bf16.msra.mxu0 0
        %2085 = vmatprep.subr.bf16.mxu0 0
        %2086 = vmatpush1.bf16.msra.mxu0 0
        %2087 = vmatprep.subr.bf16.mxu0 0
        %2088 = vmatpush1.bf16.msra.mxu0 0
        %2089 = vmatprep.subr.bf16.mxu0 0
        %2090 = vmatpush1.bf16.msra.mxu0 0
        %2091 = vmatprep.mubr.bf16.mxu0 0
        %2092 = vmatmul.mubr.bf16.gmra.mrb[0].mxu0 %v2057
        %v2093 = vpop.f32.mrb[0].mxu0
        %v2094 = vadd.f32 %v2042, %v2093
        %v2095 = vpop.f32.mrb[0].mxu0
        %v2096 = vpop.f32.mrb[0].mxu0
        %v2097 = vpop.f32.mrb[0].mxu0
        %2098 = vdwg.mxu0
        %v2099 = vadd.f32 %v1434, %v2094
        %s2100 = scalar_lea.vmem %s7, 1
        %v2101 = vld [vmem:[%s2100] sm:$0x1]
        %s2102 = scalar_lea.vmem %s8, 1
        %v2103 = vld [vmem:[%s2102] sm:$0x1]
        %v2104 = vsel %vm554, %v2099, 0.0
        %2105 = vadd.xlane.f32.xlu0 %v2104
        %v2106 = vpop.xlane.xlu0 %2105
        %v2107 = vmul.f32 %v2106, %v558
        %v2108 = vsub.f32 %v2099, %v2107
        %v2109 = vmul.f32 %v2108, %v2108
        %v2110 = vsel %vm554, %v2109, 0.0
        %2111 = vadd.xlane.f32.xlu0 %v2110
        %v2112 = vpop.xlane.xlu0 %2111
        %v2113 = vmul.f32 %v2112, %v558
        %v2114 = vadd.f32 %v2113, 1e-05
        %v2115 = vrsqrt.pop %v2114
        %v2116 = vmul.f32 %v2108, %v2115
        %v2118 = vlaneseq
        %v2119 = vshrl.u32 %v2118, 7
        %v2120 = vsub.s32 0, %v2119
        %v2121 = vrot.slane %v2101, %v2120
        %v2123 = vmul.f32 %v2116, %v2121
        %v2125 = vlaneseq
        %v2126 = vshrl.u32 %v2125, 7
        %v2127 = vsub.s32 0, %v2126
        %v2128 = vrot.slane %v2103, %v2127
        %v2130 = vadd.f32 %v2123, %v2128
        %v2131 = vpack.c.bf16 %v2130, %v2130
        %s2132 = scalar_lea.vmem %s9, 16
        %v2133 = vld [vmem:[%s2132] sm:$0xf]
        %v2134 = vld [vmem:[%s2132 + $0x4] sm:$0xf]
        %v2135 = vld [vmem:[%s2132 + $0x8] sm:$0xf]
        %v2136 = vld [vmem:[%s2132 + $0xc] sm:$0xf]
        %s2137 = scalar_lea.vmem %s10, 1
        %v2138 = vld [vmem:[%s2137] sm:$0x1]
        %v2140 = vlaneseq
        %v2141 = vshrl.u32 %v2140, 7
        %v2142 = vsub.s32 0, %v2141
        %v2143 = vrot.slane %v2138, %v2142
        %v2149 = vunpack.c.l.b16 %v2133
        %v2150 = vunpack.c.l.b16 %v2134
        %v2151 = vunpack.c.l.b16 %v2135
        %v2152 = vunpack.c.l.b16 %v2136
        %v2153 = vpack.c.b16 %v2150, %v2149
        %v2154 = vpack.c.b16 %v2152, %v2151
        %v2158 = vsel %vm554, %v2131, 0
        %2160 = vmatprep.subr.bf16.mxu0 0
        %2161 = vmatpush1.bf16.msra.mxu0 %v2153
        %2162 = vmatprep.subr.bf16.mxu0 0
        %2163 = vmatpush1.bf16.msra.mxu0 %v2154
        %2164 = vmatprep.subr.bf16.mxu0 0
        %2165 = vmatpush1.bf16.msra.mxu0 0
        %2166 = vmatprep.subr.bf16.mxu0 0
        %2167 = vmatpush1.bf16.msra.mxu0 0
        %2168 = vmatprep.subr.bf16.mxu0 0
        %2169 = vmatpush1.bf16.msra.mxu0 0
        %2170 = vmatprep.subr.bf16.mxu0 0
        %2171 = vmatpush1.bf16.msra.mxu0 0
        %2172 = vmatprep.subr.bf16.mxu0 0
        %2173 = vmatpush1.bf16.msra.mxu0 0
        %2174 = vmatprep.subr.bf16.mxu0 0
        %2175 = vmatpush1.bf16.msra.mxu0 0
        %2176 = vmatprep.subr.bf16.mxu0 0
        %2177 = vmatpush1.bf16.msra.mxu0 0
        %2178 = vmatprep.subr.bf16.mxu0 0
        %2179 = vmatpush1.bf16.msra.mxu0 0
        %2180 = vmatprep.subr.bf16.mxu0 0
        %2181 = vmatpush1.bf16.msra.mxu0 0
        %2182 = vmatprep.subr.bf16.mxu0 0
        %2183 = vmatpush1.bf16.msra.mxu0 0
        %2184 = vmatprep.subr.bf16.mxu0 0
        %2185 = vmatpush1.bf16.msra.mxu0 0
        %2186 = vmatprep.subr.bf16.mxu0 0
        %2187 = vmatpush1.bf16.msra.mxu0 0
        %2188 = vmatprep.subr.bf16.mxu0 0
        %2189 = vmatpush1.bf16.msra.mxu0 0
        %2190 = vmatprep.subr.bf16.mxu0 0
        %2191 = vmatpush1.bf16.msra.mxu0 0
        %2192 = vmatprep.mubr.bf16.mxu0 0
        %2193 = vmatmul.mubr.bf16.gmra.mrb[0].mxu0 %v2158
        %v2194 = vpop.f32.mrb[0].mxu0
        %v2195 = vadd.f32 %v2143, %v2194
        %v2196 = vpop.f32.mrb[0].mxu0
        %v2197 = vpop.f32.mrb[0].mxu0
        %v2198 = vpop.f32.mrb[0].mxu0
        %2199 = vdwg.mxu0
        %v2200 = vmul.f32 %v2195, 0.5
        %v2201 = vmul.f32 %v2195, 0.044715
        %v2202 = vmul.f32 %v2201, %v2195
        %v2203 = vmul.f32 %v2202, %v2195
        %v2204 = vadd.f32 %v2195, %v2203
        %v2205 = vmul.f32 %v2204, 0.7978846
        %v2206 = vtanh.pop %v2205
        %v2207 = vadd.f32 %v2206, 1.0
        %v2208 = vmul.f32 %v2200, %v2207
        %v2209 = vpack.c.bf16 %v2208, %v2208
        %s2210 = scalar_lea.vmem %s11, 64
        %v2211 = vld [vmem:[%s2210] sm:$0xf]
        %v2212 = vld [vmem:[%s2210 + $0x4] sm:$0xf]
        %v2213 = vld [vmem:[%s2210 + $0x8] sm:$0xf]
        %v2214 = vld [vmem:[%s2210 + $0xc] sm:$0xf]
        %v2215 = vld [vmem:[%s2210 + $0x10] sm:$0xf]
        %v2216 = vld [vmem:[%s2210 + $0x14] sm:$0xf]
        %v2217 = vld [vmem:[%s2210 + $0x18] sm:$0xf]
        %v2218 = vld [vmem:[%s2210 + $0x1c] sm:$0xf]
        %v2219 = vld [vmem:[%s2210 + $0x20] sm:$0xf]
        %v2220 = vld [vmem:[%s2210 + $0x24] sm:$0xf]
        %v2221 = vld [vmem:[%s2210 + $0x28] sm:$0xf]
        %v2222 = vld [vmem:[%s2210 + $0x2c] sm:$0xf]
        %v2223 = vld [vmem:[%s2210 + $0x30] sm:$0xf]
        %v2224 = vld [vmem:[%s2210 + $0x34] sm:$0xf]
        %v2225 = vld [vmem:[%s2210 + $0x38] sm:$0xf]
        %v2226 = vld [vmem:[%s2210 + $0x3c] sm:$0xf]
        %s2227 = scalar_lea.vmem %s12, 1
        %v2228 = vld [vmem:[%s2227] sm:$0x1]
        %v2230 = vlaneseq
        %v2231 = vshrl.u32 %v2230, 7
        %v2232 = vsub.s32 0, %v2231
        %v2233 = vrot.slane %v2228, %v2232
        %v2251 = vunpack.c.l.b16 %v2211
        %v2252 = vunpack.c.l.b16 %v2212
        %v2253 = vunpack.c.l.b16 %v2213
        %v2254 = vunpack.c.l.b16 %v2214
        %v2255 = vunpack.c.l.b16 %v2215
        %v2256 = vunpack.c.l.b16 %v2216
        %v2257 = vunpack.c.l.b16 %v2217
        %v2258 = vunpack.c.l.b16 %v2218
        %v2259 = vunpack.c.l.b16 %v2219
        %v2260 = vunpack.c.l.b16 %v2220
        %v2261 = vunpack.c.l.b16 %v2221
        %v2262 = vunpack.c.l.b16 %v2222
        %v2263 = vunpack.c.l.b16 %v2223
        %v2264 = vunpack.c.l.b16 %v2224
        %v2265 = vunpack.c.l.b16 %v2225
        %v2266 = vunpack.c.l.b16 %v2226
        %v2267 = vpack.c.b16 %v2252, %v2251
        %v2268 = vpack.c.b16 %v2254, %v2253
        %v2269 = vpack.c.b16 %v2256, %v2255
        %v2270 = vpack.c.b16 %v2258, %v2257
        %v2271 = vpack.c.b16 %v2260, %v2259
        %v2272 = vpack.c.b16 %v2262, %v2261
        %v2273 = vpack.c.b16 %v2264, %v2263
        %v2274 = vpack.c.b16 %v2266, %v2265
        %2283 = vmatprep.subr.bf16.mxu0 0
        %2284 = vmatpush1.bf16.msra.mxu0 %v2267
        %2285 = vmatprep.subr.bf16.mxu0 0
        %2286 = vmatpush1.bf16.msra.mxu0 %v2268
        %2287 = vmatprep.subr.bf16.mxu0 0
        %2288 = vmatpush1.bf16.msra.mxu0 %v2269
        %2289 = vmatprep.subr.bf16.mxu0 0
        %2290 = vmatpush1.bf16.msra.mxu0 %v2270
        %2291 = vmatprep.subr.bf16.mxu0 0
        %2292 = vmatpush1.bf16.msra.mxu0 %v2271
        %2293 = vmatprep.subr.bf16.mxu0 0
        %2294 = vmatpush1.bf16.msra.mxu0 %v2272
        %2295 = vmatprep.subr.bf16.mxu0 0
        %2296 = vmatpush1.bf16.msra.mxu0 %v2273
        %2297 = vmatprep.subr.bf16.mxu0 0
        %2298 = vmatpush1.bf16.msra.mxu0 %v2274
        %2299 = vmatprep.subr.bf16.mxu0 0
        %2300 = vmatpush1.bf16.msra.mxu0 0
        %2301 = vmatprep.subr.bf16.mxu0 0
        %2302 = vmatpush1.bf16.msra.mxu0 0
        %2303 = vmatprep.subr.bf16.mxu0 0
        %2304 = vmatpush1.bf16.msra.mxu0 0
        %2305 = vmatprep.subr.bf16.mxu0 0
        %2306 = vmatpush1.bf16.msra.mxu0 0
        %2307 = vmatprep.subr.bf16.mxu0 0
        %2308 = vmatpush1.bf16.msra.mxu0 0
        %2309 = vmatprep.subr.bf16.mxu0 0
        %2310 = vmatpush1.bf16.msra.mxu0 0
        %2311 = vmatprep.subr.bf16.mxu0 0
        %2312 = vmatpush1.bf16.msra.mxu0 0
        %2313 = vmatprep.subr.bf16.mxu0 0
        %2314 = vmatpush1.bf16.msra.mxu0 0
        %2315 = vmatprep.mubr.bf16.mxu0 0
        %2316 = vmatmul.mubr.bf16.gmra.mrb[0].mxu0 %v2209
        %v2317 = vpop.f32.mrb[0].mxu0
        %v2318 = vadd.f32 %v2233, %v2317
        %v2319 = vpop.f32.mrb[0].mxu0
        %v2320 = vpop.f32.mrb[0].mxu0
        %v2321 = vpop.f32.mrb[0].mxu0
        %2322 = vdwg.mxu0
        %v2323 = vadd.f32 %v2099, %v2318
        %v2324 = vld [vmem:[%s13] sm:$0x1]
        %v2325 = vld [vmem:[%s14] sm:$0x1]
        %v2326 = vsel %vm554, %v2323, 0.0
        %2327 = vadd.xlane.f32.xlu0 %v2326
        %v2328 = vpop.xlane.xlu0 %2327
        %v2329 = vmul.f32 %v2328, %v558
        %v2330 = vsub.f32 %v2323, %v2329
        %v2331 = vmul.f32 %v2330, %v2330
        %v2332 = vsel %vm554, %v2331, 0.0
        %2333 = vadd.xlane.f32.xlu0 %v2332
        %v2334 = vpop.xlane.xlu0 %2333
        %v2335 = vmul.f32 %v2334, %v558
        %v2336 = vadd.f32 %v2335, 1e-05
        %v2337 = vrsqrt.pop %v2336
        %v2338 = vmul.f32 %v2330, %v2337
        %v2340 = vlaneseq
        %v2341 = vshrl.u32 %v2340, 7
        %v2342 = vsub.s32 0, %v2341
        %v2343 = vrot.slane %v2324, %v2342
        %v2345 = vmul.f32 %v2338, %v2343
        %v2347 = vlaneseq
        %v2348 = vshrl.u32 %v2347, 7
        %v2349 = vsub.s32 0, %v2348
        %v2350 = vrot.slane %v2325, %v2349
        %v2352 = vadd.f32 %v2345, %v2350
        %v2353 = vld [vmem:[%s15] sm:$0x1]
        %v2354 = vld [vmem:[%s16] sm:$0x1]
        %v2355 = vsel %vm554, %v2352, 0.0
        %2356 = vadd.xlane.f32.xlu0 %v2355
        %v2357 = vpop.xlane.xlu0 %2356
        %v2358 = vmul.f32 %v2357, %v558
        %v2359 = vsub.f32 %v2352, %v2358
        %v2360 = vmul.f32 %v2359, %v2359
        %v2361 = vsel %vm554, %v2360, 0.0
        %2362 = vadd.xlane.f32.xlu0 %v2361
        %v2363 = vpop.xlane.xlu0 %2362
        %v2364 = vmul.f32 %v2363, %v558
        %v2365 = vadd.f32 %v2364, 1e-05
        %v2366 = vrsqrt.pop %v2365
        %v2367 = vmul.f32 %v2359, %v2366
        %v2369 = vlaneseq
        %v2370 = vshrl.u32 %v2369, 7
        %v2371 = vsub.s32 0, %v2370
        %v2372 = vrot.slane %v2353, %v2371
        %v2374 = vmul.f32 %v2367, %v2372
        %v2376 = vlaneseq
        %v2377 = vshrl.u32 %v2376, 7
        %v2378 = vsub.s32 0, %v2377
        %v2379 = vrot.slane %v2354, %v2378
        %v2381 = vadd.f32 %v2374, %v2379
        %2382 = vst.msk [vmem:[%s539] sm:$0xff] %vm554, %v2381
        %s2383 = sand.u32 %s401, 1
        %s2384 = scalar_lea.sflag [#allocation3], %s2383
        %s2385 = sand.u32 %s401, 1
        %s2386 = smul.addr %s2385, 8
        %s2387 = scalar_lea.vmem [#allocation2], %s2386
        // Predicated region
        $region89: #{gpt2_tts_forward.1} parent=87 // pred_check
          %p2388 = pneg %p411
        $region90: #{gpt2_tts_forward.1} parent=87 // pred_check_branch
          %2390 = sbr.rel (%p2388) target = $region92
        $region91: #{gpt2_tts_forward.1} parent=87 // pred_region
          %s2392 = ssub.s32 128, 128
          %2393 = vsyncadd %s2384, %s2392
          %s2394 = smul.addr %s31, 128
          %s2395 = scalar_lea.hbm %s17, %s2394
          %s2397 = sshll.u32 %s2387, 4
          %s2398 = int_to_ptr.vmem [resolvable:$true] %s2397
          %2400 = dma.vmem_to_hbm [thread:$0]  %s2398, 128, %s2395, %s2384
        $region92: #{gpt2_tts_forward.1} parent=87 // pred_fallthru
          _
      $region88: #{gpt2_tts_forward.1} parent=5 // pred_fallthru
        _
      %p2401 = scmp.le.s32.totalorder 2, %s26
      // Predicated region
      $region93: #{gpt2_tts_forward.1} parent=5 // pred_check
        %p2402 = pneg %p2401
      $region94: #{gpt2_tts_forward.1} parent=5 // pred_check_branch
        %2404 = sbr.rel (%p2402) target = $region96
      $region95: #{gpt2_tts_forward.1} parent=5 // pred_region
        %s2405 = ssub.s32 %s26, 2
        // Predicated region
        $region97: #{gpt2_tts_forward.1} parent=95 // pred_check
          %p2406 = pneg %p417
        $region98: #{gpt2_tts_forward.1} parent=95 // pred_check_branch
          %2408 = sbr.rel (%p2406) target = $region100
        $region99: #{gpt2_tts_forward.1} parent=95 // pred_region
          %s2409 = sand.u32 %s402, 1
          %s2410 = scalar_lea.sflag [#allocation3], %s2409
          %s2411 = sand.u32 %s402, 1
          %s2412 = smul.addr %s2411, 8
          %s2413 = scalar_lea.vmem [#allocation2], %s2412
          %2414 = dma.done %s2410, 128
        $region100: #{gpt2_tts_forward.1} parent=95 // pred_fallthru
          _
      $region96: #{gpt2_tts_forward.1} parent=5 // pred_fallthru
        _
    $region6: #{gpt2_tts_forward.1} parent=1 // loop_footer
      %s30 = sadd.s32 1, %s26
    $region7: #{gpt2_tts_forward.1} parent=1 // loop_footer_branch
      %25 = sbr.rel target = $region3
    $region8: #{gpt2_tts_forward.1} parent=1 // loop_exit
      _
    %2415 = vsyncpa [#allocation3], 1
    %s2416 = scalar_lea.sflag [#allocation3], 1
    %2417 = vsyncpa %s2416, 1

</llo_original>
